<compile_context>
chip_gen: v7x
topology: tpu7x:2x2x1
jax: 0.10.0
libtpu: 0.0.40
codegen_flags: <defaults>
</compile_context>

<pallas_src>
import functools
import math

import jax
import jax.numpy as jnp
from jax.experimental import pallas as pl
from jax.experimental.pallas import tpu as pltpu

_LANE = 128
_SUBLANE = 8
_T_CHUNK = 8            # timesteps processed per grid step


def _round_up(n, m):
    return ((n + m - 1) // m) * m


# ---------------------------------------------------------------------------
# Pallas kernel: one chunk of T timesteps for one direction of one layer.
# ---------------------------------------------------------------------------
def _bigru_chunk_kernel(gin_ref, whh_ref, bhn_ref, len_ref, out_ref, h_scr, *,
                        h_pad, t_chunk):
    """Grid = (direction, time_chunk).

    gin_ref : (T, B_pad, 3*H_pad) f32   precomputed x@W_ih + folded biases
    whh_ref : (H_pad, 3*H_pad)    bf16  packed recurrent weights [r|z|n]
    bhn_ref : (1, H_pad)          f32   b_hh for the n gate (stays inside r*(...))
    len_ref : (B_pad, 1)          i32   valid lengths (constant block)
    out_ref : (T, B_pad, H_pad)   f32   this direction's half of the output
    h_scr   : (B_pad, H_pad)      f32   hidden-state carry across chunks
    """
    d = pl.program_id(0)              # 0 = forward, 1 = backward
    c = pl.program_id(1)              # chunk index (carry axis)
    num_c = pl.num_programs(1)

    @pl.when(c == 0)
    def _():
        h_scr[...] = jnp.zeros_like(h_scr)

    lengths = len_ref[...]            # (B_pad, 1) int32
    whh = whh_ref[...]                # (H_pad, 3*H_pad) bf16
    bhn = bhn_ref[...]                # (1, H_pad) f32

    def cell(tt, t_glob, h):
        # tt is a Python int -> static loads/stores on gin_ref / out_ref.
        g_in = gin_ref[tt]            # (B_pad, 3*H_pad) f32

        gh = jnp.dot(h.astype(jnp.bfloat16), whh,
                     preferred_element_type=jnp.float32)   # (B_pad, 3*H_pad)

        r = jax.nn.sigmoid(g_in[:, :h_pad] + gh[:, :h_pad])
        z = jax.nn.sigmoid(g_in[:, h_pad:2 * h_pad] + gh[:, h_pad:2 * h_pad])
        n = jnp.tanh(g_in[:, 2 * h_pad:] + r * (gh[:, 2 * h_pad:] + bhn))
        h_new = (1.0 - z) * n + z * h

        valid = t_glob < lengths                            # (B_pad, 1) bool
        h_new = jnp.where(valid, h_new, h)                  # freeze on padding
        out_ref[tt] = jnp.where(valid, h_new, jnp.zeros_like(h_new))
        return h_new

    @pl.when(d == 0)
    def _fwd():
        t0 = c * t_chunk                                    # global time of tt=0
        h = h_scr[...]
        for tt in range(t_chunk):                           # statically unrolled
            h = cell(tt, t0 + tt, h)
        h_scr[...] = h

    @pl.when(d == 1)
    def _bwd():
        t0 = (num_c - 1 - c) * t_chunk
        h = h_scr[...]
        for tt in range(t_chunk - 1, -1, -1):               # statically unrolled
            h = cell(tt, t0 + tt, h)
        h_scr[...] = h


def _run_bigru_layer(gates_in, whh, bhn, lengths_2d, h_pad, t_chunk):
    """Run both directions of one bidirectional GRU layer in a single call."""
    _, s_pad, b_pad, gw = gates_in.shape
    num_chunks = s_pad // t_chunk

    def tblock(d, c):   # time-block index: c for forward, num_chunks-1-c for backward
        return d * (num_chunks - 1 - 2 * c) + c

    kernel = functools.partial(_bigru_chunk_kernel, h_pad=h_pad, t_chunk=t_chunk)

    return pl.pallas_call(
        kernel,
        out_shape=jax.ShapeDtypeStruct((s_pad, b_pad, 2 * h_pad), jnp.float32),
        grid_spec=pltpu.PrefetchScalarGridSpec(
            num_scalar_prefetch=0,
            grid=(2, num_chunks),
            in_specs=[
                pl.BlockSpec((None, t_chunk, b_pad, gw),
                             lambda d, c: (d, tblock(d, c), 0, 0)),
                pl.BlockSpec((None, h_pad, gw), lambda d, c: (d, 0, 0)),
                pl.BlockSpec((None, 1, h_pad), lambda d, c: (d, 0, 0)),
                pl.BlockSpec((b_pad, 1), lambda d, c: (0, 0)),
            ],
            # Each direction writes its own lane-dense H_pad half of the output.
            out_specs=pl.BlockSpec((t_chunk, b_pad, h_pad),
                                   lambda d, c: (tblock(d, c), 0, d)),
            scratch_shapes=[pltpu.VMEM((b_pad, h_pad), jnp.float32)],
        ),
        compiler_params=pltpu.CompilerParams(
            # direction axis is independent (2 TCs on v7x); time carries state.
            dimension_semantics=("parallel", "arbitrary")),
    )(gates_in, whh, bhn, lengths_2d)


# ---------------------------------------------------------------------------
# Parameters (nn.GRU layout) + repacking into the padded kernel layout.
# ---------------------------------------------------------------------------
def init_gru_params(key, input_size, hidden_size, num_layers):
    """Raw nn.GRU-style params: per layer, per direction (w_ih, w_hh, b_ih, b_hh)."""
    bound = 1.0 / math.sqrt(hidden_size)
    params = []
    for layer in range(num_layers):
        in_size = input_size if layer == 0 else 2 * hidden_size
        layer_params = []
        for _direction in range(2):
            key, k1, k2, k3, k4 = jax.random.split(key, 5)
            w_ih = jax.random.uniform(k1, (3 * hidden_size, in_size),
                                      jnp.float32, -bound, bound)
            w_hh = jax.random.uniform(k2, (3 * hidden_size, hidden_size),
                                      jnp.float32, -bound, bound)
            b_ih = jax.random.uniform(k3, (3 * hidden_size,),
                                      jnp.float32, -bound, bound)
            b_hh = jax.random.uniform(k4, (3 * hidden_size,),
                                      jnp.float32, -bound, bound)
            layer_params.append((w_ih, w_hh, b_ih, b_hh))
        params.append(layer_params)
    return params


def pack_gru_params(raw_params, input_size, hidden_size):
    """Pack per-gate weights into [r|z|n] blocks, pad H -> H_pad, cast to bf16.

    Biases: b_ih and b_hh for r and z are folded into the hoisted input
    projection; only b_hh[n] stays separate (it sits inside r * (...)).
    Layers > 0 consume the previous layer's padded (2*H_pad) output directly
    (zero rows for the padded lanes), so no slicing/concat between layers.
    """
    H = hidden_size
    H_pad = _round_up(H, _LANE)
    GW = 3 * H_pad
    packed = []
    for layer, layer_raw in enumerate(raw_params):
        f_in_pad = input_size if layer == 0 else 2 * H_pad
        wih_d, whh_d, bf_d, bn_d = [], [], [], []
        for (w_ih, w_hh, b_ih, b_hh) in layer_raw:
            wih = jnp.zeros((f_in_pad, GW), jnp.float32)
            whh = jnp.zeros((H_pad, GW), jnp.float32)
            b_fold = jnp.zeros((GW,), jnp.float32)
            bhn = jnp.zeros((H_pad,), jnp.float32)
            for g in range(3):                          # 0=r, 1=z, 2=n
                wg_ih = w_ih[g * H:(g + 1) * H]         # (H, F_in_raw)
                wg_hh = w_hh[g * H:(g + 1) * H]         # (H, H)
                c0 = g * H_pad
                if layer == 0:
                    wih = wih.at[:input_size, c0:c0 + H].set(wg_ih.T)
                else:
                    # previous layer output layout: [fwd(H) | 0-pad | bwd(H) | 0-pad]
                    wih = wih.at[0:H, c0:c0 + H].set(wg_ih[:, :H].T)
                    wih = wih.at[H_pad:H_pad + H, c0:c0 + H].set(wg_ih[:, H:].T)
                whh = whh.at[0:H, c0:c0 + H].set(wg_hh.T)
                if g < 2:
                    b_fold = b_fold.at[c0:c0 + H].set(
                        b_ih[g * H:(g + 1) * H] + b_hh[g * H:(g + 1) * H])
                else:
                    b_fold = b_fold.at[c0:c0 + H].set(b_ih[g * H:(g + 1) * H])
                    bhn = bhn.at[:H].set(b_hh[g * H:(g + 1) * H])
            wih_d.append(wih.astype(jnp.bfloat16))
            whh_d.append(whh.astype(jnp.bfloat16))
            bf_d.append(b_fold)
            bn_d.append(bhn)
        packed.append({
            "wih": jnp.stack(wih_d),                       # (2, F_pad, 3*H_pad) bf16
            "whh": jnp.stack(whh_d),                       # (2, H_pad, 3*H_pad) bf16
            "b_fold": jnp.stack(bf_d)[:, None, None, :],   # (2, 1, 1, 3*H_pad) f32
            "bhn": jnp.stack(bn_d)[:, None, :],            # (2, 1, H_pad) f32
        })
    return packed


# ---------------------------------------------------------------------------
# Public forward (equivalent of GRUEncoder.forward, eval mode).
# ---------------------------------------------------------------------------
def gru_encoder_forward(x, lengths, packed_params, hidden_size,
                        drop_prob=0.0, training=False, t_chunk=_T_CHUNK):
    """x: (B, S, input_size) f32, lengths: (B,) int -> (B, S, 2*hidden_size)."""
    B, S, _ = x.shape
    H = hidden_size
    H_pad = packed_params[0]["whh"].shape[1]
    B_pad = _round_up(B, _SUBLANE)
    S_pad = _round_up(S, t_chunk)

    x_tm = jnp.transpose(x, (1, 0, 2)).astype(jnp.float32)        # (S, B, F)
    x_tm = jnp.pad(x_tm, ((0, S_pad - S), (0, B_pad - B), (0, 0)))
    lengths_2d = jnp.pad(lengths.astype(jnp.int32), (0, B_pad - B))[:, None]

    layer_in = x_tm                                               # (S_pad, B_pad, F)
    for lp in packed_params:
        # Hoisted input projection: one large bf16 matmul per layer (both
        # directions at once), biases (except b_hh[n]) folded in.
        gates_in = (jnp.einsum("sbf,dfg->dsbg",
                               layer_in.astype(jnp.bfloat16), lp["wih"],
                               preferred_element_type=jnp.float32)
                    + lp["b_fold"])                    # (2, S_pad, B_pad, 3*H_pad)
        layer_in = _run_bigru_layer(gates_in, lp["whh"], lp["bhn"], lengths_2d,
                                    H_pad, t_chunk)    # (S_pad, B_pad, 2*H_pad)
        # TODO(synk): inter-layer dropout only applies when training with
        # drop_prob > 0; this script runs eval semantics (F.dropout no-op).

    out = jnp.concatenate(
        [layer_in[:S, :B, :H], layer_in[:S, :B, H_pad:H_pad + H]], axis=-1)
    # Final F.dropout(x, drop_prob, training=False) is a no-op in eval mode.
    return jnp.transpose(out, (1, 0, 2))                          # (B, S, 2H)


# ---------------------------------------------------------------------------
# Pure-JAX (lax.scan) reference with identical math, for validation.
# ---------------------------------------------------------------------------
def _reference_forward(x, lengths, packed_params, hidden_size, t_chunk=_T_CHUNK):
    B, S, _ = x.shape
    H = hidden_size
    H_pad = packed_params[0]["whh"].shape[1]
    B_pad = _round_up(B, _SUBLANE)
    S_pad = _round_up(S, t_chunk)

    x_tm = jnp.pad(jnp.transpose(x, (1, 0, 2)).astype(jnp.float32),
                   ((0, S_pad - S), (0, B_pad - B), (0, 0)))
    len_p = jnp.pad(lengths.astype(jnp.int32), (0, B_pad - B))    # (B_pad,)

    layer_in = x_tm
    for lp in packed_params:
        gates_in = (jnp.einsum("sbf,dfg->dsbg",
                               layer_in.astype(jnp.bfloat16), lp["wih"],
                               preferred_element_type=jnp.float32)
                    + lp["b_fold"])
        outs = []
        for d in range(2):
            whh, bhn = lp["whh"][d], lp["bhn"][d]
            g_seq = gates_in[d]
            t_idx = jnp.arange(S_pad)
            if d == 1:
                g_seq, t_idx = g_seq[::-1], t_idx[::-1]

            def step(h, inp, whh=whh, bhn=bhn):
                g_in, t = inp
                gh = jnp.dot(h.astype(jnp.bfloat16), whh,
                             preferred_element_type=jnp.float32)
                r = jax.nn.sigmoid(g_in[:, :H_pad] + gh[:, :H_pad])
                z = jax.nn.sigmoid(g_in[:, H_pad:2 * H_pad] + gh[:, H_pad:2 * H_pad])
                n = jnp.tanh(g_in[:, 2 * H_pad:] + r * (gh[:, 2 * H_pad:] + bhn))
                h_new = (1.0 - z) * n + z * h
                valid = (t < len_p)[:, None]
                h_new = jnp.where(valid, h_new, h)
                return h_new, jnp.where(valid, h_new, 0.0)

            h0 = jnp.zeros((B_pad, H_pad), jnp.float32)
            _, ys = jax.lax.scan(step, h0, (g_seq, t_idx))
            if d == 1:
                ys = ys[::-1]
            outs.append(ys)
        layer_in = jnp.concatenate(outs, axis=-1)
    out = jnp.concatenate(
        [layer_in[:S, :B, :H], layer_in[:S, :B, H_pad:H_pad + H]], axis=-1)
    return jnp.transpose(out, (1, 0, 2))


if __name__ == "__main__":
    BATCH, SEQ, INPUT_SIZE, HIDDEN_SIZE, NUM_LAYERS = 4, 8, 16, 32, 2

    key = jax.random.PRNGKey(0)
    kx, kp = jax.random.split(key)
    x = jax.random.normal(kx, (BATCH, SEQ, INPUT_SIZE), jnp.float32)
    lengths = jnp.array([8, 5, 3, 7], jnp.int32)

    raw_params = init_gru_params(kp, INPUT_SIZE, HIDDEN_SIZE, NUM_LAYERS)
    packed_params = pack_gru_params(raw_params, INPUT_SIZE, HIDDEN_SIZE)

    out = gru_encoder_forward(x, lengths, packed_params, HIDDEN_SIZE,
                              drop_prob=0.0, training=False)
    out = jax.block_until_ready(out)

    assert out.shape == (BATCH, SEQ, 2 * HIDDEN_SIZE), out.shape
    ref = _reference_forward(x, lengths, packed_params, HIDDEN_SIZE)
    assert jnp.allclose(out, ref, rtol=2e-3, atol=2e-3), "mismatch vs JAX reference"

    print("KERNEL_OK")
</pallas_src>

<mosaic_0001>
module attributes {stable_mosaic.version = 11 : i64} {
  func.func @_bigru_chunk_kernel(%arg0: i32, %arg1: i32, %arg2: memref<1x8x8x384xf32, #tpu.memory_space<vmem>>, %arg3: memref<1x128x384xbf16, #tpu.memory_space<vmem>>, %arg4: memref<1x1x128xf32, #tpu.memory_space<vmem>>, %arg5: memref<8x1xi32, #tpu.memory_space<vmem>>, %arg6: memref<8x8x128xf32, #tpu.memory_space<vmem>>, %arg7: memref<8x128xf32, #tpu.memory_space<vmem>>) attributes {dimension_semantics = [#tpu.dimension_semantics<parallel>, #tpu.dimension_semantics<arbitrary>], iteration_bounds = array<i64: 2, 1>, scalar_prefetch = 0 : i64, scratch_operands = 1 : i64, tpu.core_type = #tpu.core_type<tc>, window_params = [{transform_indices = @transform_0, window_bounds = array<i64: 1, 8, 8, 384>}, {transform_indices = @transform_1, window_bounds = array<i64: 1, 128, 384>}, {transform_indices = @transform_2, window_bounds = array<i64: 1, 1, 128>}, {pipeline_mode = #tpu.pipeline_mode<synchronous>, transform_indices = @transform_3, window_bounds = array<i64: 8, 1>}, {transform_indices = @transform_4, window_bounds = array<i64: 8, 8, 128>}]} {
    %c0_i32 = arith.constant 0 : i32
    %0 = arith.cmpi eq, %arg1, %c0_i32 : i32
    %1 = arith.extui %0 : i1 to i32
    %c0_i32_0 = arith.constant 0 : i32
    %2 = arith.cmpi ne, %1, %c0_i32_0 : i32
    scf.if %2 {
      %cst = arith.constant 0.000000e+00 : f32
      %14 = vector.broadcast %cst : f32 to vector<8x128xf32>
      %c0_11 = arith.constant 0 : index
      %c0_12 = arith.constant 0 : index
      %15 = vector.load %arg7[%c0_11, %c0_12] : memref<8x128xf32, #tpu.memory_space<vmem>>, vector<8x128xf32>
      tpu.vector_store %arg7[%c0_11, %c0_12], %14 {strides = array<i32>} : memref<8x128xf32, #tpu.memory_space<vmem>>, vector<8x128xf32>,
    } else {
    }
    %c0 = arith.constant 0 : index
    %c0_1 = arith.constant 0 : index
    %3 = vector.load %arg5[%c0, %c0_1] : memref<8x1xi32, #tpu.memory_space<vmem>>, vector<8x1xi32>
    %c0_2 = arith.constant 0 : index
    %c0_3 = arith.constant 0 : index
    %c0_4 = arith.constant 0 : index
    %4 = vector.load %arg3[%c0_2, %c0_3, %c0_4] : memref<1x128x384xbf16, #tpu.memory_space<vmem>>, vector<1x128x384xbf16>
    %5 = vector.shape_cast %4 : vector<1x128x384xbf16> to vector<128x384xbf16>
    %c0_5 = arith.constant 0 : index
    %c0_6 = arith.constant 0 : index
    %c0_7 = arith.constant 0 : index
    %6 = vector.load %arg4[%c0_5, %c0_6, %c0_7] : memref<1x1x128xf32, #tpu.memory_space<vmem>>, vector<1x1x128xf32>
    %7 = vector.shape_cast %6 : vector<1x1x128xf32> to vector<1x128xf32>
    %c0_i32_8 = arith.constant 0 : i32
    %8 = arith.cmpi eq, %arg0, %c0_i32_8 : i32
    %9 = arith.extui %8 : i1 to i32
    %c0_i32_9 = arith.constant 0 : i32
    %10 = arith.cmpi ne, %9, %c0_i32_9 : i32
    scf.if %10 {
      %c8_i32 = arith.constant 8 : i32
      %14 = arith.muli %arg1, %c8_i32 : i32
      %c0_11 = arith.constant 0 : index
      %c0_12 = arith.constant 0 : index
      %15 = vector.load %arg7[%c0_11, %c0_12] : memref<8x128xf32, #tpu.memory_space<vmem>>, vector<8x128xf32>
      %c0_i32_13 = arith.constant 0 : i32
      %16 = arith.addi %14, %c0_i32_13 : i32
      %c0_14 = arith.constant 0 : index
      %c0_15 = arith.constant 0 : index
      %c0_16 = arith.constant 0 : index
      %c0_17 = arith.constant 0 : index
      %17 = vector.load %arg2[%c0_14, %c0_15, %c0_16, %c0_17] : memref<1x8x8x384xf32, #tpu.memory_space<vmem>>, vector<1x1x8x384xf32>
      %18 = vector.shape_cast %17 : vector<1x1x8x384xf32> to vector<8x384xf32>
      %19 = arith.truncf %15 : vector<8x128xf32> to vector<8x128xbf16>
      %cst = arith.constant dense<0.000000e+00> : vector<8x384xf32>
      %20 = tpu.matmul %19, %5, %cst {dimension_numbers = #tpu.dot_dimension_numbers<[1], [0], [0], [1], [0, 0, 1, 1], [], []>} : vector<8x128xbf16>, vector<128x384xbf16>, vector<8x384xf32> -> vector<8x384xf32>
      %21 = vector.extract_strided_slice %18 {offsets = [0, 0], sizes = [8, 128], strides = [1, 1]} : vector<8x384xf32> to vector<8x128xf32>
      %22 = vector.extract_strided_slice %20 {offsets = [0, 0], sizes = [8, 128], strides = [1, 1]} : vector<8x384xf32> to vector<8x128xf32>
      %23 = arith.addf %21, %22 : vector<8x128xf32>
      %24 = arith.negf %23 : vector<8x128xf32>
      %25 = math.exp %24 : vector<8x128xf32>
      %cst_18 = arith.constant 1.000000e+00 : f32
      %26 = vector.broadcast %cst_18 : f32 to vector<8x128xf32>
      %27 = arith.addf %26, %25 : vector<8x128xf32>
      %28 = arith.divf %26, %27 : vector<8x128xf32>
      %29 = vector.extract_strided_slice %18 {offsets = [0, 128], sizes = [8, 128], strides = [1, 1]} : vector<8x384xf32> to vector<8x128xf32>
      %30 = vector.extract_strided_slice %20 {offsets = [0, 128], sizes = [8, 128], strides = [1, 1]} : vector<8x384xf32> to vector<8x128xf32>
      %31 = arith.addf %29, %30 : vector<8x128xf32>
      %32 = arith.negf %31 : vector<8x128xf32>
      %33 = math.exp %32 : vector<8x128xf32>
      %cst_19 = arith.constant 1.000000e+00 : f32
      %34 = vector.broadcast %cst_19 : f32 to vector<8x128xf32>
      %35 = arith.addf %34, %33 : vector<8x128xf32>
      %36 = arith.divf %34, %35 : vector<8x128xf32>
      %37 = vector.extract_strided_slice %18 {offsets = [0, 256], sizes = [8, 128], strides = [1, 1]} : vector<8x384xf32> to vector<8x128xf32>
      %38 = vector.extract_strided_slice %20 {offsets = [0, 256], sizes = [8, 128], strides = [1, 1]} : vector<8x384xf32> to vector<8x128xf32>
      %39 = vector.broadcast %7 : vector<1x128xf32> to vector<8x128xf32>
      %40 = arith.addf %38, %39 : vector<8x128xf32>
      %41 = arith.mulf %28, %40 : vector<8x128xf32>
      %42 = arith.addf %37, %41 : vector<8x128xf32>
      %43 = math.tanh %42 : vector<8x128xf32>
      %cst_20 = arith.constant 1.000000e+00 : f32
      %44 = vector.broadcast %cst_20 : f32 to vector<8x128xf32>
      %45 = arith.subf %44, %36 : vector<8x128xf32>
      %46 = arith.mulf %45, %43 : vector<8x128xf32>
      %47 = arith.mulf %36, %15 : vector<8x128xf32>
      %48 = arith.addf %46, %47 : vector<8x128xf32>
      %49 = vector.broadcast %16 : i32 to vector<8x1xi32>
      %50 = arith.cmpi slt, %49, %3 : vector<8x1xi32>
      %51 = vector.shape_cast %50 : vector<8x1xi1> to vector<8x1xi1>
      %52 = vector.broadcast %51 : vector<8x1xi1> to vector<8x128xi1>
      %53 = arith.select %52, %48, %15 : vector<8x128xi1>, vector<8x128xf32>
      %cst_21 = arith.constant 0.000000e+00 : f32
      %54 = vector.broadcast %cst_21 : f32 to vector<8x128xf32>
      %55 = vector.shape_cast %50 : vector<8x1xi1> to vector<8x1xi1>
      %56 = vector.broadcast %55 : vector<8x1xi1> to vector<8x128xi1>
      %57 = arith.select %56, %53, %54 : vector<8x128xi1>, vector<8x128xf32>
      %c0_22 = arith.constant 0 : index
      %c0_23 = arith.constant 0 : index
      %c0_24 = arith.constant 0 : index
      %58 = vector.load %arg6[%c0_22, %c0_23, %c0_24] : memref<8x8x128xf32, #tpu.memory_space<vmem>>, vector<1x8x128xf32>
      %59 = vector.shape_cast %58 : vector<1x8x128xf32> to vector<8x128xf32>
      %60 = vector.shape_cast %57 : vector<8x128xf32> to vector<1x8x128xf32>
      tpu.vector_store %arg6[%c0_22, %c0_23, %c0_24], %60 {strides = array<i32>} : memref<8x8x128xf32, #tpu.memory_space<vmem>>, vector<1x8x128xf32>,
      %c1_i32_25 = arith.constant 1 : i32
      %61 = arith.addi %14, %c1_i32_25 : i32
      %c0_26 = arith.constant 0 : index
      %c1 = arith.constant 1 : index
      %c0_27 = arith.constant 0 : index
      %c0_28 = arith.constant 0 : index
      %62 = vector.load %arg2[%c0_26, %c1, %c0_27, %c0_28] : memref<1x8x8x384xf32, #tpu.memory_space<vmem>>, vector<1x1x8x384xf32>
      %63 = vector.shape_cast %62 : vector<1x1x8x384xf32> to vector<8x384xf32>
      %64 = arith.truncf %53 : vector<8x128xf32> to vector<8x128xbf16>
      %cst_29 = arith.constant dense<0.000000e+00> : vector<8x384xf32>
      %65 = tpu.matmul %64, %5, %cst_29 {dimension_numbers = #tpu.dot_dimension_numbers<[1], [0], [0], [1], [0, 0, 1, 1], [], []>} : vector<8x128xbf16>, vector<128x384xbf16>, vector<8x384xf32> -> vector<8x384xf32>
      %66 = vector.extract_strided_slice %63 {offsets = [0, 0], sizes = [8, 128], strides = [1, 1]} : vector<8x384xf32> to vector<8x128xf32>
      %67 = vector.extract_strided_slice %65 {offsets = [0, 0], sizes = [8, 128], strides = [1, 1]} : vector<8x384xf32> to vector<8x128xf32>
      %68 = arith.addf %66, %67 : vector<8x128xf32>
      %69 = arith.negf %68 : vector<8x128xf32>
      %70 = math.exp %69 : vector<8x128xf32>
      %cst_30 = arith.constant 1.000000e+00 : f32
      %71 = vector.broadcast %cst_30 : f32 to vector<8x128xf32>
      %72 = arith.addf %71, %70 : vector<8x128xf32>
      %73 = arith.divf %71, %72 : vector<8x128xf32>
      %74 = vector.extract_strided_slice %63 {offsets = [0, 128], sizes = [8, 128], strides = [1, 1]} : vector<8x384xf32> to vector<8x128xf32>
      %75 = vector.extract_strided_slice %65 {offsets = [0, 128], sizes = [8, 128], strides = [1, 1]} : vector<8x384xf32> to vector<8x128xf32>
      %76 = arith.addf %74, %75 : vector<8x128xf32>
      %77 = arith.negf %76 : vector<8x128xf32>
      %78 = math.exp %77 : vector<8x128xf32>
      %cst_31 = arith.constant 1.000000e+00 : f32
      %79 = vector.broadcast %cst_31 : f32 to vector<8x128xf32>
      %80 = arith.addf %79, %78 : vector<8x128xf32>
      %81 = arith.divf %79, %80 : vector<8x128xf32>
      %82 = vector.extract_strided_slice %63 {offsets = [0, 256], sizes = [8, 128], strides = [1, 1]} : vector<8x384xf32> to vector<8x128xf32>
      %83 = vector.extract_strided_slice %65 {offsets = [0, 256], sizes = [8, 128], strides = [1, 1]} : vector<8x384xf32> to vector<8x128xf32>
      %84 = vector.broadcast %7 : vector<1x128xf32> to vector<8x128xf32>
      %85 = arith.addf %83, %84 : vector<8x128xf32>
      %86 = arith.mulf %73, %85 : vector<8x128xf32>
      %87 = arith.addf %82, %86 : vector<8x128xf32>
      %88 = math.tanh %87 : vector<8x128xf32>
      %cst_32 = arith.constant 1.000000e+00 : f32
      %89 = vector.broadcast %cst_32 : f32 to vector<8x128xf32>
      %90 = arith.subf %89, %81 : vector<8x128xf32>
      %91 = arith.mulf %90, %88 : vector<8x128xf32>
      %92 = arith.mulf %81, %53 : vector<8x128xf32>
      %93 = arith.addf %91, %92 : vector<8x128xf32>
      %94 = vector.broadcast %61 : i32 to vector<8x1xi32>
      %95 = arith.cmpi slt, %94, %3 : vector<8x1xi32>
      %96 = vector.shape_cast %95 : vector<8x1xi1> to vector<8x1xi1>
      %97 = vector.broadcast %96 : vector<8x1xi1> to vector<8x128xi1>
      %98 = arith.select %97, %93, %53 : vector<8x128xi1>, vector<8x128xf32>
      %cst_33 = arith.constant 0.000000e+00 : f32
      %99 = vector.broadcast %cst_33 : f32 to vector<8x128xf32>
      %100 = vector.shape_cast %95 : vector<8x1xi1> to vector<8x1xi1>
      %101 = vector.broadcast %100 : vector<8x1xi1> to vector<8x128xi1>
      %102 = arith.select %101, %98, %99 : vector<8x128xi1>, vector<8x128xf32>
      %c1_34 = arith.constant 1 : index
      %c0_35 = arith.constant 0 : index
      %c0_36 = arith.constant 0 : index
      %103 = vector.load %arg6[%c1_34, %c0_35, %c0_36] : memref<8x8x128xf32, #tpu.memory_space<vmem>>, vector<1x8x128xf32>
      %104 = vector.shape_cast %103 : vector<1x8x128xf32> to vector<8x128xf32>
      %105 = vector.shape_cast %102 : vector<8x128xf32> to vector<1x8x128xf32>
      tpu.vector_store %arg6[%c1_34, %c0_35, %c0_36], %105 {strides = array<i32>} : memref<8x8x128xf32, #tpu.memory_space<vmem>>, vector<1x8x128xf32>,
      %c2_i32 = arith.constant 2 : i32
      %106 = arith.addi %14, %c2_i32 : i32
      %c0_37 = arith.constant 0 : index
      %c2 = arith.constant 2 : index
      %c0_38 = arith.constant 0 : index
      %c0_39 = arith.constant 0 : index
      %107 = vector.load %arg2[%c0_37, %c2, %c0_38, %c0_39] : memref<1x8x8x384xf32, #tpu.memory_space<vmem>>, vector<1x1x8x384xf32>
      %108 = vector.shape_cast %107 : vector<1x1x8x384xf32> to vector<8x384xf32>
      %109 = arith.truncf %98 : vector<8x128xf32> to vector<8x128xbf16>
      %cst_40 = arith.constant dense<0.000000e+00> : vector<8x384xf32>
      %110 = tpu.matmul %109, %5, %cst_40 {dimension_numbers = #tpu.dot_dimension_numbers<[1], [0], [0], [1], [0, 0, 1, 1], [], []>} : vector<8x128xbf16>, vector<128x384xbf16>, vector<8x384xf32> -> vector<8x384xf32>
      %111 = vector.extract_strided_slice %108 {offsets = [0, 0], sizes = [8, 128], strides = [1, 1]} : vector<8x384xf32> to vector<8x128xf32>
      %112 = vector.extract_strided_slice %110 {offsets = [0, 0], sizes = [8, 128], strides = [1, 1]} : vector<8x384xf32> to vector<8x128xf32>
      %113 = arith.addf %111, %112 : vector<8x128xf32>
      %114 = arith.negf %113 : vector<8x128xf32>
      %115 = math.exp %114 : vector<8x128xf32>
      %cst_41 = arith.constant 1.000000e+00 : f32
      %116 = vector.broadcast %cst_41 : f32 to vector<8x128xf32>
      %117 = arith.addf %116, %115 : vector<8x128xf32>
      %118 = arith.divf %116, %117 : vector<8x128xf32>
      %119 = vector.extract_strided_slice %108 {offsets = [0, 128], sizes = [8, 128], strides = [1, 1]} : vector<8x384xf32> to vector<8x128xf32>
      %120 = vector.extract_strided_slice %110 {offsets = [0, 128], sizes = [8, 128], strides = [1, 1]} : vector<8x384xf32> to vector<8x128xf32>
      %121 = arith.addf %119, %120 : vector<8x128xf32>
      %122 = arith.negf %121 : vector<8x128xf32>
      %123 = math.exp %122 : vector<8x128xf32>
      %cst_42 = arith.constant 1.000000e+00 : f32
      %124 = vector.broadcast %cst_42 : f32 to vector<8x128xf32>
      %125 = arith.addf %124, %123 : vector<8x128xf32>
      %126 = arith.divf %124, %125 : vector<8x128xf32>
      %127 = vector.extract_strided_slice %108 {offsets = [0, 256], sizes = [8, 128], strides = [1, 1]} : vector<8x384xf32> to vector<8x128xf32>
      %128 = vector.extract_strided_slice %110 {offsets = [0, 256], sizes = [8, 128], strides = [1, 1]} : vector<8x384xf32> to vector<8x128xf32>
      %129 = vector.broadcast %7 : vector<1x128xf32> to vector<8x128xf32>
      %130 = arith.addf %128, %129 : vector<8x128xf32>
      %131 = arith.mulf %118, %130 : vector<8x128xf32>
      %132 = arith.addf %127, %131 : vector<8x128xf32>
      %133 = math.tanh %132 : vector<8x128xf32>
      %cst_43 = arith.constant 1.000000e+00 : f32
      %134 = vector.broadcast %cst_43 : f32 to vector<8x128xf32>
      %135 = arith.subf %134, %126 : vector<8x128xf32>
      %136 = arith.mulf %135, %133 : vector<8x128xf32>
      %137 = arith.mulf %126, %98 : vector<8x128xf32>
      %138 = arith.addf %136, %137 : vector<8x128xf32>
      %139 = vector.broadcast %106 : i32 to vector<8x1xi32>
      %140 = arith.cmpi slt, %139, %3 : vector<8x1xi32>
      %141 = vector.shape_cast %140 : vector<8x1xi1> to vector<8x1xi1>
      %142 = vector.broadcast %141 : vector<8x1xi1> to vector<8x128xi1>
      %143 = arith.select %142, %138, %98 : vector<8x128xi1>, vector<8x128xf32>
      %cst_44 = arith.constant 0.000000e+00 : f32
      %144 = vector.broadcast %cst_44 : f32 to vector<8x128xf32>
      %145 = vector.shape_cast %140 : vector<8x1xi1> to vector<8x1xi1>
      %146 = vector.broadcast %145 : vector<8x1xi1> to vector<8x128xi1>
      %147 = arith.select %146, %143, %144 : vector<8x128xi1>, vector<8x128xf32>
      %c2_45 = arith.constant 2 : index
      %c0_46 = arith.constant 0 : index
      %c0_47 = arith.constant 0 : index
      %148 = vector.load %arg6[%c2_45, %c0_46, %c0_47] : memref<8x8x128xf32, #tpu.memory_space<vmem>>, vector<1x8x128xf32>
      %149 = vector.shape_cast %148 : vector<1x8x128xf32> to vector<8x128xf32>
      %150 = vector.shape_cast %147 : vector<8x128xf32> to vector<1x8x128xf32>
      tpu.vector_store %arg6[%c2_45, %c0_46, %c0_47], %150 {strides = array<i32>} : memref<8x8x128xf32, #tpu.memory_space<vmem>>, vector<1x8x128xf32>,
      %c3_i32 = arith.constant 3 : i32
      %151 = arith.addi %14, %c3_i32 : i32
      %c0_48 = arith.constant 0 : index
      %c3 = arith.constant 3 : index
      %c0_49 = arith.constant 0 : index
      %c0_50 = arith.constant 0 : index
      %152 = vector.load %arg2[%c0_48, %c3, %c0_49, %c0_50] : memref<1x8x8x384xf32, #tpu.memory_space<vmem>>, vector<1x1x8x384xf32>
      %153 = vector.shape_cast %152 : vector<1x1x8x384xf32> to vector<8x384xf32>
      %154 = arith.truncf %143 : vector<8x128xf32> to vector<8x128xbf16>
      %cst_51 = arith.constant dense<0.000000e+00> : vector<8x384xf32>
      %155 = tpu.matmul %154, %5, %cst_51 {dimension_numbers = #tpu.dot_dimension_numbers<[1], [0], [0], [1], [0, 0, 1, 1], [], []>} : vector<8x128xbf16>, vector<128x384xbf16>, vector<8x384xf32> -> vector<8x384xf32>
      %156 = vector.extract_strided_slice %153 {offsets = [0, 0], sizes = [8, 128], strides = [1, 1]} : vector<8x384xf32> to vector<8x128xf32>
      %157 = vector.extract_strided_slice %155 {offsets = [0, 0], sizes = [8, 128], strides = [1, 1]} : vector<8x384xf32> to vector<8x128xf32>
      %158 = arith.addf %156, %157 : vector<8x128xf32>
      %159 = arith.negf %158 : vector<8x128xf32>
      %160 = math.exp %159 : vector<8x128xf32>
      %cst_52 = arith.constant 1.000000e+00 : f32
      %161 = vector.broadcast %cst_52 : f32 to vector<8x128xf32>
      %162 = arith.addf %161, %160 : vector<8x128xf32>
      %163 = arith.divf %161, %162 : vector<8x128xf32>
      %164 = vector.extract_strided_slice %153 {offsets = [0, 128], sizes = [8, 128], strides = [1, 1]} : vector<8x384xf32> to vector<8x128xf32>
      %165 = vector.extract_strided_slice %155 {offsets = [0, 128], sizes = [8, 128], strides = [1, 1]} : vector<8x384xf32> to vector<8x128xf32>
      %166 = arith.addf %164, %165 : vector<8x128xf32>
      %167 = arith.negf %166 : vector<8x128xf32>
      %168 = math.exp %167 : vector<8x128xf32>
      %cst_53 = arith.constant 1.000000e+00 : f32
      %169 = vector.broadcast %cst_53 : f32 to vector<8x128xf32>
      %170 = arith.addf %169, %168 : vector<8x128xf32>
      %171 = arith.divf %169, %170 : vector<8x128xf32>
      %172 = vector.extract_strided_slice %153 {offsets = [0, 256], sizes = [8, 128], strides = [1, 1]} : vector<8x384xf32> to vector<8x128xf32>
      %173 = vector.extract_strided_slice %155 {offsets = [0, 256], sizes = [8, 128], strides = [1, 1]} : vector<8x384xf32> to vector<8x128xf32>
      %174 = vector.broadcast %7 : vector<1x128xf32> to vector<8x128xf32>
      %175 = arith.addf %173, %174 : vector<8x128xf32>
      %176 = arith.mulf %163, %175 : vector<8x128xf32>
      %177 = arith.addf %172, %176 : vector<8x128xf32>
      %178 = math.tanh %177 : vector<8x128xf32>
      %cst_54 = arith.constant 1.000000e+00 : f32
      %179 = vector.broadcast %cst_54 : f32 to vector<8x128xf32>
      %180 = arith.subf %179, %171 : vector<8x128xf32>
      %181 = arith.mulf %180, %178 : vector<8x128xf32>
      %182 = arith.mulf %171, %143 : vector<8x128xf32>
      %183 = arith.addf %181, %182 : vector<8x128xf32>
      %184 = vector.broadcast %151 : i32 to vector<8x1xi32>
      %185 = arith.cmpi slt, %184, %3 : vector<8x1xi32>
      %186 = vector.shape_cast %185 : vector<8x1xi1> to vector<8x1xi1>
      %187 = vector.broadcast %186 : vector<8x1xi1> to vector<8x128xi1>
      %188 = arith.select %187, %183, %143 : vector<8x128xi1>, vector<8x128xf32>
      %cst_55 = arith.constant 0.000000e+00 : f32
      %189 = vector.broadcast %cst_55 : f32 to vector<8x128xf32>
      %190 = vector.shape_cast %185 : vector<8x1xi1> to vector<8x1xi1>
      %191 = vector.broadcast %190 : vector<8x1xi1> to vector<8x128xi1>
      %192 = arith.select %191, %188, %189 : vector<8x128xi1>, vector<8x128xf32>
      %c3_56 = arith.constant 3 : index
      %c0_57 = arith.constant 0 : index
      %c0_58 = arith.constant 0 : index
      %193 = vector.load %arg6[%c3_56, %c0_57, %c0_58] : memref<8x8x128xf32, #tpu.memory_space<vmem>>, vector<1x8x128xf32>
      %194 = vector.shape_cast %193 : vector<1x8x128xf32> to vector<8x128xf32>
      %195 = vector.shape_cast %192 : vector<8x128xf32> to vector<1x8x128xf32>
      tpu.vector_store %arg6[%c3_56, %c0_57, %c0_58], %195 {strides = array<i32>} : memref<8x8x128xf32, #tpu.memory_space<vmem>>, vector<1x8x128xf32>,
      %c4_i32 = arith.constant 4 : i32
      %196 = arith.addi %14, %c4_i32 : i32
      %c0_59 = arith.constant 0 : index
      %c4 = arith.constant 4 : index
      %c0_60 = arith.constant 0 : index
      %c0_61 = arith.constant 0 : index
      %197 = vector.load %arg2[%c0_59, %c4, %c0_60, %c0_61] : memref<1x8x8x384xf32, #tpu.memory_space<vmem>>, vector<1x1x8x384xf32>
      %198 = vector.shape_cast %197 : vector<1x1x8x384xf32> to vector<8x384xf32>
      %199 = arith.truncf %188 : vector<8x128xf32> to vector<8x128xbf16>
      %cst_62 = arith.constant dense<0.000000e+00> : vector<8x384xf32>
      %200 = tpu.matmul %199, %5, %cst_62 {dimension_numbers = #tpu.dot_dimension_numbers<[1], [0], [0], [1], [0, 0, 1, 1], [], []>} : vector<8x128xbf16>, vector<128x384xbf16>, vector<8x384xf32> -> vector<8x384xf32>
      %201 = vector.extract_strided_slice %198 {offsets = [0, 0], sizes = [8, 128], strides = [1, 1]} : vector<8x384xf32> to vector<8x128xf32>
      %202 = vector.extract_strided_slice %200 {offsets = [0, 0], sizes = [8, 128], strides = [1, 1]} : vector<8x384xf32> to vector<8x128xf32>
      %203 = arith.addf %201, %202 : vector<8x128xf32>
      %204 = arith.negf %203 : vector<8x128xf32>
      %205 = math.exp %204 : vector<8x128xf32>
      %cst_63 = arith.constant 1.000000e+00 : f32
      %206 = vector.broadcast %cst_63 : f32 to vector<8x128xf32>
      %207 = arith.addf %206, %205 : vector<8x128xf32>
      %208 = arith.divf %206, %207 : vector<8x128xf32>
      %209 = vector.extract_strided_slice %198 {offsets = [0, 128], sizes = [8, 128], strides = [1, 1]} : vector<8x384xf32> to vector<8x128xf32>
      %210 = vector.extract_strided_slice %200 {offsets = [0, 128], sizes = [8, 128], strides = [1, 1]} : vector<8x384xf32> to vector<8x128xf32>
      %211 = arith.addf %209, %210 : vector<8x128xf32>
      %212 = arith.negf %211 : vector<8x128xf32>
      %213 = math.exp %212 : vector<8x128xf32>
      %cst_64 = arith.constant 1.000000e+00 : f32
      %214 = vector.broadcast %cst_64 : f32 to vector<8x128xf32>
      %215 = arith.addf %214, %213 : vector<8x128xf32>
      %216 = arith.divf %214, %215 : vector<8x128xf32>
      %217 = vector.extract_strided_slice %198 {offsets = [0, 256], sizes = [8, 128], strides = [1, 1]} : vector<8x384xf32> to vector<8x128xf32>
      %218 = vector.extract_strided_slice %200 {offsets = [0, 256], sizes = [8, 128], strides = [1, 1]} : vector<8x384xf32> to vector<8x128xf32>
      %219 = vector.broadcast %7 : vector<1x128xf32> to vector<8x128xf32>
      %220 = arith.addf %218, %219 : vector<8x128xf32>
      %221 = arith.mulf %208, %220 : vector<8x128xf32>
      %222 = arith.addf %217, %221 : vector<8x128xf32>
      %223 = math.tanh %222 : vector<8x128xf32>
      %cst_65 = arith.constant 1.000000e+00 : f32
      %224 = vector.broadcast %cst_65 : f32 to vector<8x128xf32>
      %225 = arith.subf %224, %216 : vector<8x128xf32>
      %226 = arith.mulf %225, %223 : vector<8x128xf32>
      %227 = arith.mulf %216, %188 : vector<8x128xf32>
      %228 = arith.addf %226, %227 : vector<8x128xf32>
      %229 = vector.broadcast %196 : i32 to vector<8x1xi32>
      %230 = arith.cmpi slt, %229, %3 : vector<8x1xi32>
      %231 = vector.shape_cast %230 : vector<8x1xi1> to vector<8x1xi1>
      %232 = vector.broadcast %231 : vector<8x1xi1> to vector<8x128xi1>
      %233 = arith.select %232, %228, %188 : vector<8x128xi1>, vector<8x128xf32>
      %cst_66 = arith.constant 0.000000e+00 : f32
      %234 = vector.broadcast %cst_66 : f32 to vector<8x128xf32>
      %235 = vector.shape_cast %230 : vector<8x1xi1> to vector<8x1xi1>
      %236 = vector.broadcast %235 : vector<8x1xi1> to vector<8x128xi1>
      %237 = arith.select %236, %233, %234 : vector<8x128xi1>, vector<8x128xf32>
      %c4_67 = arith.constant 4 : index
      %c0_68 = arith.constant 0 : index
      %c0_69 = arith.constant 0 : index
      %238 = vector.load %arg6[%c4_67, %c0_68, %c0_69] : memref<8x8x128xf32, #tpu.memory_space<vmem>>, vector<1x8x128xf32>
      %239 = vector.shape_cast %238 : vector<1x8x128xf32> to vector<8x128xf32>
      %240 = vector.shape_cast %237 : vector<8x128xf32> to vector<1x8x128xf32>
      tpu.vector_store %arg6[%c4_67, %c0_68, %c0_69], %240 {strides = array<i32>} : memref<8x8x128xf32, #tpu.memory_space<vmem>>, vector<1x8x128xf32>,
      %c5_i32 = arith.constant 5 : i32
      %241 = arith.addi %14, %c5_i32 : i32
      %c0_70 = arith.constant 0 : index
      %c5 = arith.constant 5 : index
      %c0_71 = arith.constant 0 : index
      %c0_72 = arith.constant 0 : index
      %242 = vector.load %arg2[%c0_70, %c5, %c0_71, %c0_72] : memref<1x8x8x384xf32, #tpu.memory_space<vmem>>, vector<1x1x8x384xf32>
      %243 = vector.shape_cast %242 : vector<1x1x8x384xf32> to vector<8x384xf32>
      %244 = arith.truncf %233 : vector<8x128xf32> to vector<8x128xbf16>
      %cst_73 = arith.constant dense<0.000000e+00> : vector<8x384xf32>
      %245 = tpu.matmul %244, %5, %cst_73 {dimension_numbers = #tpu.dot_dimension_numbers<[1], [0], [0], [1], [0, 0, 1, 1], [], []>} : vector<8x128xbf16>, vector<128x384xbf16>, vector<8x384xf32> -> vector<8x384xf32>
      %246 = vector.extract_strided_slice %243 {offsets = [0, 0], sizes = [8, 128], strides = [1, 1]} : vector<8x384xf32> to vector<8x128xf32>
      %247 = vector.extract_strided_slice %245 {offsets = [0, 0], sizes = [8, 128], strides = [1, 1]} : vector<8x384xf32> to vector<8x128xf32>
      %248 = arith.addf %246, %247 : vector<8x128xf32>
      %249 = arith.negf %248 : vector<8x128xf32>
      %250 = math.exp %249 : vector<8x128xf32>
      %cst_74 = arith.constant 1.000000e+00 : f32
      %251 = vector.broadcast %cst_74 : f32 to vector<8x128xf32>
      %252 = arith.addf %251, %250 : vector<8x128xf32>
      %253 = arith.divf %251, %252 : vector<8x128xf32>
      %254 = vector.extract_strided_slice %243 {offsets = [0, 128], sizes = [8, 128], strides = [1, 1]} : vector<8x384xf32> to vector<8x128xf32>
      %255 = vector.extract_strided_slice %245 {offsets = [0, 128], sizes = [8, 128], strides = [1, 1]} : vector<8x384xf32> to vector<8x128xf32>
      %256 = arith.addf %254, %255 : vector<8x128xf32>
      %257 = arith.negf %256 : vector<8x128xf32>
      %258 = math.exp %257 : vector<8x128xf32>
      %cst_75 = arith.constant 1.000000e+00 : f32
      %259 = vector.broadcast %cst_75 : f32 to vector<8x128xf32>
      %260 = arith.addf %259, %258 : vector<8x128xf32>
      %261 = arith.divf %259, %260 : vector<8x128xf32>
      %262 = vector.extract_strided_slice %243 {offsets = [0, 256], sizes = [8, 128], strides = [1, 1]} : vector<8x384xf32> to vector<8x128xf32>
      %263 = vector.extract_strided_slice %245 {offsets = [0, 256], sizes = [8, 128], strides = [1, 1]} : vector<8x384xf32> to vector<8x128xf32>
      %264 = vector.broadcast %7 : vector<1x128xf32> to vector<8x128xf32>
      %265 = arith.addf %263, %264 : vector<8x128xf32>
      %266 = arith.mulf %253, %265 : vector<8x128xf32>
      %267 = arith.addf %262, %266 : vector<8x128xf32>
      %268 = math.tanh %267 : vector<8x128xf32>
      %cst_76 = arith.constant 1.000000e+00 : f32
      %269 = vector.broadcast %cst_76 : f32 to vector<8x128xf32>
      %270 = arith.subf %269, %261 : vector<8x128xf32>
      %271 = arith.mulf %270, %268 : vector<8x128xf32>
      %272 = arith.mulf %261, %233 : vector<8x128xf32>
      %273 = arith.addf %271, %272 : vector<8x128xf32>
      %274 = vector.broadcast %241 : i32 to vector<8x1xi32>
      %275 = arith.cmpi slt, %274, %3 : vector<8x1xi32>
      %276 = vector.shape_cast %275 : vector<8x1xi1> to vector<8x1xi1>
      %277 = vector.broadcast %276 : vector<8x1xi1> to vector<8x128xi1>
      %278 = arith.select %277, %273, %233 : vector<8x128xi1>, vector<8x128xf32>
      %cst_77 = arith.constant 0.000000e+00 : f32
      %279 = vector.broadcast %cst_77 : f32 to vector<8x128xf32>
      %280 = vector.shape_cast %275 : vector<8x1xi1> to vector<8x1xi1>
      %281 = vector.broadcast %280 : vector<8x1xi1> to vector<8x128xi1>
      %282 = arith.select %281, %278, %279 : vector<8x128xi1>, vector<8x128xf32>
      %c5_78 = arith.constant 5 : index
      %c0_79 = arith.constant 0 : index
      %c0_80 = arith.constant 0 : index
      %283 = vector.load %arg6[%c5_78, %c0_79, %c0_80] : memref<8x8x128xf32, #tpu.memory_space<vmem>>, vector<1x8x128xf32>
      %284 = vector.shape_cast %283 : vector<1x8x128xf32> to vector<8x128xf32>
      %285 = vector.shape_cast %282 : vector<8x128xf32> to vector<1x8x128xf32>
      tpu.vector_store %arg6[%c5_78, %c0_79, %c0_80], %285 {strides = array<i32>} : memref<8x8x128xf32, #tpu.memory_space<vmem>>, vector<1x8x128xf32>,
      %c6_i32 = arith.constant 6 : i32
      %286 = arith.addi %14, %c6_i32 : i32
      %c0_81 = arith.constant 0 : index
      %c6 = arith.constant 6 : index
      %c0_82 = arith.constant 0 : index
      %c0_83 = arith.constant 0 : index
      %287 = vector.load %arg2[%c0_81, %c6, %c0_82, %c0_83] : memref<1x8x8x384xf32, #tpu.memory_space<vmem>>, vector<1x1x8x384xf32>
      %288 = vector.shape_cast %287 : vector<1x1x8x384xf32> to vector<8x384xf32>
      %289 = arith.truncf %278 : vector<8x128xf32> to vector<8x128xbf16>
      %cst_84 = arith.constant dense<0.000000e+00> : vector<8x384xf32>
      %290 = tpu.matmul %289, %5, %cst_84 {dimension_numbers = #tpu.dot_dimension_numbers<[1], [0], [0], [1], [0, 0, 1, 1], [], []>} : vector<8x128xbf16>, vector<128x384xbf16>, vector<8x384xf32> -> vector<8x384xf32>
      %291 = vector.extract_strided_slice %288 {offsets = [0, 0], sizes = [8, 128], strides = [1, 1]} : vector<8x384xf32> to vector<8x128xf32>
      %292 = vector.extract_strided_slice %290 {offsets = [0, 0], sizes = [8, 128], strides = [1, 1]} : vector<8x384xf32> to vector<8x128xf32>
      %293 = arith.addf %291, %292 : vector<8x128xf32>
      %294 = arith.negf %293 : vector<8x128xf32>
      %295 = math.exp %294 : vector<8x128xf32>
      %cst_85 = arith.constant 1.000000e+00 : f32
      %296 = vector.broadcast %cst_85 : f32 to vector<8x128xf32>
      %297 = arith.addf %296, %295 : vector<8x128xf32>
      %298 = arith.divf %296, %297 : vector<8x128xf32>
      %299 = vector.extract_strided_slice %288 {offsets = [0, 128], sizes = [8, 128], strides = [1, 1]} : vector<8x384xf32> to vector<8x128xf32>
      %300 = vector.extract_strided_slice %290 {offsets = [0, 128], sizes = [8, 128], strides = [1, 1]} : vector<8x384xf32> to vector<8x128xf32>
      %301 = arith.addf %299, %300 : vector<8x128xf32>
      %302 = arith.negf %301 : vector<8x128xf32>
      %303 = math.exp %302 : vector<8x128xf32>
      %cst_86 = arith.constant 1.000000e+00 : f32
      %304 = vector.broadcast %cst_86 : f32 to vector<8x128xf32>
      %305 = arith.addf %304, %303 : vector<8x128xf32>
      %306 = arith.divf %304, %305 : vector<8x128xf32>
      %307 = vector.extract_strided_slice %288 {offsets = [0, 256], sizes = [8, 128], strides = [1, 1]} : vector<8x384xf32> to vector<8x128xf32>
      %308 = vector.extract_strided_slice %290 {offsets = [0, 256], sizes = [8, 128], strides = [1, 1]} : vector<8x384xf32> to vector<8x128xf32>
      %309 = vector.broadcast %7 : vector<1x128xf32> to vector<8x128xf32>
      %310 = arith.addf %308, %309 : vector<8x128xf32>
      %311 = arith.mulf %298, %310 : vector<8x128xf32>
      %312 = arith.addf %307, %311 : vector<8x128xf32>
      %313 = math.tanh %312 : vector<8x128xf32>
      %cst_87 = arith.constant 1.000000e+00 : f32
      %314 = vector.broadcast %cst_87 : f32 to vector<8x128xf32>
      %315 = arith.subf %314, %306 : vector<8x128xf32>
      %316 = arith.mulf %315, %313 : vector<8x128xf32>
      %317 = arith.mulf %306, %278 : vector<8x128xf32>
      %318 = arith.addf %316, %317 : vector<8x128xf32>
      %319 = vector.broadcast %286 : i32 to vector<8x1xi32>
      %320 = arith.cmpi slt, %319, %3 : vector<8x1xi32>
      %321 = vector.shape_cast %320 : vector<8x1xi1> to vector<8x1xi1>
      %322 = vector.broadcast %321 : vector<8x1xi1> to vector<8x128xi1>
      %323 = arith.select %322, %318, %278 : vector<8x128xi1>, vector<8x128xf32>
      %cst_88 = arith.constant 0.000000e+00 : f32
      %324 = vector.broadcast %cst_88 : f32 to vector<8x128xf32>
      %325 = vector.shape_cast %320 : vector<8x1xi1> to vector<8x1xi1>
      %326 = vector.broadcast %325 : vector<8x1xi1> to vector<8x128xi1>
      %327 = arith.select %326, %323, %324 : vector<8x128xi1>, vector<8x128xf32>
      %c6_89 = arith.constant 6 : index
      %c0_90 = arith.constant 0 : index
      %c0_91 = arith.constant 0 : index
      %328 = vector.load %arg6[%c6_89, %c0_90, %c0_91] : memref<8x8x128xf32, #tpu.memory_space<vmem>>, vector<1x8x128xf32>
      %329 = vector.shape_cast %328 : vector<1x8x128xf32> to vector<8x128xf32>
      %330 = vector.shape_cast %327 : vector<8x128xf32> to vector<1x8x128xf32>
      tpu.vector_store %arg6[%c6_89, %c0_90, %c0_91], %330 {strides = array<i32>} : memref<8x8x128xf32, #tpu.memory_space<vmem>>, vector<1x8x128xf32>,
      %c7_i32 = arith.constant 7 : i32
      %331 = arith.addi %14, %c7_i32 : i32
      %c0_92 = arith.constant 0 : index
      %c7 = arith.constant 7 : index
      %c0_93 = arith.constant 0 : index
      %c0_94 = arith.constant 0 : index
      %332 = vector.load %arg2[%c0_92, %c7, %c0_93, %c0_94] : memref<1x8x8x384xf32, #tpu.memory_space<vmem>>, vector<1x1x8x384xf32>
      %333 = vector.shape_cast %332 : vector<1x1x8x384xf32> to vector<8x384xf32>
      %334 = arith.truncf %323 : vector<8x128xf32> to vector<8x128xbf16>
      %cst_95 = arith.constant dense<0.000000e+00> : vector<8x384xf32>
      %335 = tpu.matmul %334, %5, %cst_95 {dimension_numbers = #tpu.dot_dimension_numbers<[1], [0], [0], [1], [0, 0, 1, 1], [], []>} : vector<8x128xbf16>, vector<128x384xbf16>, vector<8x384xf32> -> vector<8x384xf32>
      %336 = vector.extract_strided_slice %333 {offsets = [0, 0], sizes = [8, 128], strides = [1, 1]} : vector<8x384xf32> to vector<8x128xf32>
      %337 = vector.extract_strided_slice %335 {offsets = [0, 0], sizes = [8, 128], strides = [1, 1]} : vector<8x384xf32> to vector<8x128xf32>
      %338 = arith.addf %336, %337 : vector<8x128xf32>
      %339 = arith.negf %338 : vector<8x128xf32>
      %340 = math.exp %339 : vector<8x128xf32>
      %cst_96 = arith.constant 1.000000e+00 : f32
      %341 = vector.broadcast %cst_96 : f32 to vector<8x128xf32>
      %342 = arith.addf %341, %340 : vector<8x128xf32>
      %343 = arith.divf %341, %342 : vector<8x128xf32>
      %344 = vector.extract_strided_slice %333 {offsets = [0, 128], sizes = [8, 128], strides = [1, 1]} : vector<8x384xf32> to vector<8x128xf32>
      %345 = vector.extract_strided_slice %335 {offsets = [0, 128], sizes = [8, 128], strides = [1, 1]} : vector<8x384xf32> to vector<8x128xf32>
      %346 = arith.addf %344, %345 : vector<8x128xf32>
      %347 = arith.negf %346 : vector<8x128xf32>
      %348 = math.exp %347 : vector<8x128xf32>
      %cst_97 = arith.constant 1.000000e+00 : f32
      %349 = vector.broadcast %cst_97 : f32 to vector<8x128xf32>
      %350 = arith.addf %349, %348 : vector<8x128xf32>
      %351 = arith.divf %349, %350 : vector<8x128xf32>
      %352 = vector.extract_strided_slice %333 {offsets = [0, 256], sizes = [8, 128], strides = [1, 1]} : vector<8x384xf32> to vector<8x128xf32>
      %353 = vector.extract_strided_slice %335 {offsets = [0, 256], sizes = [8, 128], strides = [1, 1]} : vector<8x384xf32> to vector<8x128xf32>
      %354 = vector.broadcast %7 : vector<1x128xf32> to vector<8x128xf32>
      %355 = arith.addf %353, %354 : vector<8x128xf32>
      %356 = arith.mulf %343, %355 : vector<8x128xf32>
      %357 = arith.addf %352, %356 : vector<8x128xf32>
      %358 = math.tanh %357 : vector<8x128xf32>
      %cst_98 = arith.constant 1.000000e+00 : f32
      %359 = vector.broadcast %cst_98 : f32 to vector<8x128xf32>
      %360 = arith.subf %359, %351 : vector<8x128xf32>
      %361 = arith.mulf %360, %358 : vector<8x128xf32>
      %362 = arith.mulf %351, %323 : vector<8x128xf32>
      %363 = arith.addf %361, %362 : vector<8x128xf32>
      %364 = vector.broadcast %331 : i32 to vector<8x1xi32>
      %365 = arith.cmpi slt, %364, %3 : vector<8x1xi32>
      %366 = vector.shape_cast %365 : vector<8x1xi1> to vector<8x1xi1>
      %367 = vector.broadcast %366 : vector<8x1xi1> to vector<8x128xi1>
      %368 = arith.select %367, %363, %323 : vector<8x128xi1>, vector<8x128xf32>
      %cst_99 = arith.constant 0.000000e+00 : f32
      %369 = vector.broadcast %cst_99 : f32 to vector<8x128xf32>
      %370 = vector.shape_cast %365 : vector<8x1xi1> to vector<8x1xi1>
      %371 = vector.broadcast %370 : vector<8x1xi1> to vector<8x128xi1>
      %372 = arith.select %371, %368, %369 : vector<8x128xi1>, vector<8x128xf32>
      %c7_100 = arith.constant 7 : index
      %c0_101 = arith.constant 0 : index
      %c0_102 = arith.constant 0 : index
      %373 = vector.load %arg6[%c7_100, %c0_101, %c0_102] : memref<8x8x128xf32, #tpu.memory_space<vmem>>, vector<1x8x128xf32>
      %374 = vector.shape_cast %373 : vector<1x8x128xf32> to vector<8x128xf32>
      %375 = vector.shape_cast %372 : vector<8x128xf32> to vector<1x8x128xf32>
      tpu.vector_store %arg6[%c7_100, %c0_101, %c0_102], %375 {strides = array<i32>} : memref<8x8x128xf32, #tpu.memory_space<vmem>>, vector<1x8x128xf32>,
      %c0_103 = arith.constant 0 : index
      %c0_104 = arith.constant 0 : index
      %376 = vector.load %arg7[%c0_103, %c0_104] : memref<8x128xf32, #tpu.memory_space<vmem>>, vector<8x128xf32>
      tpu.vector_store %arg7[%c0_103, %c0_104], %368 {strides = array<i32>} : memref<8x128xf32, #tpu.memory_space<vmem>>, vector<8x128xf32>,
    } else {
    }
    %c1_i32 = arith.constant 1 : i32
    %11 = arith.cmpi eq, %arg0, %c1_i32 : i32
    %12 = arith.extui %11 : i1 to i32
    %c0_i32_10 = arith.constant 0 : i32
    %13 = arith.cmpi ne, %12, %c0_i32_10 : i32
    scf.if %13 {
      %c0_i32_11 = arith.constant 0 : i32
      %14 = arith.subi %c0_i32_11, %arg1 : i32
      %c8_i32 = arith.constant 8 : i32
      %15 = arith.muli %14, %c8_i32 : i32
      %c0_12 = arith.constant 0 : index
      %c0_13 = arith.constant 0 : index
      %16 = vector.load %arg7[%c0_12, %c0_13] : memref<8x128xf32, #tpu.memory_space<vmem>>, vector<8x128xf32>
      %c7_i32 = arith.constant 7 : i32
      %17 = arith.addi %15, %c7_i32 : i32
      %c0_14 = arith.constant 0 : index
      %c7 = arith.constant 7 : index
      %c0_15 = arith.constant 0 : index
      %c0_16 = arith.constant 0 : index
      %18 = vector.load %arg2[%c0_14, %c7, %c0_15, %c0_16] : memref<1x8x8x384xf32, #tpu.memory_space<vmem>>, vector<1x1x8x384xf32>
      %19 = vector.shape_cast %18 : vector<1x1x8x384xf32> to vector<8x384xf32>
      %20 = arith.truncf %16 : vector<8x128xf32> to vector<8x128xbf16>
      %cst = arith.constant dense<0.000000e+00> : vector<8x384xf32>
      %21 = tpu.matmul %20, %5, %cst {dimension_numbers = #tpu.dot_dimension_numbers<[1], [0], [0], [1], [0, 0, 1, 1], [], []>} : vector<8x128xbf16>, vector<128x384xbf16>, vector<8x384xf32> -> vector<8x384xf32>
      %22 = vector.extract_strided_slice %19 {offsets = [0, 0], sizes = [8, 128], strides = [1, 1]} : vector<8x384xf32> to vector<8x128xf32>
      %23 = vector.extract_strided_slice %21 {offsets = [0, 0], sizes = [8, 128], strides = [1, 1]} : vector<8x384xf32> to vector<8x128xf32>
      %24 = arith.addf %22, %23 : vector<8x128xf32>
      %25 = arith.negf %24 : vector<8x128xf32>
      %26 = math.exp %25 : vector<8x128xf32>
      %cst_17 = arith.constant 1.000000e+00 : f32
      %27 = vector.broadcast %cst_17 : f32 to vector<8x128xf32>
      %28 = arith.addf %27, %26 : vector<8x128xf32>
      %29 = arith.divf %27, %28 : vector<8x128xf32>
      %30 = vector.extract_strided_slice %19 {offsets = [0, 128], sizes = [8, 128], strides = [1, 1]} : vector<8x384xf32> to vector<8x128xf32>
      %31 = vector.extract_strided_slice %21 {offsets = [0, 128], sizes = [8, 128], strides = [1, 1]} : vector<8x384xf32> to vector<8x128xf32>
      %32 = arith.addf %30, %31 : vector<8x128xf32>
      %33 = arith.negf %32 : vector<8x128xf32>
      %34 = math.exp %33 : vector<8x128xf32>
      %cst_18 = arith.constant 1.000000e+00 : f32
      %35 = vector.broadcast %cst_18 : f32 to vector<8x128xf32>
      %36 = arith.addf %35, %34 : vector<8x128xf32>
      %37 = arith.divf %35, %36 : vector<8x128xf32>
      %38 = vector.extract_strided_slice %19 {offsets = [0, 256], sizes = [8, 128], strides = [1, 1]} : vector<8x384xf32> to vector<8x128xf32>
      %39 = vector.extract_strided_slice %21 {offsets = [0, 256], sizes = [8, 128], strides = [1, 1]} : vector<8x384xf32> to vector<8x128xf32>
      %40 = vector.broadcast %7 : vector<1x128xf32> to vector<8x128xf32>
      %41 = arith.addf %39, %40 : vector<8x128xf32>
      %42 = arith.mulf %29, %41 : vector<8x128xf32>
      %43 = arith.addf %38, %42 : vector<8x128xf32>
      %44 = math.tanh %43 : vector<8x128xf32>
      %cst_19 = arith.constant 1.000000e+00 : f32
      %45 = vector.broadcast %cst_19 : f32 to vector<8x128xf32>
      %46 = arith.subf %45, %37 : vector<8x128xf32>
      %47 = arith.mulf %46, %44 : vector<8x128xf32>
      %48 = arith.mulf %37, %16 : vector<8x128xf32>
      %49 = arith.addf %47, %48 : vector<8x128xf32>
      %50 = vector.broadcast %17 : i32 to vector<8x1xi32>
      %51 = arith.cmpi slt, %50, %3 : vector<8x1xi32>
      %52 = vector.shape_cast %51 : vector<8x1xi1> to vector<8x1xi1>
      %53 = vector.broadcast %52 : vector<8x1xi1> to vector<8x128xi1>
      %54 = arith.select %53, %49, %16 : vector<8x128xi1>, vector<8x128xf32>
      %cst_20 = arith.constant 0.000000e+00 : f32
      %55 = vector.broadcast %cst_20 : f32 to vector<8x128xf32>
      %56 = vector.shape_cast %51 : vector<8x1xi1> to vector<8x1xi1>
      %57 = vector.broadcast %56 : vector<8x1xi1> to vector<8x128xi1>
      %58 = arith.select %57, %54, %55 : vector<8x128xi1>, vector<8x128xf32>
      %c7_21 = arith.constant 7 : index
      %c0_22 = arith.constant 0 : index
      %c0_23 = arith.constant 0 : index
      %59 = vector.load %arg6[%c7_21, %c0_22, %c0_23] : memref<8x8x128xf32, #tpu.memory_space<vmem>>, vector<1x8x128xf32>
      %60 = vector.shape_cast %59 : vector<1x8x128xf32> to vector<8x128xf32>
      %61 = vector.shape_cast %58 : vector<8x128xf32> to vector<1x8x128xf32>
      tpu.vector_store %arg6[%c7_21, %c0_22, %c0_23], %61 {strides = array<i32>} : memref<8x8x128xf32, #tpu.memory_space<vmem>>, vector<1x8x128xf32>,
      %c6_i32 = arith.constant 6 : i32
      %62 = arith.addi %15, %c6_i32 : i32
      %c0_24 = arith.constant 0 : index
      %c6 = arith.constant 6 : index
      %c0_25 = arith.constant 0 : index
      %c0_26 = arith.constant 0 : index
      %63 = vector.load %arg2[%c0_24, %c6, %c0_25, %c0_26] : memref<1x8x8x384xf32, #tpu.memory_space<vmem>>, vector<1x1x8x384xf32>
      %64 = vector.shape_cast %63 : vector<1x1x8x384xf32> to vector<8x384xf32>
      %65 = arith.truncf %54 : vector<8x128xf32> to vector<8x128xbf16>
      %cst_27 = arith.constant dense<0.000000e+00> : vector<8x384xf32>
      %66 = tpu.matmul %65, %5, %cst_27 {dimension_numbers = #tpu.dot_dimension_numbers<[1], [0], [0], [1], [0, 0, 1, 1], [], []>} : vector<8x128xbf16>, vector<128x384xbf16>, vector<8x384xf32> -> vector<8x384xf32>
      %67 = vector.extract_strided_slice %64 {offsets = [0, 0], sizes = [8, 128], strides = [1, 1]} : vector<8x384xf32> to vector<8x128xf32>
      %68 = vector.extract_strided_slice %66 {offsets = [0, 0], sizes = [8, 128], strides = [1, 1]} : vector<8x384xf32> to vector<8x128xf32>
      %69 = arith.addf %67, %68 : vector<8x128xf32>
      %70 = arith.negf %69 : vector<8x128xf32>
      %71 = math.exp %70 : vector<8x128xf32>
      %cst_28 = arith.constant 1.000000e+00 : f32
      %72 = vector.broadcast %cst_28 : f32 to vector<8x128xf32>
      %73 = arith.addf %72, %71 : vector<8x128xf32>
      %74 = arith.divf %72, %73 : vector<8x128xf32>
      %75 = vector.extract_strided_slice %64 {offsets = [0, 128], sizes = [8, 128], strides = [1, 1]} : vector<8x384xf32> to vector<8x128xf32>
      %76 = vector.extract_strided_slice %66 {offsets = [0, 128], sizes = [8, 128], strides = [1, 1]} : vector<8x384xf32> to vector<8x128xf32>
      %77 = arith.addf %75, %76 : vector<8x128xf32>
      %78 = arith.negf %77 : vector<8x128xf32>
      %79 = math.exp %78 : vector<8x128xf32>
      %cst_29 = arith.constant 1.000000e+00 : f32
      %80 = vector.broadcast %cst_29 : f32 to vector<8x128xf32>
      %81 = arith.addf %80, %79 : vector<8x128xf32>
      %82 = arith.divf %80, %81 : vector<8x128xf32>
      %83 = vector.extract_strided_slice %64 {offsets = [0, 256], sizes = [8, 128], strides = [1, 1]} : vector<8x384xf32> to vector<8x128xf32>
      %84 = vector.extract_strided_slice %66 {offsets = [0, 256], sizes = [8, 128], strides = [1, 1]} : vector<8x384xf32> to vector<8x128xf32>
      %85 = vector.broadcast %7 : vector<1x128xf32> to vector<8x128xf32>
      %86 = arith.addf %84, %85 : vector<8x128xf32>
      %87 = arith.mulf %74, %86 : vector<8x128xf32>
      %88 = arith.addf %83, %87 : vector<8x128xf32>
      %89 = math.tanh %88 : vector<8x128xf32>
      %cst_30 = arith.constant 1.000000e+00 : f32
      %90 = vector.broadcast %cst_30 : f32 to vector<8x128xf32>
      %91 = arith.subf %90, %82 : vector<8x128xf32>
      %92 = arith.mulf %91, %89 : vector<8x128xf32>
      %93 = arith.mulf %82, %54 : vector<8x128xf32>
      %94 = arith.addf %92, %93 : vector<8x128xf32>
      %95 = vector.broadcast %62 : i32 to vector<8x1xi32>
      %96 = arith.cmpi slt, %95, %3 : vector<8x1xi32>
      %97 = vector.shape_cast %96 : vector<8x1xi1> to vector<8x1xi1>
      %98 = vector.broadcast %97 : vector<8x1xi1> to vector<8x128xi1>
      %99 = arith.select %98, %94, %54 : vector<8x128xi1>, vector<8x128xf32>
      %cst_31 = arith.constant 0.000000e+00 : f32
      %100 = vector.broadcast %cst_31 : f32 to vector<8x128xf32>
      %101 = vector.shape_cast %96 : vector<8x1xi1> to vector<8x1xi1>
      %102 = vector.broadcast %101 : vector<8x1xi1> to vector<8x128xi1>
      %103 = arith.select %102, %99, %100 : vector<8x128xi1>, vector<8x128xf32>
      %c6_32 = arith.constant 6 : index
      %c0_33 = arith.constant 0 : index
      %c0_34 = arith.constant 0 : index
      %104 = vector.load %arg6[%c6_32, %c0_33, %c0_34] : memref<8x8x128xf32, #tpu.memory_space<vmem>>, vector<1x8x128xf32>
      %105 = vector.shape_cast %104 : vector<1x8x128xf32> to vector<8x128xf32>
      %106 = vector.shape_cast %103 : vector<8x128xf32> to vector<1x8x128xf32>
      tpu.vector_store %arg6[%c6_32, %c0_33, %c0_34], %106 {strides = array<i32>} : memref<8x8x128xf32, #tpu.memory_space<vmem>>, vector<1x8x128xf32>,
      %c5_i32 = arith.constant 5 : i32
      %107 = arith.addi %15, %c5_i32 : i32
      %c0_35 = arith.constant 0 : index
      %c5 = arith.constant 5 : index
      %c0_36 = arith.constant 0 : index
      %c0_37 = arith.constant 0 : index
      %108 = vector.load %arg2[%c0_35, %c5, %c0_36, %c0_37] : memref<1x8x8x384xf32, #tpu.memory_space<vmem>>, vector<1x1x8x384xf32>
      %109 = vector.shape_cast %108 : vector<1x1x8x384xf32> to vector<8x384xf32>
      %110 = arith.truncf %99 : vector<8x128xf32> to vector<8x128xbf16>
      %cst_38 = arith.constant dense<0.000000e+00> : vector<8x384xf32>
      %111 = tpu.matmul %110, %5, %cst_38 {dimension_numbers = #tpu.dot_dimension_numbers<[1], [0], [0], [1], [0, 0, 1, 1], [], []>} : vector<8x128xbf16>, vector<128x384xbf16>, vector<8x384xf32> -> vector<8x384xf32>
      %112 = vector.extract_strided_slice %109 {offsets = [0, 0], sizes = [8, 128], strides = [1, 1]} : vector<8x384xf32> to vector<8x128xf32>
      %113 = vector.extract_strided_slice %111 {offsets = [0, 0], sizes = [8, 128], strides = [1, 1]} : vector<8x384xf32> to vector<8x128xf32>
      %114 = arith.addf %112, %113 : vector<8x128xf32>
      %115 = arith.negf %114 : vector<8x128xf32>
      %116 = math.exp %115 : vector<8x128xf32>
      %cst_39 = arith.constant 1.000000e+00 : f32
      %117 = vector.broadcast %cst_39 : f32 to vector<8x128xf32>
      %118 = arith.addf %117, %116 : vector<8x128xf32>
      %119 = arith.divf %117, %118 : vector<8x128xf32>
      %120 = vector.extract_strided_slice %109 {offsets = [0, 128], sizes = [8, 128], strides = [1, 1]} : vector<8x384xf32> to vector<8x128xf32>
      %121 = vector.extract_strided_slice %111 {offsets = [0, 128], sizes = [8, 128], strides = [1, 1]} : vector<8x384xf32> to vector<8x128xf32>
      %122 = arith.addf %120, %121 : vector<8x128xf32>
      %123 = arith.negf %122 : vector<8x128xf32>
      %124 = math.exp %123 : vector<8x128xf32>
      %cst_40 = arith.constant 1.000000e+00 : f32
      %125 = vector.broadcast %cst_40 : f32 to vector<8x128xf32>
      %126 = arith.addf %125, %124 : vector<8x128xf32>
      %127 = arith.divf %125, %126 : vector<8x128xf32>
      %128 = vector.extract_strided_slice %109 {offsets = [0, 256], sizes = [8, 128], strides = [1, 1]} : vector<8x384xf32> to vector<8x128xf32>
      %129 = vector.extract_strided_slice %111 {offsets = [0, 256], sizes = [8, 128], strides = [1, 1]} : vector<8x384xf32> to vector<8x128xf32>
      %130 = vector.broadcast %7 : vector<1x128xf32> to vector<8x128xf32>
      %131 = arith.addf %129, %130 : vector<8x128xf32>
      %132 = arith.mulf %119, %131 : vector<8x128xf32>
      %133 = arith.addf %128, %132 : vector<8x128xf32>
      %134 = math.tanh %133 : vector<8x128xf32>
      %cst_41 = arith.constant 1.000000e+00 : f32
      %135 = vector.broadcast %cst_41 : f32 to vector<8x128xf32>
      %136 = arith.subf %135, %127 : vector<8x128xf32>
      %137 = arith.mulf %136, %134 : vector<8x128xf32>
      %138 = arith.mulf %127, %99 : vector<8x128xf32>
      %139 = arith.addf %137, %138 : vector<8x128xf32>
      %140 = vector.broadcast %107 : i32 to vector<8x1xi32>
      %141 = arith.cmpi slt, %140, %3 : vector<8x1xi32>
      %142 = vector.shape_cast %141 : vector<8x1xi1> to vector<8x1xi1>
      %143 = vector.broadcast %142 : vector<8x1xi1> to vector<8x128xi1>
      %144 = arith.select %143, %139, %99 : vector<8x128xi1>, vector<8x128xf32>
      %cst_42 = arith.constant 0.000000e+00 : f32
      %145 = vector.broadcast %cst_42 : f32 to vector<8x128xf32>
      %146 = vector.shape_cast %141 : vector<8x1xi1> to vector<8x1xi1>
      %147 = vector.broadcast %146 : vector<8x1xi1> to vector<8x128xi1>
      %148 = arith.select %147, %144, %145 : vector<8x128xi1>, vector<8x128xf32>
      %c5_43 = arith.constant 5 : index
      %c0_44 = arith.constant 0 : index
      %c0_45 = arith.constant 0 : index
      %149 = vector.load %arg6[%c5_43, %c0_44, %c0_45] : memref<8x8x128xf32, #tpu.memory_space<vmem>>, vector<1x8x128xf32>
      %150 = vector.shape_cast %149 : vector<1x8x128xf32> to vector<8x128xf32>
      %151 = vector.shape_cast %148 : vector<8x128xf32> to vector<1x8x128xf32>
      tpu.vector_store %arg6[%c5_43, %c0_44, %c0_45], %151 {strides = array<i32>} : memref<8x8x128xf32, #tpu.memory_space<vmem>>, vector<1x8x128xf32>,
      %c4_i32 = arith.constant 4 : i32
      %152 = arith.addi %15, %c4_i32 : i32
      %c0_46 = arith.constant 0 : index
      %c4 = arith.constant 4 : index
      %c0_47 = arith.constant 0 : index
      %c0_48 = arith.constant 0 : index
      %153 = vector.load %arg2[%c0_46, %c4, %c0_47, %c0_48] : memref<1x8x8x384xf32, #tpu.memory_space<vmem>>, vector<1x1x8x384xf32>
      %154 = vector.shape_cast %153 : vector<1x1x8x384xf32> to vector<8x384xf32>
      %155 = arith.truncf %144 : vector<8x128xf32> to vector<8x128xbf16>
      %cst_49 = arith.constant dense<0.000000e+00> : vector<8x384xf32>
      %156 = tpu.matmul %155, %5, %cst_49 {dimension_numbers = #tpu.dot_dimension_numbers<[1], [0], [0], [1], [0, 0, 1, 1], [], []>} : vector<8x128xbf16>, vector<128x384xbf16>, vector<8x384xf32> -> vector<8x384xf32>
      %157 = vector.extract_strided_slice %154 {offsets = [0, 0], sizes = [8, 128], strides = [1, 1]} : vector<8x384xf32> to vector<8x128xf32>
      %158 = vector.extract_strided_slice %156 {offsets = [0, 0], sizes = [8, 128], strides = [1, 1]} : vector<8x384xf32> to vector<8x128xf32>
      %159 = arith.addf %157, %158 : vector<8x128xf32>
      %160 = arith.negf %159 : vector<8x128xf32>
      %161 = math.exp %160 : vector<8x128xf32>
      %cst_50 = arith.constant 1.000000e+00 : f32
      %162 = vector.broadcast %cst_50 : f32 to vector<8x128xf32>
      %163 = arith.addf %162, %161 : vector<8x128xf32>
      %164 = arith.divf %162, %163 : vector<8x128xf32>
      %165 = vector.extract_strided_slice %154 {offsets = [0, 128], sizes = [8, 128], strides = [1, 1]} : vector<8x384xf32> to vector<8x128xf32>
      %166 = vector.extract_strided_slice %156 {offsets = [0, 128], sizes = [8, 128], strides = [1, 1]} : vector<8x384xf32> to vector<8x128xf32>
      %167 = arith.addf %165, %166 : vector<8x128xf32>
      %168 = arith.negf %167 : vector<8x128xf32>
      %169 = math.exp %168 : vector<8x128xf32>
      %cst_51 = arith.constant 1.000000e+00 : f32
      %170 = vector.broadcast %cst_51 : f32 to vector<8x128xf32>
      %171 = arith.addf %170, %169 : vector<8x128xf32>
      %172 = arith.divf %170, %171 : vector<8x128xf32>
      %173 = vector.extract_strided_slice %154 {offsets = [0, 256], sizes = [8, 128], strides = [1, 1]} : vector<8x384xf32> to vector<8x128xf32>
      %174 = vector.extract_strided_slice %156 {offsets = [0, 256], sizes = [8, 128], strides = [1, 1]} : vector<8x384xf32> to vector<8x128xf32>
      %175 = vector.broadcast %7 : vector<1x128xf32> to vector<8x128xf32>
      %176 = arith.addf %174, %175 : vector<8x128xf32>
      %177 = arith.mulf %164, %176 : vector<8x128xf32>
      %178 = arith.addf %173, %177 : vector<8x128xf32>
      %179 = math.tanh %178 : vector<8x128xf32>
      %cst_52 = arith.constant 1.000000e+00 : f32
      %180 = vector.broadcast %cst_52 : f32 to vector<8x128xf32>
      %181 = arith.subf %180, %172 : vector<8x128xf32>
      %182 = arith.mulf %181, %179 : vector<8x128xf32>
      %183 = arith.mulf %172, %144 : vector<8x128xf32>
      %184 = arith.addf %182, %183 : vector<8x128xf32>
      %185 = vector.broadcast %152 : i32 to vector<8x1xi32>
      %186 = arith.cmpi slt, %185, %3 : vector<8x1xi32>
      %187 = vector.shape_cast %186 : vector<8x1xi1> to vector<8x1xi1>
      %188 = vector.broadcast %187 : vector<8x1xi1> to vector<8x128xi1>
      %189 = arith.select %188, %184, %144 : vector<8x128xi1>, vector<8x128xf32>
      %cst_53 = arith.constant 0.000000e+00 : f32
      %190 = vector.broadcast %cst_53 : f32 to vector<8x128xf32>
      %191 = vector.shape_cast %186 : vector<8x1xi1> to vector<8x1xi1>
      %192 = vector.broadcast %191 : vector<8x1xi1> to vector<8x128xi1>
      %193 = arith.select %192, %189, %190 : vector<8x128xi1>, vector<8x128xf32>
      %c4_54 = arith.constant 4 : index
      %c0_55 = arith.constant 0 : index
      %c0_56 = arith.constant 0 : index
      %194 = vector.load %arg6[%c4_54, %c0_55, %c0_56] : memref<8x8x128xf32, #tpu.memory_space<vmem>>, vector<1x8x128xf32>
      %195 = vector.shape_cast %194 : vector<1x8x128xf32> to vector<8x128xf32>
      %196 = vector.shape_cast %193 : vector<8x128xf32> to vector<1x8x128xf32>
      tpu.vector_store %arg6[%c4_54, %c0_55, %c0_56], %196 {strides = array<i32>} : memref<8x8x128xf32, #tpu.memory_space<vmem>>, vector<1x8x128xf32>,
      %c3_i32 = arith.constant 3 : i32
      %197 = arith.addi %15, %c3_i32 : i32
      %c0_57 = arith.constant 0 : index
      %c3 = arith.constant 3 : index
      %c0_58 = arith.constant 0 : index
      %c0_59 = arith.constant 0 : index
      %198 = vector.load %arg2[%c0_57, %c3, %c0_58, %c0_59] : memref<1x8x8x384xf32, #tpu.memory_space<vmem>>, vector<1x1x8x384xf32>
      %199 = vector.shape_cast %198 : vector<1x1x8x384xf32> to vector<8x384xf32>
      %200 = arith.truncf %189 : vector<8x128xf32> to vector<8x128xbf16>
      %cst_60 = arith.constant dense<0.000000e+00> : vector<8x384xf32>
      %201 = tpu.matmul %200, %5, %cst_60 {dimension_numbers = #tpu.dot_dimension_numbers<[1], [0], [0], [1], [0, 0, 1, 1], [], []>} : vector<8x128xbf16>, vector<128x384xbf16>, vector<8x384xf32> -> vector<8x384xf32>
      %202 = vector.extract_strided_slice %199 {offsets = [0, 0], sizes = [8, 128], strides = [1, 1]} : vector<8x384xf32> to vector<8x128xf32>
      %203 = vector.extract_strided_slice %201 {offsets = [0, 0], sizes = [8, 128], strides = [1, 1]} : vector<8x384xf32> to vector<8x128xf32>
      %204 = arith.addf %202, %203 : vector<8x128xf32>
      %205 = arith.negf %204 : vector<8x128xf32>
      %206 = math.exp %205 : vector<8x128xf32>
      %cst_61 = arith.constant 1.000000e+00 : f32
      %207 = vector.broadcast %cst_61 : f32 to vector<8x128xf32>
      %208 = arith.addf %207, %206 : vector<8x128xf32>
      %209 = arith.divf %207, %208 : vector<8x128xf32>
      %210 = vector.extract_strided_slice %199 {offsets = [0, 128], sizes = [8, 128], strides = [1, 1]} : vector<8x384xf32> to vector<8x128xf32>
      %211 = vector.extract_strided_slice %201 {offsets = [0, 128], sizes = [8, 128], strides = [1, 1]} : vector<8x384xf32> to vector<8x128xf32>
      %212 = arith.addf %210, %211 : vector<8x128xf32>
      %213 = arith.negf %212 : vector<8x128xf32>
      %214 = math.exp %213 : vector<8x128xf32>
      %cst_62 = arith.constant 1.000000e+00 : f32
      %215 = vector.broadcast %cst_62 : f32 to vector<8x128xf32>
      %216 = arith.addf %215, %214 : vector<8x128xf32>
      %217 = arith.divf %215, %216 : vector<8x128xf32>
      %218 = vector.extract_strided_slice %199 {offsets = [0, 256], sizes = [8, 128], strides = [1, 1]} : vector<8x384xf32> to vector<8x128xf32>
      %219 = vector.extract_strided_slice %201 {offsets = [0, 256], sizes = [8, 128], strides = [1, 1]} : vector<8x384xf32> to vector<8x128xf32>
      %220 = vector.broadcast %7 : vector<1x128xf32> to vector<8x128xf32>
      %221 = arith.addf %219, %220 : vector<8x128xf32>
      %222 = arith.mulf %209, %221 : vector<8x128xf32>
      %223 = arith.addf %218, %222 : vector<8x128xf32>
      %224 = math.tanh %223 : vector<8x128xf32>
      %cst_63 = arith.constant 1.000000e+00 : f32
      %225 = vector.broadcast %cst_63 : f32 to vector<8x128xf32>
      %226 = arith.subf %225, %217 : vector<8x128xf32>
      %227 = arith.mulf %226, %224 : vector<8x128xf32>
      %228 = arith.mulf %217, %189 : vector<8x128xf32>
      %229 = arith.addf %227, %228 : vector<8x128xf32>
      %230 = vector.broadcast %197 : i32 to vector<8x1xi32>
      %231 = arith.cmpi slt, %230, %3 : vector<8x1xi32>
      %232 = vector.shape_cast %231 : vector<8x1xi1> to vector<8x1xi1>
      %233 = vector.broadcast %232 : vector<8x1xi1> to vector<8x128xi1>
      %234 = arith.select %233, %229, %189 : vector<8x128xi1>, vector<8x128xf32>
      %cst_64 = arith.constant 0.000000e+00 : f32
      %235 = vector.broadcast %cst_64 : f32 to vector<8x128xf32>
      %236 = vector.shape_cast %231 : vector<8x1xi1> to vector<8x1xi1>
      %237 = vector.broadcast %236 : vector<8x1xi1> to vector<8x128xi1>
      %238 = arith.select %237, %234, %235 : vector<8x128xi1>, vector<8x128xf32>
      %c3_65 = arith.constant 3 : index
      %c0_66 = arith.constant 0 : index
      %c0_67 = arith.constant 0 : index
      %239 = vector.load %arg6[%c3_65, %c0_66, %c0_67] : memref<8x8x128xf32, #tpu.memory_space<vmem>>, vector<1x8x128xf32>
      %240 = vector.shape_cast %239 : vector<1x8x128xf32> to vector<8x128xf32>
      %241 = vector.shape_cast %238 : vector<8x128xf32> to vector<1x8x128xf32>
      tpu.vector_store %arg6[%c3_65, %c0_66, %c0_67], %241 {strides = array<i32>} : memref<8x8x128xf32, #tpu.memory_space<vmem>>, vector<1x8x128xf32>,
      %c2_i32 = arith.constant 2 : i32
      %242 = arith.addi %15, %c2_i32 : i32
      %c0_68 = arith.constant 0 : index
      %c2 = arith.constant 2 : index
      %c0_69 = arith.constant 0 : index
      %c0_70 = arith.constant 0 : index
      %243 = vector.load %arg2[%c0_68, %c2, %c0_69, %c0_70] : memref<1x8x8x384xf32, #tpu.memory_space<vmem>>, vector<1x1x8x384xf32>
      %244 = vector.shape_cast %243 : vector<1x1x8x384xf32> to vector<8x384xf32>
      %245 = arith.truncf %234 : vector<8x128xf32> to vector<8x128xbf16>
      %cst_71 = arith.constant dense<0.000000e+00> : vector<8x384xf32>
      %246 = tpu.matmul %245, %5, %cst_71 {dimension_numbers = #tpu.dot_dimension_numbers<[1], [0], [0], [1], [0, 0, 1, 1], [], []>} : vector<8x128xbf16>, vector<128x384xbf16>, vector<8x384xf32> -> vector<8x384xf32>
      %247 = vector.extract_strided_slice %244 {offsets = [0, 0], sizes = [8, 128], strides = [1, 1]} : vector<8x384xf32> to vector<8x128xf32>
      %248 = vector.extract_strided_slice %246 {offsets = [0, 0], sizes = [8, 128], strides = [1, 1]} : vector<8x384xf32> to vector<8x128xf32>
      %249 = arith.addf %247, %248 : vector<8x128xf32>
      %250 = arith.negf %249 : vector<8x128xf32>
      %251 = math.exp %250 : vector<8x128xf32>
      %cst_72 = arith.constant 1.000000e+00 : f32
      %252 = vector.broadcast %cst_72 : f32 to vector<8x128xf32>
      %253 = arith.addf %252, %251 : vector<8x128xf32>
      %254 = arith.divf %252, %253 : vector<8x128xf32>
      %255 = vector.extract_strided_slice %244 {offsets = [0, 128], sizes = [8, 128], strides = [1, 1]} : vector<8x384xf32> to vector<8x128xf32>
      %256 = vector.extract_strided_slice %246 {offsets = [0, 128], sizes = [8, 128], strides = [1, 1]} : vector<8x384xf32> to vector<8x128xf32>
      %257 = arith.addf %255, %256 : vector<8x128xf32>
      %258 = arith.negf %257 : vector<8x128xf32>
      %259 = math.exp %258 : vector<8x128xf32>
      %cst_73 = arith.constant 1.000000e+00 : f32
      %260 = vector.broadcast %cst_73 : f32 to vector<8x128xf32>
      %261 = arith.addf %260, %259 : vector<8x128xf32>
      %262 = arith.divf %260, %261 : vector<8x128xf32>
      %263 = vector.extract_strided_slice %244 {offsets = [0, 256], sizes = [8, 128], strides = [1, 1]} : vector<8x384xf32> to vector<8x128xf32>
      %264 = vector.extract_strided_slice %246 {offsets = [0, 256], sizes = [8, 128], strides = [1, 1]} : vector<8x384xf32> to vector<8x128xf32>
      %265 = vector.broadcast %7 : vector<1x128xf32> to vector<8x128xf32>
      %266 = arith.addf %264, %265 : vector<8x128xf32>
      %267 = arith.mulf %254, %266 : vector<8x128xf32>
      %268 = arith.addf %263, %267 : vector<8x128xf32>
      %269 = math.tanh %268 : vector<8x128xf32>
      %cst_74 = arith.constant 1.000000e+00 : f32
      %270 = vector.broadcast %cst_74 : f32 to vector<8x128xf32>
      %271 = arith.subf %270, %262 : vector<8x128xf32>
      %272 = arith.mulf %271, %269 : vector<8x128xf32>
      %273 = arith.mulf %262, %234 : vector<8x128xf32>
      %274 = arith.addf %272, %273 : vector<8x128xf32>
      %275 = vector.broadcast %242 : i32 to vector<8x1xi32>
      %276 = arith.cmpi slt, %275, %3 : vector<8x1xi32>
      %277 = vector.shape_cast %276 : vector<8x1xi1> to vector<8x1xi1>
      %278 = vector.broadcast %277 : vector<8x1xi1> to vector<8x128xi1>
      %279 = arith.select %278, %274, %234 : vector<8x128xi1>, vector<8x128xf32>
      %cst_75 = arith.constant 0.000000e+00 : f32
      %280 = vector.broadcast %cst_75 : f32 to vector<8x128xf32>
      %281 = vector.shape_cast %276 : vector<8x1xi1> to vector<8x1xi1>
      %282 = vector.broadcast %281 : vector<8x1xi1> to vector<8x128xi1>
      %283 = arith.select %282, %279, %280 : vector<8x128xi1>, vector<8x128xf32>
      %c2_76 = arith.constant 2 : index
      %c0_77 = arith.constant 0 : index
      %c0_78 = arith.constant 0 : index
      %284 = vector.load %arg6[%c2_76, %c0_77, %c0_78] : memref<8x8x128xf32, #tpu.memory_space<vmem>>, vector<1x8x128xf32>
      %285 = vector.shape_cast %284 : vector<1x8x128xf32> to vector<8x128xf32>
      %286 = vector.shape_cast %283 : vector<8x128xf32> to vector<1x8x128xf32>
      tpu.vector_store %arg6[%c2_76, %c0_77, %c0_78], %286 {strides = array<i32>} : memref<8x8x128xf32, #tpu.memory_space<vmem>>, vector<1x8x128xf32>,
      %c1_i32_79 = arith.constant 1 : i32
      %287 = arith.addi %15, %c1_i32_79 : i32
      %c0_80 = arith.constant 0 : index
      %c1 = arith.constant 1 : index
      %c0_81 = arith.constant 0 : index
      %c0_82 = arith.constant 0 : index
      %288 = vector.load %arg2[%c0_80, %c1, %c0_81, %c0_82] : memref<1x8x8x384xf32, #tpu.memory_space<vmem>>, vector<1x1x8x384xf32>
      %289 = vector.shape_cast %288 : vector<1x1x8x384xf32> to vector<8x384xf32>
      %290 = arith.truncf %279 : vector<8x128xf32> to vector<8x128xbf16>
      %cst_83 = arith.constant dense<0.000000e+00> : vector<8x384xf32>
      %291 = tpu.matmul %290, %5, %cst_83 {dimension_numbers = #tpu.dot_dimension_numbers<[1], [0], [0], [1], [0, 0, 1, 1], [], []>} : vector<8x128xbf16>, vector<128x384xbf16>, vector<8x384xf32> -> vector<8x384xf32>
      %292 = vector.extract_strided_slice %289 {offsets = [0, 0], sizes = [8, 128], strides = [1, 1]} : vector<8x384xf32> to vector<8x128xf32>
      %293 = vector.extract_strided_slice %291 {offsets = [0, 0], sizes = [8, 128], strides = [1, 1]} : vector<8x384xf32> to vector<8x128xf32>
      %294 = arith.addf %292, %293 : vector<8x128xf32>
      %295 = arith.negf %294 : vector<8x128xf32>
      %296 = math.exp %295 : vector<8x128xf32>
      %cst_84 = arith.constant 1.000000e+00 : f32
      %297 = vector.broadcast %cst_84 : f32 to vector<8x128xf32>
      %298 = arith.addf %297, %296 : vector<8x128xf32>
      %299 = arith.divf %297, %298 : vector<8x128xf32>
      %300 = vector.extract_strided_slice %289 {offsets = [0, 128], sizes = [8, 128], strides = [1, 1]} : vector<8x384xf32> to vector<8x128xf32>
      %301 = vector.extract_strided_slice %291 {offsets = [0, 128], sizes = [8, 128], strides = [1, 1]} : vector<8x384xf32> to vector<8x128xf32>
      %302 = arith.addf %300, %301 : vector<8x128xf32>
      %303 = arith.negf %302 : vector<8x128xf32>
      %304 = math.exp %303 : vector<8x128xf32>
      %cst_85 = arith.constant 1.000000e+00 : f32
      %305 = vector.broadcast %cst_85 : f32 to vector<8x128xf32>
      %306 = arith.addf %305, %304 : vector<8x128xf32>
      %307 = arith.divf %305, %306 : vector<8x128xf32>
      %308 = vector.extract_strided_slice %289 {offsets = [0, 256], sizes = [8, 128], strides = [1, 1]} : vector<8x384xf32> to vector<8x128xf32>
      %309 = vector.extract_strided_slice %291 {offsets = [0, 256], sizes = [8, 128], strides = [1, 1]} : vector<8x384xf32> to vector<8x128xf32>
      %310 = vector.broadcast %7 : vector<1x128xf32> to vector<8x128xf32>
      %311 = arith.addf %309, %310 : vector<8x128xf32>
      %312 = arith.mulf %299, %311 : vector<8x128xf32>
      %313 = arith.addf %308, %312 : vector<8x128xf32>
      %314 = math.tanh %313 : vector<8x128xf32>
      %cst_86 = arith.constant 1.000000e+00 : f32
      %315 = vector.broadcast %cst_86 : f32 to vector<8x128xf32>
      %316 = arith.subf %315, %307 : vector<8x128xf32>
      %317 = arith.mulf %316, %314 : vector<8x128xf32>
      %318 = arith.mulf %307, %279 : vector<8x128xf32>
      %319 = arith.addf %317, %318 : vector<8x128xf32>
      %320 = vector.broadcast %287 : i32 to vector<8x1xi32>
      %321 = arith.cmpi slt, %320, %3 : vector<8x1xi32>
      %322 = vector.shape_cast %321 : vector<8x1xi1> to vector<8x1xi1>
      %323 = vector.broadcast %322 : vector<8x1xi1> to vector<8x128xi1>
      %324 = arith.select %323, %319, %279 : vector<8x128xi1>, vector<8x128xf32>
      %cst_87 = arith.constant 0.000000e+00 : f32
      %325 = vector.broadcast %cst_87 : f32 to vector<8x128xf32>
      %326 = vector.shape_cast %321 : vector<8x1xi1> to vector<8x1xi1>
      %327 = vector.broadcast %326 : vector<8x1xi1> to vector<8x128xi1>
      %328 = arith.select %327, %324, %325 : vector<8x128xi1>, vector<8x128xf32>
      %c1_88 = arith.constant 1 : index
      %c0_89 = arith.constant 0 : index
      %c0_90 = arith.constant 0 : index
      %329 = vector.load %arg6[%c1_88, %c0_89, %c0_90] : memref<8x8x128xf32, #tpu.memory_space<vmem>>, vector<1x8x128xf32>
      %330 = vector.shape_cast %329 : vector<1x8x128xf32> to vector<8x128xf32>
      %331 = vector.shape_cast %328 : vector<8x128xf32> to vector<1x8x128xf32>
      tpu.vector_store %arg6[%c1_88, %c0_89, %c0_90], %331 {strides = array<i32>} : memref<8x8x128xf32, #tpu.memory_space<vmem>>, vector<1x8x128xf32>,
      %c0_i32_91 = arith.constant 0 : i32
      %332 = arith.addi %15, %c0_i32_91 : i32
      %c0_92 = arith.constant 0 : index
      %c0_93 = arith.constant 0 : index
      %c0_94 = arith.constant 0 : index
      %c0_95 = arith.constant 0 : index
      %333 = vector.load %arg2[%c0_92, %c0_93, %c0_94, %c0_95] : memref<1x8x8x384xf32, #tpu.memory_space<vmem>>, vector<1x1x8x384xf32>
      %334 = vector.shape_cast %333 : vector<1x1x8x384xf32> to vector<8x384xf32>
      %335 = arith.truncf %324 : vector<8x128xf32> to vector<8x128xbf16>
      %cst_96 = arith.constant dense<0.000000e+00> : vector<8x384xf32>
      %336 = tpu.matmul %335, %5, %cst_96 {dimension_numbers = #tpu.dot_dimension_numbers<[1], [0], [0], [1], [0, 0, 1, 1], [], []>} : vector<8x128xbf16>, vector<128x384xbf16>, vector<8x384xf32> -> vector<8x384xf32>
      %337 = vector.extract_strided_slice %334 {offsets = [0, 0], sizes = [8, 128], strides = [1, 1]} : vector<8x384xf32> to vector<8x128xf32>
      %338 = vector.extract_strided_slice %336 {offsets = [0, 0], sizes = [8, 128], strides = [1, 1]} : vector<8x384xf32> to vector<8x128xf32>
      %339 = arith.addf %337, %338 : vector<8x128xf32>
      %340 = arith.negf %339 : vector<8x128xf32>
      %341 = math.exp %340 : vector<8x128xf32>
      %cst_97 = arith.constant 1.000000e+00 : f32
      %342 = vector.broadcast %cst_97 : f32 to vector<8x128xf32>
      %343 = arith.addf %342, %341 : vector<8x128xf32>
      %344 = arith.divf %342, %343 : vector<8x128xf32>
      %345 = vector.extract_strided_slice %334 {offsets = [0, 128], sizes = [8, 128], strides = [1, 1]} : vector<8x384xf32> to vector<8x128xf32>
      %346 = vector.extract_strided_slice %336 {offsets = [0, 128], sizes = [8, 128], strides = [1, 1]} : vector<8x384xf32> to vector<8x128xf32>
      %347 = arith.addf %345, %346 : vector<8x128xf32>
      %348 = arith.negf %347 : vector<8x128xf32>
      %349 = math.exp %348 : vector<8x128xf32>
      %cst_98 = arith.constant 1.000000e+00 : f32
      %350 = vector.broadcast %cst_98 : f32 to vector<8x128xf32>
      %351 = arith.addf %350, %349 : vector<8x128xf32>
      %352 = arith.divf %350, %351 : vector<8x128xf32>
      %353 = vector.extract_strided_slice %334 {offsets = [0, 256], sizes = [8, 128], strides = [1, 1]} : vector<8x384xf32> to vector<8x128xf32>
      %354 = vector.extract_strided_slice %336 {offsets = [0, 256], sizes = [8, 128], strides = [1, 1]} : vector<8x384xf32> to vector<8x128xf32>
      %355 = vector.broadcast %7 : vector<1x128xf32> to vector<8x128xf32>
      %356 = arith.addf %354, %355 : vector<8x128xf32>
      %357 = arith.mulf %344, %356 : vector<8x128xf32>
      %358 = arith.addf %353, %357 : vector<8x128xf32>
      %359 = math.tanh %358 : vector<8x128xf32>
      %cst_99 = arith.constant 1.000000e+00 : f32
      %360 = vector.broadcast %cst_99 : f32 to vector<8x128xf32>
      %361 = arith.subf %360, %352 : vector<8x128xf32>
      %362 = arith.mulf %361, %359 : vector<8x128xf32>
      %363 = arith.mulf %352, %324 : vector<8x128xf32>
      %364 = arith.addf %362, %363 : vector<8x128xf32>
      %365 = vector.broadcast %332 : i32 to vector<8x1xi32>
      %366 = arith.cmpi slt, %365, %3 : vector<8x1xi32>
      %367 = vector.shape_cast %366 : vector<8x1xi1> to vector<8x1xi1>
      %368 = vector.broadcast %367 : vector<8x1xi1> to vector<8x128xi1>
      %369 = arith.select %368, %364, %324 : vector<8x128xi1>, vector<8x128xf32>
      %cst_100 = arith.constant 0.000000e+00 : f32
      %370 = vector.broadcast %cst_100 : f32 to vector<8x128xf32>
      %371 = vector.shape_cast %366 : vector<8x1xi1> to vector<8x1xi1>
      %372 = vector.broadcast %371 : vector<8x1xi1> to vector<8x128xi1>
      %373 = arith.select %372, %369, %370 : vector<8x128xi1>, vector<8x128xf32>
      %c0_101 = arith.constant 0 : index
      %c0_102 = arith.constant 0 : index
      %c0_103 = arith.constant 0 : index
      %374 = vector.load %arg6[%c0_101, %c0_102, %c0_103] : memref<8x8x128xf32, #tpu.memory_space<vmem>>, vector<1x8x128xf32>
      %375 = vector.shape_cast %374 : vector<1x8x128xf32> to vector<8x128xf32>
      %376 = vector.shape_cast %373 : vector<8x128xf32> to vector<1x8x128xf32>
      tpu.vector_store %arg6[%c0_101, %c0_102, %c0_103], %376 {strides = array<i32>} : memref<8x8x128xf32, #tpu.memory_space<vmem>>, vector<1x8x128xf32>,
      %c0_104 = arith.constant 0 : index
      %c0_105 = arith.constant 0 : index
      %377 = vector.load %arg7[%c0_104, %c0_105] : memref<8x128xf32, #tpu.memory_space<vmem>>, vector<8x128xf32>
      tpu.vector_store %arg7[%c0_104, %c0_105], %369 {strides = array<i32>} : memref<8x128xf32, #tpu.memory_space<vmem>>, vector<8x128xf32>,
    } else {
    }
    return
  }
  func.func @transform_0(%arg0: i32, %arg1: i32) -> (i32, i32, i32, i32) {
    %c2_i32 = arith.constant 2 : i32
    %0 = arith.muli %c2_i32, %arg1 : i32
    %c0_i32 = arith.constant 0 : i32
    %1 = arith.subi %c0_i32, %0 : i32
    %2 = arith.muli %arg0, %1 : i32
    %3 = arith.addi %2, %arg1 : i32
    %c0_i32_0 = arith.constant 0 : i32
    %c0_i32_1 = arith.constant 0 : i32
    %c0_i32_2 = arith.constant 0 : i32
    return %arg0, %3, %c0_i32_0, %c0_i32_1 : i32, i32, i32, i32
  }
  func.func @transform_1(%arg0: i32, %arg1: i32) -> (i32, i32, i32) {
    %c0_i32 = arith.constant 0 : i32
    %c0_i32_0 = arith.constant 0 : i32
    %c0_i32_1 = arith.constant 0 : i32
    return %arg0, %c0_i32, %c0_i32_0 : i32, i32, i32
  }
  func.func @transform_2(%arg0: i32, %arg1: i32) -> (i32, i32, i32) {
    %c0_i32 = arith.constant 0 : i32
    %c0_i32_0 = arith.constant 0 : i32
    %c0_i32_1 = arith.constant 0 : i32
    return %arg0, %c0_i32, %c0_i32_0 : i32, i32, i32
  }
  func.func @transform_3(%arg0: i32, %arg1: i32) -> (i32, i32) {
    %c0_i32 = arith.constant 0 : i32
    %c0_i32_0 = arith.constant 0 : i32
    %c0_i32_1 = arith.constant 0 : i32
    return %c0_i32, %c0_i32_0 : i32, i32
  }
  func.func @transform_4(%arg0: i32, %arg1: i32) -> (i32, i32, i32) {
    %c2_i32 = arith.constant 2 : i32
    %0 = arith.muli %c2_i32, %arg1 : i32
    %c0_i32 = arith.constant 0 : i32
    %1 = arith.subi %c0_i32, %0 : i32
    %2 = arith.muli %arg0, %1 : i32
    %3 = arith.addi %2, %arg1 : i32
    %c0_i32_0 = arith.constant 0 : i32
    %c0_i32_1 = arith.constant 0 : i32
    return %3, %c0_i32_0, %arg0 : i32, i32, i32
  }
}

</mosaic_0001>

<llo_original>
// kernel: tpu_custom_call.1
$region0: #{tpu_custom_call.1}
  #allocation0 [shape = 'u32[]', space=smem, size = 0x4, offset = 0x4, fixed_abs, tag = 'smem constant byte address 0x4 - core index']
  #allocation1 [shape = 'u32[144,128]{1,0:T(1,128)}', space=vmem, size = 0x12000, scoped, tag = 'internal scratch']
  #allocation2 [shape = 'f32[8,128]{1,0:T(8,128)}', space=vmem, size = 0x1000, scoped, tag = 'scratch operand']
  %s0 = inlined_call_operand.hbm [shape: f32[2,8,8,384], index: 0, kind: input, shape index: {}]
  %s1 = inlined_call_operand.hbm [shape: bf16[2,128,384], index: 1, kind: input, shape index: {}]
  %s2 = inlined_call_operand.vmem [shape: f32[2,1,128], index: 2, kind: input, shape index: {}]
  %s3 = inlined_call_operand.vmem [shape: s32[8,1], index: 3, kind: input, shape index: {}]
  %s4 = inlined_call_operand.hbm [shape: f32[8,8,256], index: 4, kind: output, shape index: {}]
  %s5 = sld [smem:[#allocation0]]
  $region69: #{tpu_custom_call.1} parent=0
    _
  %s7 = ssub.s32 1, %s5
  %s8 = scalar_select 0, %s7, %s5
  $region1: #{tpu_custom_call.1} parent=0
    #allocation3 [shape = 'u8[196608]{0}', space=vmem, size = 0x30000, scoped, tag = 'input window, operand 0']
    #allocation4 [shape = 's32[2]{0}', space=sflag, size = 0x8, scoped, tag = 'scoped memory for tpu_custom_call.1']
    #allocation5 [shape = 's32[2]{0}', space=sflag, size = 0x8, scoped, tag = 'scoped memory for tpu_custom_call.1']
    #allocation6 [shape = 'u8[196608]{0}', space=vmem, size = 0x30000, scoped, tag = 'input window, operand 1']
    #allocation7 [shape = 's32[2]{0}', space=sflag, size = 0x8, scoped, tag = 'scoped memory for tpu_custom_call.1']
    #allocation8 [shape = 'u8[65536]{0}', space=vmem, size = 0x10000, scoped, tag = 'output window, operand 0']
    %9 = vsyncpa [#allocation4], 0
    %s10 = scalar_lea.sflag [#allocation4], 1
    %11 = vsyncpa %s10, 0
    %12 = vsyncpa [#allocation7], 0
    %s13 = scalar_lea.sflag [#allocation7], 1
    %14 = vsyncpa %s13, 0
    %15 = vsyncpa [#allocation5], 0
    %s16 = scalar_lea.sflag [#allocation5], 1
    %17 = vsyncpa %s16, 0
    loop: start=0, step=1, limit=4
    $region2: #{tpu_custom_call.1} parent=1 // loop_pre_header
      _
    $region3: #{tpu_custom_call.1} parent=1 // loop_header
      %s19 = sphi 0, %s23
      %p20 = scmp.ge.s32.totalorder %s19, 4
      %s26 = sphi 0, %s38
      %s27 = sphi 0, %s34
      %s28 = sphi 0, %s26
      %s29 = sphi 0, %s27
      %s30 = sphi 0, %s28
      %s31 = sphi 0, %s29
      %s51 = sphi 0, %s53
      %s54 = sphi 0, %s51
      %s55 = sphi 0, %s54
      %s71 = sphi 0, %s55
      %s77 = sphi 0, %s79
      %s80 = sphi 0, %s77
      %s81 = sphi 0, %s80
      %s97 = sphi 0, %s81
      %s103 = sphi 0, %s105
      %s106 = sphi 0, %s103
      %s107 = sphi 0, %s106
      %s123 = sphi 0, %s107
      %s127 = sphi 0, %s127
      %s129 = sphi 0, %s127
      %s130 = sphi 0, %s129
      %s144 = sphi 0, %s130
      %s160 = sphi 0, %s162
      %s163 = sphi 0, %s160
      %s164 = sphi 0, %s163
      %s180 = sphi 0, %s164
    $region4: #{tpu_custom_call.1} parent=1 // loop_header_branch
      %22 = sbr.rel (%p20) target = $region8
    $region5: #{tpu_custom_call.1} parent=1 // loop_body
      %s24 = ssub.s32 %s19, 1
      %s25 = ssub.s32 %s19, 2
      %s32 = sadd.s32 1, %s27
      %p33 = scmp.ge.s32.totalorder %s32, 1
      %s34 = scalar_select %p33, 0, %s32
      %s35 = sadd.s32 1, %s26
      %s36 = scalar_select %p33, %s35, %s26
      %p37 = scmp.ge.s32.totalorder %s36, 2
      %s38 = scalar_select %p37, 0, %s36
      %s39 = smul.u32 %s27, 2
      %s40 = ssub.s32 0, %s39
      %s41 = smul.u32 %s26, %s40
      %s42 = sadd.s32 %s41, %s27
      %s43 = smul.u32 %s34, 2
      %s44 = ssub.s32 0, %s43
      %s45 = smul.u32 %s38, %s44
      %s46 = sadd.s32 %s45, %s34
      %s47 = ssub.s32 %s26, %s38
      %s48 = ssub.s32 %s42, %s46
      %s49 = sor.u32 %s47, %s48
      %p50 = scmp.eq.s32.totalorder %s49, 0
      %s52 = sadd.s32 %s51, 1
      %s53 = scalar_select %p50, %s51, %s52
      %p56 = pneg %p50
      %p57 = scmp.eq.s32.totalorder %s19, 1
      %p58 = por %p56, %p57
      %p59 = scmp.ne.s32.totalorder %s51, %s54
      %p60 = scmp.eq.s32.totalorder %s19, 0
      %p61 = por %p59, %p60
      %p62 = scmp.ne.s32.totalorder %s51, %s54
      %p63 = scmp.eq.s32.totalorder %s24, 1
      %p64 = por %p62, %p63
      %p65 = scmp.ne.s32.totalorder %s54, %s55
      %p66 = scmp.eq.s32.totalorder %s24, 0
      %p67 = por %p65, %p66
      %p68 = scmp.ne.s32.totalorder %s54, %s55
      %p69 = scmp.eq.s32.totalorder %s25, 1
      %p70 = por %p68, %p69
      %p72 = scmp.ne.s32.totalorder %s55, %s71
      %p73 = scmp.eq.s32.totalorder %s25, 0
      %p74 = por %p72, %p73
      %s75 = ssub.s32 %s26, %s38
      %p76 = scmp.eq.s32.totalorder %s75, 0
      %s78 = sadd.s32 %s77, 1
      %s79 = scalar_select %p76, %s77, %s78
      %p82 = pneg %p76
      %p83 = scmp.eq.s32.totalorder %s19, 1
      %p84 = por %p82, %p83
      %p85 = scmp.ne.s32.totalorder %s77, %s80
      %p86 = scmp.eq.s32.totalorder %s19, 0
      %p87 = por %p85, %p86
      %p88 = scmp.ne.s32.totalorder %s77, %s80
      %p89 = scmp.eq.s32.totalorder %s24, 1
      %p90 = por %p88, %p89
      %p91 = scmp.ne.s32.totalorder %s80, %s81
      %p92 = scmp.eq.s32.totalorder %s24, 0
      %p93 = por %p91, %p92
      %p94 = scmp.ne.s32.totalorder %s80, %s81
      %p95 = scmp.eq.s32.totalorder %s25, 1
      %p96 = por %p94, %p95
      %p98 = scmp.ne.s32.totalorder %s81, %s97
      %p99 = scmp.eq.s32.totalorder %s25, 0
      %p100 = por %p98, %p99
      %s101 = ssub.s32 %s26, %s38
      %p102 = scmp.eq.s32.totalorder %s101, 0
      %s104 = sadd.s32 %s103, 1
      %s105 = scalar_select %p102, %s103, %s104
      %p108 = pneg %p102
      %p109 = scmp.eq.s32.totalorder %s19, 1
      %p110 = por %p108, %p109
      %p111 = scmp.ne.s32.totalorder %s103, %s106
      %p112 = scmp.eq.s32.totalorder %s19, 0
      %p113 = por %p111, %p112
      %p114 = scmp.ne.s32.totalorder %s103, %s106
      %p115 = scmp.eq.s32.totalorder %s24, 1
      %p116 = por %p114, %p115
      %p117 = scmp.ne.s32.totalorder %s106, %s107
      %p118 = scmp.eq.s32.totalorder %s24, 0
      %p119 = por %p117, %p118
      %p120 = scmp.ne.s32.totalorder %s106, %s107
      %p121 = scmp.eq.s32.totalorder %s25, 1
      %p122 = por %p120, %p121
      %p124 = scmp.ne.s32.totalorder %s107, %s123
      %p125 = scmp.eq.s32.totalorder %s25, 0
      %p126 = por %p124, %p125
      %s128 = sadd.s32 %s127, 1
      %p131 = scmp.eq.s32.totalorder %s19, 1
      %p132 = scmp.ne.s32.totalorder %s127, %s129
      %p133 = scmp.eq.s32.totalorder %s19, 0
      %p134 = por %p132, %p133
      %p135 = scmp.ne.s32.totalorder %s127, %s129
      %p136 = scmp.eq.s32.totalorder %s24, 1
      %p137 = por %p135, %p136
      %p138 = scmp.ne.s32.totalorder %s129, %s130
      %p139 = scmp.eq.s32.totalorder %s24, 0
      %p140 = por %p138, %p139
      %p141 = scmp.ne.s32.totalorder %s129, %s130
      %p142 = scmp.eq.s32.totalorder %s25, 1
      %p143 = por %p141, %p142
      %p145 = scmp.ne.s32.totalorder %s130, %s144
      %p146 = scmp.eq.s32.totalorder %s25, 0
      %p147 = por %p145, %p146
      %s148 = smul.u32 %s27, 2
      %s149 = ssub.s32 0, %s148
      %s150 = smul.u32 %s26, %s149
      %s151 = sadd.s32 %s150, %s27
      %s152 = smul.u32 %s34, 2
      %s153 = ssub.s32 0, %s152
      %s154 = smul.u32 %s38, %s153
      %s155 = sadd.s32 %s154, %s34
      %s156 = ssub.s32 %s151, %s155
      %s157 = ssub.s32 %s26, %s38
      %s158 = sor.u32 %s156, %s157
      %p159 = scmp.eq.s32.totalorder %s158, 0
      %s161 = sadd.s32 %s160, 1
      %s162 = scalar_select %p159, %s160, %s161
      %p165 = pneg %p159
      %p166 = scmp.eq.s32.totalorder %s19, 1
      %p167 = por %p165, %p166
      %p168 = scmp.ne.s32.totalorder %s160, %s163
      %p169 = scmp.eq.s32.totalorder %s19, 0
      %p170 = por %p168, %p169
      %p171 = scmp.ne.s32.totalorder %s160, %s163
      %p172 = scmp.eq.s32.totalorder %s24, 1
      %p173 = por %p171, %p172
      %p174 = scmp.ne.s32.totalorder %s163, %s164
      %p175 = scmp.eq.s32.totalorder %s24, 0
      %p176 = por %p174, %p175
      %p177 = scmp.ne.s32.totalorder %s163, %s164
      %p178 = scmp.eq.s32.totalorder %s25, 1
      %p179 = por %p177, %p178
      %p181 = scmp.ne.s32.totalorder %s164, %s180
      %p182 = scmp.eq.s32.totalorder %s25, 0
      %p183 = por %p181, %p182
      %p184 = scmp.le.s32.totalorder 1, %s19
      %p185 = scmp.lt.s32.totalorder %s19, 3
      %p186 = pnand %p184, %p185
      %p187 = pneg %p186
      // Predicated region
      $region9: #{tpu_custom_call.1} parent=5 // pred_check
        _
      $region10: #{tpu_custom_call.1} parent=5 // pred_check_branch
        %189 = sbr.rel (%p186) target = $region12
      $region11: #{tpu_custom_call.1} parent=5 // pred_region
        %s190 = ssub.s32 %s19, 1
        // Predicated region
        $region13: #{tpu_custom_call.1} parent=11 // pred_check
          %p191 = pneg %p140
        $region14: #{tpu_custom_call.1} parent=11 // pred_check_branch
          %193 = sbr.rel (%p191) target = $region16
        $region15: #{tpu_custom_call.1} parent=11 // pred_region
          _
        $region16: #{tpu_custom_call.1} parent=11 // pred_fallthru
          _
      $region12: #{tpu_custom_call.1} parent=5 // pred_fallthru
        _
      %p194 = scmp.lt.s32.totalorder %s19, 2
      // Predicated region
      $region17: #{tpu_custom_call.1} parent=5 // pred_check
        %p195 = pneg %p194
      $region18: #{tpu_custom_call.1} parent=5 // pred_check_branch
        %197 = sbr.rel (%p195) target = $region20
      $region19: #{tpu_custom_call.1} parent=5 // pred_region
        // Predicated region
        $region21: #{tpu_custom_call.1} parent=19 // pred_check
          %p198 = pneg %p61
        $region22: #{tpu_custom_call.1} parent=19 // pred_check_branch
          %200 = sbr.rel (%p198) target = $region24
        $region23: #{tpu_custom_call.1} parent=19 // pred_region
          %s201 = sand.u32 %s51, 1
          %s202 = scalar_lea.sflag [#allocation4], %s201
          %s203 = sand.u32 %s51, 1
          %s204 = smul.addr %s203, 192
          %s205 = scalar_lea.vmem [#allocation3], %s204
          %s206 = smul.u32 %s27, 2
          %s207 = ssub.s32 0, %s206
          %s208 = smul.u32 %s26, %s207
          %s209 = sadd.s32 %s208, %s27
          %s210 = smul.u32 8, %s209
          %s212 = ssub.s32 3072, 3072
          %213 = vsyncadd %s202, %s212
          %s214 = smul.addr %s210, 3
          %s215 = smul.addr %s26, 24
          %s216 = sadd.s32 %s214, %s215
          %s217 = smul.addr %s216, 128
          %s218 = scalar_lea.hbm %s0, %s217
          %s219 = sshll.u32 %s205, 4
          %s220 = int_to_ptr.vmem [resolvable:$true] %s219
          %225 = dma.hbm_to_vmem [thread:$0]  %s218, 3072, %s220, %s202, 384, 384, 24
        $region24: #{tpu_custom_call.1} parent=19 // pred_fallthru
          _
        // Predicated region
        $region25: #{tpu_custom_call.1} parent=19 // pred_check
          %p226 = pneg %p87
        $region26: #{tpu_custom_call.1} parent=19 // pred_check_branch
          %228 = sbr.rel (%p226) target = $region28
        $region27: #{tpu_custom_call.1} parent=19 // pred_region
          %s229 = sand.u32 %s77, 1
          %s230 = scalar_lea.sflag [#allocation7], %s229
          %s231 = sand.u32 %s77, 1
          %s232 = smul.addr %s231, 192
          %s233 = scalar_lea.vmem [#allocation6], %s232
          %s235 = ssub.s32 3072, 3072
          %236 = vsyncadd %s230, %s235
          %s237 = smul.addr %s26, 48
          %s238 = smul.addr %s237, 64
          %s239 = scalar_lea.hbm %s1, %s238
          %s240 = sshll.u32 %s233, 4
          %s241 = int_to_ptr.vmem [resolvable:$true] %s240
          %246 = dma.hbm_to_vmem [thread:$0]  %s239, 3072, %s241, %s230, 192, 192, 12
        $region28: #{tpu_custom_call.1} parent=19 // pred_fallthru
          _
        // Predicated region
        $region29: #{tpu_custom_call.1} parent=19 // pred_check
          %p247 = pneg %p113
        $region30: #{tpu_custom_call.1} parent=19 // pred_check_branch
          %249 = sbr.rel (%p247) target = $region32
        $region31: #{tpu_custom_call.1} parent=19 // pred_region
          %p250 = scmp.lt.s32.totalorder %s26, 1
          %s251 = scalar_select %p250, %s26, 1
          %s252 = scalar_lea.vmem %s2, %s251
        $region32: #{tpu_custom_call.1} parent=19 // pred_fallthru
          _
      $region20: #{tpu_custom_call.1} parent=5 // pred_fallthru
        _
      %p253 = scmp.le.s32.totalorder 1, %s19
      %p254 = scmp.lt.s32.totalorder %s19, 3
      %p255 = pnand %p253, %p254
      %p256 = pneg %p255
      // Predicated region
      $region33: #{tpu_custom_call.1} parent=5 // pred_check
        _
      $region34: #{tpu_custom_call.1} parent=5 // pred_check_branch
        %258 = sbr.rel (%p255) target = $region36
      $region35: #{tpu_custom_call.1} parent=5 // pred_region
        %s259 = ssub.s32 %s19, 1
        %s260 = sand.u32 %s54, 1
        %s261 = scalar_lea.sflag [#allocation4], %s260
        %s262 = sand.u32 %s54, 1
        %s263 = smul.addr %s262, 192
        %s264 = scalar_lea.vmem [#allocation3], %s263
        // Predicated region
        $region37: #{tpu_custom_call.1} parent=35 // pred_check
          %p265 = pneg %p67
        $region38: #{tpu_custom_call.1} parent=35 // pred_check_branch
          %267 = sbr.rel (%p265) target = $region40
        $region39: #{tpu_custom_call.1} parent=35 // pred_region
          %268 = dma.done %s261, 3072
        $region40: #{tpu_custom_call.1} parent=35 // pred_fallthru
          _
        %s269 = sand.u32 %s80, 1
        %s270 = scalar_lea.sflag [#allocation7], %s269
        %s271 = sand.u32 %s80, 1
        %s272 = smul.addr %s271, 192
        %s273 = scalar_lea.vmem [#allocation6], %s272
        // Predicated region
        $region41: #{tpu_custom_call.1} parent=35 // pred_check
          %p274 = pneg %p93
        $region42: #{tpu_custom_call.1} parent=35 // pred_check_branch
          %276 = sbr.rel (%p274) target = $region44
        $region43: #{tpu_custom_call.1} parent=35 // pred_region
          %277 = dma.done %s270, 3072
        $region44: #{tpu_custom_call.1} parent=35 // pred_fallthru
          _
        %s278 = sand.u32 %s54, 1
        %s279 = scalar_lea.sflag [#allocation4], %s278
        %s280 = sand.u32 %s54, 1
        %s281 = smul.addr %s280, 192
        %s282 = scalar_lea.vmem [#allocation3], %s281
        %p283 = pneg %p67
        %p284 = pneg %p64
        %s285 = sand.u32 %s80, 1
        %s286 = scalar_lea.sflag [#allocation7], %s285
        %s287 = sand.u32 %s80, 1
        %s288 = smul.addr %s287, 192
        %s289 = scalar_lea.vmem [#allocation6], %s288
        %p290 = pneg %p93
        %p291 = pneg %p90
        %p292 = scmp.lt.s32.totalorder %s28, 1
        %s293 = scalar_select %p292, %s28, 1
        %s294 = scalar_lea.vmem %s2, %s293
        %p295 = pneg %p119
        %p296 = pneg %p116
        %p297 = pneg %p140
        %p298 = pneg %p137
        %p299 = pneg %p176
        %p300 = pneg %p173
        %s301 = sand.u32 %s163, 1
        %s302 = scalar_lea.sflag [#allocation5], %s301
        %s303 = sand.u32 %s163, 1
        %s304 = smul.addr %s303, 64
        %s305 = scalar_lea.vmem [#allocation8], %s304
        %s306 = smul.u32 %s29, 2
        %s307 = ssub.s32 0, %s306
        %s308 = smul.u32 %s28, %s307
        %s309 = sadd.s32 %s308, %s29
        %s310 = smul.u32 8, %s309
        %p311 = scmp.lt.s32.totalorder %s28, 1
        %s312 = scalar_select %p311, %s28, 1
        %s313 = scalar_lea.vmem %s2, %s312
        %s314 = smul.u32 %s29, 2
        %s315 = ssub.s32 0, %s314
        %s316 = smul.u32 %s28, %s315
        %s317 = sadd.s32 %s316, %s29
        %s318 = smul.u32 8, %s317
        %p320 = scmp.eq.s32.totalorder %s29, 0
        // Predicated region
        $region45: #{tpu_custom_call.1} parent=35 // pred_check
          %p321 = pneg %p320
        $region46: #{tpu_custom_call.1} parent=35 // pred_check_branch
          %323 = sbr.rel (%p321) target = $region48
        $region47: #{tpu_custom_call.1} parent=35 // pred_region
          %324 = vst [vmem:[#allocation2] sm:$0xff] 0.0
        $region48: #{tpu_custom_call.1} parent=35 // pred_fallthru
          _
        %v325 = vld [vmem:[%s3] sm:$0xff]
        %v326 = vld [vmem:[%s273] sm:$0xff]
        %v327 = vld [vmem:[%s273 + $0x8] sm:$0xf]
        %v328 = vld [vmem:[%s273 + $0xc] sm:$0xff]
        %v329 = vld [vmem:[%s273 + $0x14] sm:$0xf]
        %v330 = vld [vmem:[%s273 + $0x18] sm:$0xff]
        %v331 = vld [vmem:[%s273 + $0x20] sm:$0xf]
        %v332 = vld [vmem:[%s273 + $0x24] sm:$0xff]
        %v333 = vld [vmem:[%s273 + $0x2c] sm:$0xf]
        %v334 = vld [vmem:[%s273 + $0x30] sm:$0xff]
        %v335 = vld [vmem:[%s273 + $0x38] sm:$0xf]
        %v336 = vld [vmem:[%s273 + $0x3c] sm:$0xff]
        %v337 = vld [vmem:[%s273 + $0x44] sm:$0xf]
        %v338 = vld [vmem:[%s273 + $0x48] sm:$0xff]
        %v339 = vld [vmem:[%s273 + $0x50] sm:$0xf]
        %v340 = vld [vmem:[%s273 + $0x54] sm:$0xff]
        %v341 = vld [vmem:[%s273 + $0x5c] sm:$0xf]
        %v342 = vld [vmem:[%s273 + $0x60] sm:$0xff]
        %v343 = vld [vmem:[%s273 + $0x68] sm:$0xf]
        %v344 = vld [vmem:[%s273 + $0x6c] sm:$0xff]
        %v345 = vld [vmem:[%s273 + $0x74] sm:$0xf]
        %v346 = vld [vmem:[%s273 + $0x78] sm:$0xff]
        %v347 = vld [vmem:[%s273 + $0x80] sm:$0xf]
        %v348 = vld [vmem:[%s273 + $0x84] sm:$0xff]
        %v349 = vld [vmem:[%s273 + $0x8c] sm:$0xf]
        %v350 = vld [vmem:[%s273 + $0x90] sm:$0xff]
        %v351 = vld [vmem:[%s273 + $0x98] sm:$0xf]
        %v352 = vld [vmem:[%s273 + $0x9c] sm:$0xff]
        %v353 = vld [vmem:[%s273 + $0xa4] sm:$0xf]
        %v354 = vld [vmem:[%s273 + $0xa8] sm:$0xff]
        %v355 = vld [vmem:[%s273 + $0xb0] sm:$0xf]
        %v356 = vld [vmem:[%s273 + $0xb4] sm:$0xff]
        %v357 = vld [vmem:[%s273 + $0xbc] sm:$0xf]
        %v358 = vld [vmem:[%s313] sm:$0x1]
        %p359 = scmp.eq.s32.totalorder %s28, 0
        // Predicated region
        $region49: #{tpu_custom_call.1} parent=35 // pred_check
          %p360 = pneg %p359
        $region50: #{tpu_custom_call.1} parent=35 // pred_check_branch
          %362 = sbr.rel (%p360) target = $region52
        $region51: #{tpu_custom_call.1} parent=35 // pred_region
          %s363 = smul.u32 %s29, 8
          %v364 = vld [vmem:[#allocation2] sm:$0xff]
          %v365 = vld [vmem:[%s264] sm:$0xff]
          %v366 = vld [vmem:[%s264 + $0x8] sm:$0xff]
          %v367 = vld [vmem:[%s264 + $0x10] sm:$0xff]
          %v368 = vpack.c.bf16 %v364, %v364
          %v401 = vunpack.c.l.b16 %v326
          %v402 = vunpack.c.h.b16 %v326
          %v403 = vunpack.c.l.b16 %v327
          %v404 = vunpack.c.l.b16 %v328
          %v405 = vunpack.c.h.b16 %v328
          %v406 = vunpack.c.l.b16 %v329
          %v407 = vunpack.c.l.b16 %v330
          %v408 = vunpack.c.h.b16 %v330
          %v409 = vunpack.c.l.b16 %v331
          %v410 = vunpack.c.l.b16 %v332
          %v411 = vunpack.c.h.b16 %v332
          %v412 = vunpack.c.l.b16 %v333
          %v413 = vunpack.c.l.b16 %v334
          %v414 = vunpack.c.h.b16 %v334
          %v415 = vunpack.c.l.b16 %v335
          %v416 = vunpack.c.l.b16 %v336
          %v417 = vunpack.c.h.b16 %v336
          %v418 = vunpack.c.l.b16 %v337
          %v419 = vunpack.c.l.b16 %v338
          %v420 = vunpack.c.h.b16 %v338
          %v421 = vunpack.c.l.b16 %v339
          %v422 = vunpack.c.l.b16 %v340
          %v423 = vunpack.c.h.b16 %v340
          %v424 = vunpack.c.l.b16 %v341
          %v425 = vunpack.c.l.b16 %v342
          %v426 = vunpack.c.h.b16 %v342
          %v427 = vunpack.c.l.b16 %v343
          %v428 = vunpack.c.l.b16 %v344
          %v429 = vunpack.c.h.b16 %v344
          %v430 = vunpack.c.l.b16 %v345
          %v431 = vunpack.c.l.b16 %v346
          %v432 = vunpack.c.h.b16 %v346
          %v433 = vunpack.c.l.b16 %v347
          %v434 = vunpack.c.l.b16 %v348
          %v435 = vunpack.c.h.b16 %v348
          %v436 = vunpack.c.l.b16 %v349
          %v437 = vunpack.c.l.b16 %v350
          %v438 = vunpack.c.h.b16 %v350
          %v439 = vunpack.c.l.b16 %v351
          %v440 = vunpack.c.l.b16 %v352
          %v441 = vunpack.c.h.b16 %v352
          %v442 = vunpack.c.l.b16 %v353
          %v443 = vunpack.c.l.b16 %v354
          %v444 = vunpack.c.h.b16 %v354
          %v445 = vunpack.c.l.b16 %v355
          %v446 = vunpack.c.l.b16 %v356
          %v447 = vunpack.c.h.b16 %v356
          %v448 = vunpack.c.l.b16 %v357
          %v449 = vpack.c.b16 %v404, %v401
          %v450 = vpack.c.b16 %v405, %v402
          %v451 = vpack.c.b16 %v406, %v403
          %v452 = vpack.c.b16 %v410, %v407
          %v453 = vpack.c.b16 %v411, %v408
          %v454 = vpack.c.b16 %v412, %v409
          %v455 = vpack.c.b16 %v416, %v413
          %v456 = vpack.c.b16 %v417, %v414
          %v457 = vpack.c.b16 %v418, %v415
          %v458 = vpack.c.b16 %v422, %v419
          %v459 = vpack.c.b16 %v423, %v420
          %v460 = vpack.c.b16 %v424, %v421
          %v461 = vpack.c.b16 %v428, %v425
          %v462 = vpack.c.b16 %v429, %v426
          %v463 = vpack.c.b16 %v430, %v427
          %v464 = vpack.c.b16 %v434, %v431
          %v465 = vpack.c.b16 %v435, %v432
          %v466 = vpack.c.b16 %v436, %v433
          %v467 = vpack.c.b16 %v440, %v437
          %v468 = vpack.c.b16 %v441, %v438
          %v469 = vpack.c.b16 %v442, %v439
          %v470 = vpack.c.b16 %v446, %v443
          %v471 = vpack.c.b16 %v447, %v444
          %v472 = vpack.c.b16 %v448, %v445
          %497 = vmatprep.subr.bf16.mxu0 %v450
          %498 = vmatpush1.bf16.msra.mxu0 %v449
          %499 = vmatprep.subr.bf16.mxu0 %v453
          %500 = vmatpush1.bf16.msra.mxu0 %v452
          %501 = vmatprep.subr.bf16.mxu0 %v456
          %502 = vmatpush1.bf16.msra.mxu0 %v455
          %503 = vmatprep.subr.bf16.mxu0 %v459
          %504 = vmatpush1.bf16.msra.mxu0 %v458
          %505 = vmatprep.subr.bf16.mxu0 %v462
          %506 = vmatpush1.bf16.msra.mxu0 %v461
          %507 = vmatprep.subr.bf16.mxu0 %v465
          %508 = vmatpush1.bf16.msra.mxu0 %v464
          %509 = vmatprep.subr.bf16.mxu0 %v468
          %510 = vmatpush1.bf16.msra.mxu0 %v467
          %511 = vmatprep.subr.bf16.mxu0 %v471
          %512 = vmatpush1.bf16.msra.mxu0 %v470
          %513 = vmatprep.subr.bf16.mxu0 0
          %514 = vmatpush1.bf16.msra.mxu0 0
          %515 = vmatprep.subr.bf16.mxu0 0
          %516 = vmatpush1.bf16.msra.mxu0 0
          %517 = vmatprep.subr.bf16.mxu0 0
          %518 = vmatpush1.bf16.msra.mxu0 0
          %519 = vmatprep.subr.bf16.mxu0 0
          %520 = vmatpush1.bf16.msra.mxu0 0
          %521 = vmatprep.subr.bf16.mxu0 0
          %522 = vmatpush1.bf16.msra.mxu0 0
          %523 = vmatprep.subr.bf16.mxu0 0
          %524 = vmatpush1.bf16.msra.mxu0 0
          %525 = vmatprep.subr.bf16.mxu0 0
          %526 = vmatpush1.bf16.msra.mxu0 0
          %527 = vmatprep.subr.bf16.mxu0 0
          %528 = vmatpush1.bf16.msra.mxu0 0
          %529 = vmatprep.mubr.bf16.mxu0 0
          %530 = vmatmul.mubr.bf16.gmra.mrb[0].mxu0 %v368
          %v531 = vpop.f32.mrb[0].mxu0
          %v532 = vadd.f32 0.0, %v531
          %v533 = vpop.f32.mrb[0].mxu0
          %v534 = vadd.f32 0.0, %v533
          %v535 = vpop.f32.mrb[0].mxu0
          %v536 = vpop.f32.mrb[0].mxu0
          %537 = vdwg.mxu0
          %538 = vmatprep.subr.bf16.mxu0 0
          %539 = vmatpush1.bf16.msra.mxu0 %v451
          %540 = vmatprep.subr.bf16.mxu0 0
          %541 = vmatpush1.bf16.msra.mxu0 %v454
          %542 = vmatprep.subr.bf16.mxu0 0
          %543 = vmatpush1.bf16.msra.mxu0 %v457
          %544 = vmatprep.subr.bf16.mxu0 0
          %545 = vmatpush1.bf16.msra.mxu0 %v460
          %546 = vmatprep.subr.bf16.mxu0 0
          %547 = vmatpush1.bf16.msra.mxu0 %v463
          %548 = vmatprep.subr.bf16.mxu0 0
          %549 = vmatpush1.bf16.msra.mxu0 %v466
          %550 = vmatprep.subr.bf16.mxu0 0
          %551 = vmatpush1.bf16.msra.mxu0 %v469
          %552 = vmatprep.subr.bf16.mxu0 0
          %553 = vmatpush1.bf16.msra.mxu0 %v472
          %554 = vmatprep.subr.bf16.mxu0 0
          %555 = vmatpush1.bf16.msra.mxu0 0
          %556 = vmatprep.subr.bf16.mxu0 0
          %557 = vmatpush1.bf16.msra.mxu0 0
          %558 = vmatprep.subr.bf16.mxu0 0
          %559 = vmatpush1.bf16.msra.mxu0 0
          %560 = vmatprep.subr.bf16.mxu0 0
          %561 = vmatpush1.bf16.msra.mxu0 0
          %562 = vmatprep.subr.bf16.mxu0 0
          %563 = vmatpush1.bf16.msra.mxu0 0
          %564 = vmatprep.subr.bf16.mxu0 0
          %565 = vmatpush1.bf16.msra.mxu0 0
          %566 = vmatprep.subr.bf16.mxu0 0
          %567 = vmatpush1.bf16.msra.mxu0 0
          %568 = vmatprep.subr.bf16.mxu0 0
          %569 = vmatpush1.bf16.msra.mxu0 0
          %570 = vmatprep.mubr.bf16.mxu0 0
          %571 = vmatmul.mubr.bf16.gmra.mrb[0].mxu0 %v368
          %v572 = vpop.f32.mrb[0].mxu0
          %v573 = vadd.f32 0.0, %v572
          %v574 = vpop.f32.mrb[0].mxu0
          %v575 = vpop.f32.mrb[0].mxu0
          %v576 = vpop.f32.mrb[0].mxu0
          %577 = vdwg.mxu0
          %v578 = vadd.f32 %v365, %v532
          %v579 = vxor.u32 %v578, 2147483648
          %v580 = vmul.f32 %v579, 1.442695
          %v581 = vpow.pop %v580
          %v582 = vadd.f32 %v581, 1.0
          %v583 = vrcp.pop %v582
          %v584 = vmul.f32 1.0, %v583
          %v585 = vadd.f32 %v366, %v534
          %v586 = vxor.u32 %v585, 2147483648
          %v587 = vmul.f32 %v586, 1.442695
          %v588 = vpow.pop %v587
          %v589 = vadd.f32 %v588, 1.0
          %v590 = vrcp.pop %v589
          %v591 = vmul.f32 1.0, %v590
          %v593 = vlaneseq
          %v594 = vshrl.u32 %v593, 7
          %v595 = vsub.s32 0, %v594
          %v596 = vrot.slane %v358, %v595
          %v598 = vadd.f32 %v573, %v596
          %v599 = vmul.f32 %v584, %v598
          %v600 = vadd.f32 %v367, %v599
          %v601 = vtanh.pop %v600
          %v602 = vsub.f32 1.0, %v591
          %v603 = vmul.f32 %v602, %v601
          %v604 = vmul.f32 %v591, %v364
          %v605 = vadd.f32 %v603, %v604
          %v606 = vstv %s363
          %vm607 = vcmp.lt.s32.totalorder %v606, %v325
          %v608 = vsel %vm607, 1, 0
          %609 = vset.pattern.permute.xlu0 0
          %610 = vperm.xlu0 %609, %v608
          %v611 = vpop.permute.xlu0 %610
          %vm612 = vcmp.eq.s32.totalorder %v611, 1
          %v613 = vsel %vm612, %v605, %v364
          %v614 = vsel %vm612, %v605, 0.0
          %615 = vst [vmem:[%s305] sm:$0xff] %v614
          %s616 = sadd.s32 %s363, 1
          %s617 = scalar_lea.vmem %s264, 24 [#allocation3]
          %v618 = vld [vmem:[%s617] sm:$0xff]
          %v619 = vld [vmem:[%s617 + $0x8] sm:$0xff]
          %v620 = vld [vmem:[%s617 + $0x10] sm:$0xff]
          %v621 = vpack.c.bf16 %v613, %v613
          %622 = vmatprep.subr.bf16.mxu0 %v450
          %623 = vmatpush1.bf16.msra.mxu0 %v449
          %624 = vmatprep.subr.bf16.mxu0 %v453
          %625 = vmatpush1.bf16.msra.mxu0 %v452
          %626 = vmatprep.subr.bf16.mxu0 %v456
          %627 = vmatpush1.bf16.msra.mxu0 %v455
          %628 = vmatprep.subr.bf16.mxu0 %v459
          %629 = vmatpush1.bf16.msra.mxu0 %v458
          %630 = vmatprep.subr.bf16.mxu0 %v462
          %631 = vmatpush1.bf16.msra.mxu0 %v461
          %632 = vmatprep.subr.bf16.mxu0 %v465
          %633 = vmatpush1.bf16.msra.mxu0 %v464
          %634 = vmatprep.subr.bf16.mxu0 %v468
          %635 = vmatpush1.bf16.msra.mxu0 %v467
          %636 = vmatprep.subr.bf16.mxu0 %v471
          %637 = vmatpush1.bf16.msra.mxu0 %v470
          %638 = vmatprep.subr.bf16.mxu0 0
          %639 = vmatpush1.bf16.msra.mxu0 0
          %640 = vmatprep.subr.bf16.mxu0 0
          %641 = vmatpush1.bf16.msra.mxu0 0
          %642 = vmatprep.subr.bf16.mxu0 0
          %643 = vmatpush1.bf16.msra.mxu0 0
          %644 = vmatprep.subr.bf16.mxu0 0
          %645 = vmatpush1.bf16.msra.mxu0 0
          %646 = vmatprep.subr.bf16.mxu0 0
          %647 = vmatpush1.bf16.msra.mxu0 0
          %648 = vmatprep.subr.bf16.mxu0 0
          %649 = vmatpush1.bf16.msra.mxu0 0
          %650 = vmatprep.subr.bf16.mxu0 0
          %651 = vmatpush1.bf16.msra.mxu0 0
          %652 = vmatprep.subr.bf16.mxu0 0
          %653 = vmatpush1.bf16.msra.mxu0 0
          %654 = vmatprep.mubr.bf16.mxu0 0
          %655 = vmatmul.mubr.bf16.gmra.mrb[0].mxu0 %v621
          %v656 = vpop.f32.mrb[0].mxu0
          %v657 = vadd.f32 0.0, %v656
          %v658 = vpop.f32.mrb[0].mxu0
          %v659 = vadd.f32 0.0, %v658
          %v660 = vpop.f32.mrb[0].mxu0
          %v661 = vpop.f32.mrb[0].mxu0
          %662 = vdwg.mxu0
          %663 = vmatprep.subr.bf16.mxu0 0
          %664 = vmatpush1.bf16.msra.mxu0 %v451
          %665 = vmatprep.subr.bf16.mxu0 0
          %666 = vmatpush1.bf16.msra.mxu0 %v454
          %667 = vmatprep.subr.bf16.mxu0 0
          %668 = vmatpush1.bf16.msra.mxu0 %v457
          %669 = vmatprep.subr.bf16.mxu0 0
          %670 = vmatpush1.bf16.msra.mxu0 %v460
          %671 = vmatprep.subr.bf16.mxu0 0
          %672 = vmatpush1.bf16.msra.mxu0 %v463
          %673 = vmatprep.subr.bf16.mxu0 0
          %674 = vmatpush1.bf16.msra.mxu0 %v466
          %675 = vmatprep.subr.bf16.mxu0 0
          %676 = vmatpush1.bf16.msra.mxu0 %v469
          %677 = vmatprep.subr.bf16.mxu0 0
          %678 = vmatpush1.bf16.msra.mxu0 %v472
          %679 = vmatprep.subr.bf16.mxu0 0
          %680 = vmatpush1.bf16.msra.mxu0 0
          %681 = vmatprep.subr.bf16.mxu0 0
          %682 = vmatpush1.bf16.msra.mxu0 0
          %683 = vmatprep.subr.bf16.mxu0 0
          %684 = vmatpush1.bf16.msra.mxu0 0
          %685 = vmatprep.subr.bf16.mxu0 0
          %686 = vmatpush1.bf16.msra.mxu0 0
          %687 = vmatprep.subr.bf16.mxu0 0
          %688 = vmatpush1.bf16.msra.mxu0 0
          %689 = vmatprep.subr.bf16.mxu0 0
          %690 = vmatpush1.bf16.msra.mxu0 0
          %691 = vmatprep.subr.bf16.mxu0 0
          %692 = vmatpush1.bf16.msra.mxu0 0
          %693 = vmatprep.subr.bf16.mxu0 0
          %694 = vmatpush1.bf16.msra.mxu0 0
          %695 = vmatprep.mubr.bf16.mxu0 0
          %696 = vmatmul.mubr.bf16.gmra.mrb[0].mxu0 %v621
          %v697 = vpop.f32.mrb[0].mxu0
          %v698 = vadd.f32 0.0, %v697
          %v699 = vpop.f32.mrb[0].mxu0
          %v700 = vpop.f32.mrb[0].mxu0
          %v701 = vpop.f32.mrb[0].mxu0
          %702 = vdwg.mxu0
          %v703 = vadd.f32 %v618, %v657
          %v704 = vxor.u32 %v703, 2147483648
          %v705 = vmul.f32 %v704, 1.442695
          %v706 = vpow.pop %v705
          %v707 = vadd.f32 %v706, 1.0
          %v708 = vrcp.pop %v707
          %v709 = vmul.f32 1.0, %v708
          %v710 = vadd.f32 %v619, %v659
          %v711 = vxor.u32 %v710, 2147483648
          %v712 = vmul.f32 %v711, 1.442695
          %v713 = vpow.pop %v712
          %v714 = vadd.f32 %v713, 1.0
          %v715 = vrcp.pop %v714
          %v716 = vmul.f32 1.0, %v715
          %v717 = vadd.f32 %v698, %v596
          %v718 = vmul.f32 %v709, %v717
          %v719 = vadd.f32 %v620, %v718
          %v720 = vtanh.pop %v719
          %v721 = vsub.f32 1.0, %v716
          %v722 = vmul.f32 %v721, %v720
          %v723 = vmul.f32 %v716, %v613
          %v724 = vadd.f32 %v722, %v723
          %v725 = vstv %s616
          %vm726 = vcmp.lt.s32.totalorder %v725, %v325
          %v727 = vsel %vm726, 1, 0
          %728 = vset.pattern.permute.xlu0 0
          %729 = vperm.xlu0 %728, %v727
          %v730 = vpop.permute.xlu0 %729
          %vm731 = vcmp.eq.s32.totalorder %v730, 1
          %v732 = vsel %vm731, %v724, %v613
          %v733 = vsel %vm731, %v724, 0.0
          %s734 = scalar_lea.vmem %s305, 8 [#allocation8]
          %735 = vst [vmem:[%s734] sm:$0xff] %v733
          %s736 = sadd.s32 %s363, 2
          %s737 = scalar_lea.vmem %s264, 48 [#allocation3]
          %v738 = vld [vmem:[%s737] sm:$0xff]
          %v739 = vld [vmem:[%s737 + $0x8] sm:$0xff]
          %v740 = vld [vmem:[%s737 + $0x10] sm:$0xff]
          %v741 = vpack.c.bf16 %v732, %v732
          %742 = vmatprep.subr.bf16.mxu0 %v450
          %743 = vmatpush1.bf16.msra.mxu0 %v449
          %744 = vmatprep.subr.bf16.mxu0 %v453
          %745 = vmatpush1.bf16.msra.mxu0 %v452
          %746 = vmatprep.subr.bf16.mxu0 %v456
          %747 = vmatpush1.bf16.msra.mxu0 %v455
          %748 = vmatprep.subr.bf16.mxu0 %v459
          %749 = vmatpush1.bf16.msra.mxu0 %v458
          %750 = vmatprep.subr.bf16.mxu0 %v462
          %751 = vmatpush1.bf16.msra.mxu0 %v461
          %752 = vmatprep.subr.bf16.mxu0 %v465
          %753 = vmatpush1.bf16.msra.mxu0 %v464
          %754 = vmatprep.subr.bf16.mxu0 %v468
          %755 = vmatpush1.bf16.msra.mxu0 %v467
          %756 = vmatprep.subr.bf16.mxu0 %v471
          %757 = vmatpush1.bf16.msra.mxu0 %v470
          %758 = vmatprep.subr.bf16.mxu0 0
          %759 = vmatpush1.bf16.msra.mxu0 0
          %760 = vmatprep.subr.bf16.mxu0 0
          %761 = vmatpush1.bf16.msra.mxu0 0
          %762 = vmatprep.subr.bf16.mxu0 0
          %763 = vmatpush1.bf16.msra.mxu0 0
          %764 = vmatprep.subr.bf16.mxu0 0
          %765 = vmatpush1.bf16.msra.mxu0 0
          %766 = vmatprep.subr.bf16.mxu0 0
          %767 = vmatpush1.bf16.msra.mxu0 0
          %768 = vmatprep.subr.bf16.mxu0 0
          %769 = vmatpush1.bf16.msra.mxu0 0
          %770 = vmatprep.subr.bf16.mxu0 0
          %771 = vmatpush1.bf16.msra.mxu0 0
          %772 = vmatprep.subr.bf16.mxu0 0
          %773 = vmatpush1.bf16.msra.mxu0 0
          %774 = vmatprep.mubr.bf16.mxu0 0
          %775 = vmatmul.mubr.bf16.gmra.mrb[0].mxu0 %v741
          %v776 = vpop.f32.mrb[0].mxu0
          %v777 = vadd.f32 0.0, %v776
          %v778 = vpop.f32.mrb[0].mxu0
          %v779 = vadd.f32 0.0, %v778
          %v780 = vpop.f32.mrb[0].mxu0
          %v781 = vpop.f32.mrb[0].mxu0
          %782 = vdwg.mxu0
          %783 = vmatprep.subr.bf16.mxu0 0
          %784 = vmatpush1.bf16.msra.mxu0 %v451
          %785 = vmatprep.subr.bf16.mxu0 0
          %786 = vmatpush1.bf16.msra.mxu0 %v454
          %787 = vmatprep.subr.bf16.mxu0 0
          %788 = vmatpush1.bf16.msra.mxu0 %v457
          %789 = vmatprep.subr.bf16.mxu0 0
          %790 = vmatpush1.bf16.msra.mxu0 %v460
          %791 = vmatprep.subr.bf16.mxu0 0
          %792 = vmatpush1.bf16.msra.mxu0 %v463
          %793 = vmatprep.subr.bf16.mxu0 0
          %794 = vmatpush1.bf16.msra.mxu0 %v466
          %795 = vmatprep.subr.bf16.mxu0 0
          %796 = vmatpush1.bf16.msra.mxu0 %v469
          %797 = vmatprep.subr.bf16.mxu0 0
          %798 = vmatpush1.bf16.msra.mxu0 %v472
          %799 = vmatprep.subr.bf16.mxu0 0
          %800 = vmatpush1.bf16.msra.mxu0 0
          %801 = vmatprep.subr.bf16.mxu0 0
          %802 = vmatpush1.bf16.msra.mxu0 0
          %803 = vmatprep.subr.bf16.mxu0 0
          %804 = vmatpush1.bf16.msra.mxu0 0
          %805 = vmatprep.subr.bf16.mxu0 0
          %806 = vmatpush1.bf16.msra.mxu0 0
          %807 = vmatprep.subr.bf16.mxu0 0
          %808 = vmatpush1.bf16.msra.mxu0 0
          %809 = vmatprep.subr.bf16.mxu0 0
          %810 = vmatpush1.bf16.msra.mxu0 0
          %811 = vmatprep.subr.bf16.mxu0 0
          %812 = vmatpush1.bf16.msra.mxu0 0
          %813 = vmatprep.subr.bf16.mxu0 0
          %814 = vmatpush1.bf16.msra.mxu0 0
          %815 = vmatprep.mubr.bf16.mxu0 0
          %816 = vmatmul.mubr.bf16.gmra.mrb[0].mxu0 %v741
          %v817 = vpop.f32.mrb[0].mxu0
          %v818 = vadd.f32 0.0, %v817
          %v819 = vpop.f32.mrb[0].mxu0
          %v820 = vpop.f32.mrb[0].mxu0
          %v821 = vpop.f32.mrb[0].mxu0
          %822 = vdwg.mxu0
          %v823 = vadd.f32 %v738, %v777
          %v824 = vxor.u32 %v823, 2147483648
          %v825 = vmul.f32 %v824, 1.442695
          %v826 = vpow.pop %v825
          %v827 = vadd.f32 %v826, 1.0
          %v828 = vrcp.pop %v827
          %v829 = vmul.f32 1.0, %v828
          %v830 = vadd.f32 %v739, %v779
          %v831 = vxor.u32 %v830, 2147483648
          %v832 = vmul.f32 %v831, 1.442695
          %v833 = vpow.pop %v832
          %v834 = vadd.f32 %v833, 1.0
          %v835 = vrcp.pop %v834
          %v836 = vmul.f32 1.0, %v835
          %v837 = vadd.f32 %v818, %v596
          %v838 = vmul.f32 %v829, %v837
          %v839 = vadd.f32 %v740, %v838
          %v840 = vtanh.pop %v839
          %v841 = vsub.f32 1.0, %v836
          %v842 = vmul.f32 %v841, %v840
          %v843 = vmul.f32 %v836, %v732
          %v844 = vadd.f32 %v842, %v843
          %v845 = vstv %s736
          %vm846 = vcmp.lt.s32.totalorder %v845, %v325
          %v847 = vsel %vm846, 1, 0
          %848 = vset.pattern.permute.xlu0 0
          %849 = vperm.xlu0 %848, %v847
          %v850 = vpop.permute.xlu0 %849
          %vm851 = vcmp.eq.s32.totalorder %v850, 1
          %v852 = vsel %vm851, %v844, %v732
          %v853 = vsel %vm851, %v844, 0.0
          %s854 = scalar_lea.vmem %s305, 16 [#allocation8]
          %855 = vst [vmem:[%s854] sm:$0xff] %v853
          %s856 = sadd.s32 %s363, 3
          %s857 = scalar_lea.vmem %s264, 72 [#allocation3]
          %v858 = vld [vmem:[%s857] sm:$0xff]
          %v859 = vld [vmem:[%s857 + $0x8] sm:$0xff]
          %v860 = vld [vmem:[%s857 + $0x10] sm:$0xff]
          %v861 = vpack.c.bf16 %v852, %v852
          %862 = vmatprep.subr.bf16.mxu0 %v450
          %863 = vmatpush1.bf16.msra.mxu0 %v449
          %864 = vmatprep.subr.bf16.mxu0 %v453
          %865 = vmatpush1.bf16.msra.mxu0 %v452
          %866 = vmatprep.subr.bf16.mxu0 %v456
          %867 = vmatpush1.bf16.msra.mxu0 %v455
          %868 = vmatprep.subr.bf16.mxu0 %v459
          %869 = vmatpush1.bf16.msra.mxu0 %v458
          %870 = vmatprep.subr.bf16.mxu0 %v462
          %871 = vmatpush1.bf16.msra.mxu0 %v461
          %872 = vmatprep.subr.bf16.mxu0 %v465
          %873 = vmatpush1.bf16.msra.mxu0 %v464
          %874 = vmatprep.subr.bf16.mxu0 %v468
          %875 = vmatpush1.bf16.msra.mxu0 %v467
          %876 = vmatprep.subr.bf16.mxu0 %v471
          %877 = vmatpush1.bf16.msra.mxu0 %v470
          %878 = vmatprep.subr.bf16.mxu0 0
          %879 = vmatpush1.bf16.msra.mxu0 0
          %880 = vmatprep.subr.bf16.mxu0 0
          %881 = vmatpush1.bf16.msra.mxu0 0
          %882 = vmatprep.subr.bf16.mxu0 0
          %883 = vmatpush1.bf16.msra.mxu0 0
          %884 = vmatprep.subr.bf16.mxu0 0
          %885 = vmatpush1.bf16.msra.mxu0 0
          %886 = vmatprep.subr.bf16.mxu0 0
          %887 = vmatpush1.bf16.msra.mxu0 0
          %888 = vmatprep.subr.bf16.mxu0 0
          %889 = vmatpush1.bf16.msra.mxu0 0
          %890 = vmatprep.subr.bf16.mxu0 0
          %891 = vmatpush1.bf16.msra.mxu0 0
          %892 = vmatprep.subr.bf16.mxu0 0
          %893 = vmatpush1.bf16.msra.mxu0 0
          %894 = vmatprep.mubr.bf16.mxu0 0
          %895 = vmatmul.mubr.bf16.gmra.mrb[0].mxu0 %v861
          %v896 = vpop.f32.mrb[0].mxu0
          %v897 = vadd.f32 0.0, %v896
          %v898 = vpop.f32.mrb[0].mxu0
          %v899 = vadd.f32 0.0, %v898
          %v900 = vpop.f32.mrb[0].mxu0
          %v901 = vpop.f32.mrb[0].mxu0
          %902 = vdwg.mxu0
          %903 = vmatprep.subr.bf16.mxu0 0
          %904 = vmatpush1.bf16.msra.mxu0 %v451
          %905 = vmatprep.subr.bf16.mxu0 0
          %906 = vmatpush1.bf16.msra.mxu0 %v454
          %907 = vmatprep.subr.bf16.mxu0 0
          %908 = vmatpush1.bf16.msra.mxu0 %v457
          %909 = vmatprep.subr.bf16.mxu0 0
          %910 = vmatpush1.bf16.msra.mxu0 %v460
          %911 = vmatprep.subr.bf16.mxu0 0
          %912 = vmatpush1.bf16.msra.mxu0 %v463
          %913 = vmatprep.subr.bf16.mxu0 0
          %914 = vmatpush1.bf16.msra.mxu0 %v466
          %915 = vmatprep.subr.bf16.mxu0 0
          %916 = vmatpush1.bf16.msra.mxu0 %v469
          %917 = vmatprep.subr.bf16.mxu0 0
          %918 = vmatpush1.bf16.msra.mxu0 %v472
          %919 = vmatprep.subr.bf16.mxu0 0
          %920 = vmatpush1.bf16.msra.mxu0 0
          %921 = vmatprep.subr.bf16.mxu0 0
          %922 = vmatpush1.bf16.msra.mxu0 0
          %923 = vmatprep.subr.bf16.mxu0 0
          %924 = vmatpush1.bf16.msra.mxu0 0
          %925 = vmatprep.subr.bf16.mxu0 0
          %926 = vmatpush1.bf16.msra.mxu0 0
          %927 = vmatprep.subr.bf16.mxu0 0
          %928 = vmatpush1.bf16.msra.mxu0 0
          %929 = vmatprep.subr.bf16.mxu0 0
          %930 = vmatpush1.bf16.msra.mxu0 0
          %931 = vmatprep.subr.bf16.mxu0 0
          %932 = vmatpush1.bf16.msra.mxu0 0
          %933 = vmatprep.subr.bf16.mxu0 0
          %934 = vmatpush1.bf16.msra.mxu0 0
          %935 = vmatprep.mubr.bf16.mxu0 0
          %936 = vmatmul.mubr.bf16.gmra.mrb[0].mxu0 %v861
          %v937 = vpop.f32.mrb[0].mxu0
          %v938 = vadd.f32 0.0, %v937
          %v939 = vpop.f32.mrb[0].mxu0
          %v940 = vpop.f32.mrb[0].mxu0
          %v941 = vpop.f32.mrb[0].mxu0
          %942 = vdwg.mxu0
          %v943 = vadd.f32 %v858, %v897
          %v944 = vxor.u32 %v943, 2147483648
          %v945 = vmul.f32 %v944, 1.442695
          %v946 = vpow.pop %v945
          %v947 = vadd.f32 %v946, 1.0
          %v948 = vrcp.pop %v947
          %v949 = vmul.f32 1.0, %v948
          %v950 = vadd.f32 %v859, %v899
          %v951 = vxor.u32 %v950, 2147483648
          %v952 = vmul.f32 %v951, 1.442695
          %v953 = vpow.pop %v952
          %v954 = vadd.f32 %v953, 1.0
          %v955 = vrcp.pop %v954
          %v956 = vmul.f32 1.0, %v955
          %v957 = vadd.f32 %v938, %v596
          %v958 = vmul.f32 %v949, %v957
          %v959 = vadd.f32 %v860, %v958
          %v960 = vtanh.pop %v959
          %v961 = vsub.f32 1.0, %v956
          %v962 = vmul.f32 %v961, %v960
          %v963 = vmul.f32 %v956, %v852
          %v964 = vadd.f32 %v962, %v963
          %v965 = vstv %s856
          %vm966 = vcmp.lt.s32.totalorder %v965, %v325
          %v967 = vsel %vm966, 1, 0
          %968 = vset.pattern.permute.xlu0 0
          %969 = vperm.xlu0 %968, %v967
          %v970 = vpop.permute.xlu0 %969
          %vm971 = vcmp.eq.s32.totalorder %v970, 1
          %v972 = vsel %vm971, %v964, %v852
          %v973 = vsel %vm971, %v964, 0.0
          %s974 = scalar_lea.vmem %s305, 24 [#allocation8]
          %975 = vst [vmem:[%s974] sm:$0xff] %v973
          %s976 = sadd.s32 %s363, 4
          %s977 = scalar_lea.vmem %s264, 96 [#allocation3]
          %v978 = vld [vmem:[%s977] sm:$0xff]
          %v979 = vld [vmem:[%s977 + $0x8] sm:$0xff]
          %v980 = vld [vmem:[%s977 + $0x10] sm:$0xff]
          %v981 = vpack.c.bf16 %v972, %v972
          %982 = vmatprep.subr.bf16.mxu0 %v450
          %983 = vmatpush1.bf16.msra.mxu0 %v449
          %984 = vmatprep.subr.bf16.mxu0 %v453
          %985 = vmatpush1.bf16.msra.mxu0 %v452
          %986 = vmatprep.subr.bf16.mxu0 %v456
          %987 = vmatpush1.bf16.msra.mxu0 %v455
          %988 = vmatprep.subr.bf16.mxu0 %v459
          %989 = vmatpush1.bf16.msra.mxu0 %v458
          %990 = vmatprep.subr.bf16.mxu0 %v462
          %991 = vmatpush1.bf16.msra.mxu0 %v461
          %992 = vmatprep.subr.bf16.mxu0 %v465
          %993 = vmatpush1.bf16.msra.mxu0 %v464
          %994 = vmatprep.subr.bf16.mxu0 %v468
          %995 = vmatpush1.bf16.msra.mxu0 %v467
          %996 = vmatprep.subr.bf16.mxu0 %v471
          %997 = vmatpush1.bf16.msra.mxu0 %v470
          %998 = vmatprep.subr.bf16.mxu0 0
          %999 = vmatpush1.bf16.msra.mxu0 0
          %1000 = vmatprep.subr.bf16.mxu0 0
          %1001 = vmatpush1.bf16.msra.mxu0 0
          %1002 = vmatprep.subr.bf16.mxu0 0
          %1003 = vmatpush1.bf16.msra.mxu0 0
          %1004 = vmatprep.subr.bf16.mxu0 0
          %1005 = vmatpush1.bf16.msra.mxu0 0
          %1006 = vmatprep.subr.bf16.mxu0 0
          %1007 = vmatpush1.bf16.msra.mxu0 0
          %1008 = vmatprep.subr.bf16.mxu0 0
          %1009 = vmatpush1.bf16.msra.mxu0 0
          %1010 = vmatprep.subr.bf16.mxu0 0
          %1011 = vmatpush1.bf16.msra.mxu0 0
          %1012 = vmatprep.subr.bf16.mxu0 0
          %1013 = vmatpush1.bf16.msra.mxu0 0
          %1014 = vmatprep.mubr.bf16.mxu0 0
          %1015 = vmatmul.mubr.bf16.gmra.mrb[0].mxu0 %v981
          %v1016 = vpop.f32.mrb[0].mxu0
          %v1017 = vadd.f32 0.0, %v1016
          %v1018 = vpop.f32.mrb[0].mxu0
          %v1019 = vadd.f32 0.0, %v1018
          %v1020 = vpop.f32.mrb[0].mxu0
          %v1021 = vpop.f32.mrb[0].mxu0
          %1022 = vdwg.mxu0
          %1023 = vmatprep.subr.bf16.mxu0 0
          %1024 = vmatpush1.bf16.msra.mxu0 %v451
          %1025 = vmatprep.subr.bf16.mxu0 0
          %1026 = vmatpush1.bf16.msra.mxu0 %v454
          %1027 = vmatprep.subr.bf16.mxu0 0
          %1028 = vmatpush1.bf16.msra.mxu0 %v457
          %1029 = vmatprep.subr.bf16.mxu0 0
          %1030 = vmatpush1.bf16.msra.mxu0 %v460
          %1031 = vmatprep.subr.bf16.mxu0 0
          %1032 = vmatpush1.bf16.msra.mxu0 %v463
          %1033 = vmatprep.subr.bf16.mxu0 0
          %1034 = vmatpush1.bf16.msra.mxu0 %v466
          %1035 = vmatprep.subr.bf16.mxu0 0
          %1036 = vmatpush1.bf16.msra.mxu0 %v469
          %1037 = vmatprep.subr.bf16.mxu0 0
          %1038 = vmatpush1.bf16.msra.mxu0 %v472
          %1039 = vmatprep.subr.bf16.mxu0 0
          %1040 = vmatpush1.bf16.msra.mxu0 0
          %1041 = vmatprep.subr.bf16.mxu0 0
          %1042 = vmatpush1.bf16.msra.mxu0 0
          %1043 = vmatprep.subr.bf16.mxu0 0
          %1044 = vmatpush1.bf16.msra.mxu0 0
          %1045 = vmatprep.subr.bf16.mxu0 0
          %1046 = vmatpush1.bf16.msra.mxu0 0
          %1047 = vmatprep.subr.bf16.mxu0 0
          %1048 = vmatpush1.bf16.msra.mxu0 0
          %1049 = vmatprep.subr.bf16.mxu0 0
          %1050 = vmatpush1.bf16.msra.mxu0 0
          %1051 = vmatprep.subr.bf16.mxu0 0
          %1052 = vmatpush1.bf16.msra.mxu0 0
          %1053 = vmatprep.subr.bf16.mxu0 0
          %1054 = vmatpush1.bf16.msra.mxu0 0
          %1055 = vmatprep.mubr.bf16.mxu0 0
          %1056 = vmatmul.mubr.bf16.gmra.mrb[0].mxu0 %v981
          %v1057 = vpop.f32.mrb[0].mxu0
          %v1058 = vadd.f32 0.0, %v1057
          %v1059 = vpop.f32.mrb[0].mxu0
          %v1060 = vpop.f32.mrb[0].mxu0
          %v1061 = vpop.f32.mrb[0].mxu0
          %1062 = vdwg.mxu0
          %v1063 = vadd.f32 %v978, %v1017
          %v1064 = vxor.u32 %v1063, 2147483648
          %v1065 = vmul.f32 %v1064, 1.442695
          %v1066 = vpow.pop %v1065
          %v1067 = vadd.f32 %v1066, 1.0
          %v1068 = vrcp.pop %v1067
          %v1069 = vmul.f32 1.0, %v1068
          %v1070 = vadd.f32 %v979, %v1019
          %v1071 = vxor.u32 %v1070, 2147483648
          %v1072 = vmul.f32 %v1071, 1.442695
          %v1073 = vpow.pop %v1072
          %v1074 = vadd.f32 %v1073, 1.0
          %v1075 = vrcp.pop %v1074
          %v1076 = vmul.f32 1.0, %v1075
          %v1077 = vadd.f32 %v1058, %v596
          %v1078 = vmul.f32 %v1069, %v1077
          %v1079 = vadd.f32 %v980, %v1078
          %v1080 = vtanh.pop %v1079
          %v1081 = vsub.f32 1.0, %v1076
          %v1082 = vmul.f32 %v1081, %v1080
          %v1083 = vmul.f32 %v1076, %v972
          %v1084 = vadd.f32 %v1082, %v1083
          %v1085 = vstv %s976
          %vm1086 = vcmp.lt.s32.totalorder %v1085, %v325
          %v1087 = vsel %vm1086, 1, 0
          %1088 = vset.pattern.permute.xlu0 0
          %1089 = vperm.xlu0 %1088, %v1087
          %v1090 = vpop.permute.xlu0 %1089
          %vm1091 = vcmp.eq.s32.totalorder %v1090, 1
          %v1092 = vsel %vm1091, %v1084, %v972
          %v1093 = vsel %vm1091, %v1084, 0.0
          %s1094 = scalar_lea.vmem %s305, 32 [#allocation8]
          %1095 = vst [vmem:[%s1094] sm:$0xff] %v1093
          %s1096 = sadd.s32 %s363, 5
          %s1097 = scalar_lea.vmem %s264, 120 [#allocation3]
          %v1098 = vld [vmem:[%s1097] sm:$0xff]
          %v1099 = vld [vmem:[%s1097 + $0x8] sm:$0xff]
          %v1100 = vld [vmem:[%s1097 + $0x10] sm:$0xff]
          %v1101 = vpack.c.bf16 %v1092, %v1092
          %1102 = vmatprep.subr.bf16.mxu0 %v450
          %1103 = vmatpush1.bf16.msra.mxu0 %v449
          %1104 = vmatprep.subr.bf16.mxu0 %v453
          %1105 = vmatpush1.bf16.msra.mxu0 %v452
          %1106 = vmatprep.subr.bf16.mxu0 %v456
          %1107 = vmatpush1.bf16.msra.mxu0 %v455
          %1108 = vmatprep.subr.bf16.mxu0 %v459
          %1109 = vmatpush1.bf16.msra.mxu0 %v458
          %1110 = vmatprep.subr.bf16.mxu0 %v462
          %1111 = vmatpush1.bf16.msra.mxu0 %v461
          %1112 = vmatprep.subr.bf16.mxu0 %v465
          %1113 = vmatpush1.bf16.msra.mxu0 %v464
          %1114 = vmatprep.subr.bf16.mxu0 %v468
          %1115 = vmatpush1.bf16.msra.mxu0 %v467
          %1116 = vmatprep.subr.bf16.mxu0 %v471
          %1117 = vmatpush1.bf16.msra.mxu0 %v470
          %1118 = vmatprep.subr.bf16.mxu0 0
          %1119 = vmatpush1.bf16.msra.mxu0 0
          %1120 = vmatprep.subr.bf16.mxu0 0
          %1121 = vmatpush1.bf16.msra.mxu0 0
          %1122 = vmatprep.subr.bf16.mxu0 0
          %1123 = vmatpush1.bf16.msra.mxu0 0
          %1124 = vmatprep.subr.bf16.mxu0 0
          %1125 = vmatpush1.bf16.msra.mxu0 0
          %1126 = vmatprep.subr.bf16.mxu0 0
          %1127 = vmatpush1.bf16.msra.mxu0 0
          %1128 = vmatprep.subr.bf16.mxu0 0
          %1129 = vmatpush1.bf16.msra.mxu0 0
          %1130 = vmatprep.subr.bf16.mxu0 0
          %1131 = vmatpush1.bf16.msra.mxu0 0
          %1132 = vmatprep.subr.bf16.mxu0 0
          %1133 = vmatpush1.bf16.msra.mxu0 0
          %1134 = vmatprep.mubr.bf16.mxu0 0
          %1135 = vmatmul.mubr.bf16.gmra.mrb[0].mxu0 %v1101
          %v1136 = vpop.f32.mrb[0].mxu0
          %v1137 = vadd.f32 0.0, %v1136
          %v1138 = vpop.f32.mrb[0].mxu0
          %v1139 = vadd.f32 0.0, %v1138
          %v1140 = vpop.f32.mrb[0].mxu0
          %v1141 = vpop.f32.mrb[0].mxu0
          %1142 = vdwg.mxu0
          %1143 = vmatprep.subr.bf16.mxu0 0
          %1144 = vmatpush1.bf16.msra.mxu0 %v451
          %1145 = vmatprep.subr.bf16.mxu0 0
          %1146 = vmatpush1.bf16.msra.mxu0 %v454
          %1147 = vmatprep.subr.bf16.mxu0 0
          %1148 = vmatpush1.bf16.msra.mxu0 %v457
          %1149 = vmatprep.subr.bf16.mxu0 0
          %1150 = vmatpush1.bf16.msra.mxu0 %v460
          %1151 = vmatprep.subr.bf16.mxu0 0
          %1152 = vmatpush1.bf16.msra.mxu0 %v463
          %1153 = vmatprep.subr.bf16.mxu0 0
          %1154 = vmatpush1.bf16.msra.mxu0 %v466
          %1155 = vmatprep.subr.bf16.mxu0 0
          %1156 = vmatpush1.bf16.msra.mxu0 %v469
          %1157 = vmatprep.subr.bf16.mxu0 0
          %1158 = vmatpush1.bf16.msra.mxu0 %v472
          %1159 = vmatprep.subr.bf16.mxu0 0
          %1160 = vmatpush1.bf16.msra.mxu0 0
          %1161 = vmatprep.subr.bf16.mxu0 0
          %1162 = vmatpush1.bf16.msra.mxu0 0
          %1163 = vmatprep.subr.bf16.mxu0 0
          %1164 = vmatpush1.bf16.msra.mxu0 0
          %1165 = vmatprep.subr.bf16.mxu0 0
          %1166 = vmatpush1.bf16.msra.mxu0 0
          %1167 = vmatprep.subr.bf16.mxu0 0
          %1168 = vmatpush1.bf16.msra.mxu0 0
          %1169 = vmatprep.subr.bf16.mxu0 0
          %1170 = vmatpush1.bf16.msra.mxu0 0
          %1171 = vmatprep.subr.bf16.mxu0 0
          %1172 = vmatpush1.bf16.msra.mxu0 0
          %1173 = vmatprep.subr.bf16.mxu0 0
          %1174 = vmatpush1.bf16.msra.mxu0 0
          %1175 = vmatprep.mubr.bf16.mxu0 0
          %1176 = vmatmul.mubr.bf16.gmra.mrb[0].mxu0 %v1101
          %v1177 = vpop.f32.mrb[0].mxu0
          %v1178 = vadd.f32 0.0, %v1177
          %v1179 = vpop.f32.mrb[0].mxu0
          %v1180 = vpop.f32.mrb[0].mxu0
          %v1181 = vpop.f32.mrb[0].mxu0
          %1182 = vdwg.mxu0
          %v1183 = vadd.f32 %v1098, %v1137
          %v1184 = vxor.u32 %v1183, 2147483648
          %v1185 = vmul.f32 %v1184, 1.442695
          %v1186 = vpow.pop %v1185
          %v1187 = vadd.f32 %v1186, 1.0
          %v1188 = vrcp.pop %v1187
          %v1189 = vmul.f32 1.0, %v1188
          %v1190 = vadd.f32 %v1099, %v1139
          %v1191 = vxor.u32 %v1190, 2147483648
          %v1192 = vmul.f32 %v1191, 1.442695
          %v1193 = vpow.pop %v1192
          %v1194 = vadd.f32 %v1193, 1.0
          %v1195 = vrcp.pop %v1194
          %v1196 = vmul.f32 1.0, %v1195
          %v1197 = vadd.f32 %v1178, %v596
          %v1198 = vmul.f32 %v1189, %v1197
          %v1199 = vadd.f32 %v1100, %v1198
          %v1200 = vtanh.pop %v1199
          %v1201 = vsub.f32 1.0, %v1196
          %v1202 = vmul.f32 %v1201, %v1200
          %v1203 = vmul.f32 %v1196, %v1092
          %v1204 = vadd.f32 %v1202, %v1203
          %v1205 = vstv %s1096
          %vm1206 = vcmp.lt.s32.totalorder %v1205, %v325
          %v1207 = vsel %vm1206, 1, 0
          %1208 = vset.pattern.permute.xlu0 0
          %1209 = vperm.xlu0 %1208, %v1207
          %v1210 = vpop.permute.xlu0 %1209
          %vm1211 = vcmp.eq.s32.totalorder %v1210, 1
          %v1212 = vsel %vm1211, %v1204, %v1092
          %v1213 = vsel %vm1211, %v1204, 0.0
          %s1214 = scalar_lea.vmem %s305, 40 [#allocation8]
          %1215 = vst [vmem:[%s1214] sm:$0xff] %v1213
          %s1216 = sadd.s32 %s363, 6
          %s1217 = scalar_lea.vmem %s264, 144 [#allocation3]
          %v1218 = vld [vmem:[%s1217] sm:$0xff]
          %v1219 = vld [vmem:[%s1217 + $0x8] sm:$0xff]
          %v1220 = vld [vmem:[%s1217 + $0x10] sm:$0xff]
          %v1221 = vpack.c.bf16 %v1212, %v1212
          %1222 = vmatprep.subr.bf16.mxu0 %v450
          %1223 = vmatpush1.bf16.msra.mxu0 %v449
          %1224 = vmatprep.subr.bf16.mxu0 %v453
          %1225 = vmatpush1.bf16.msra.mxu0 %v452
          %1226 = vmatprep.subr.bf16.mxu0 %v456
          %1227 = vmatpush1.bf16.msra.mxu0 %v455
          %1228 = vmatprep.subr.bf16.mxu0 %v459
          %1229 = vmatpush1.bf16.msra.mxu0 %v458
          %1230 = vmatprep.subr.bf16.mxu0 %v462
          %1231 = vmatpush1.bf16.msra.mxu0 %v461
          %1232 = vmatprep.subr.bf16.mxu0 %v465
          %1233 = vmatpush1.bf16.msra.mxu0 %v464
          %1234 = vmatprep.subr.bf16.mxu0 %v468
          %1235 = vmatpush1.bf16.msra.mxu0 %v467
          %1236 = vmatprep.subr.bf16.mxu0 %v471
          %1237 = vmatpush1.bf16.msra.mxu0 %v470
          %1238 = vmatprep.subr.bf16.mxu0 0
          %1239 = vmatpush1.bf16.msra.mxu0 0
          %1240 = vmatprep.subr.bf16.mxu0 0
          %1241 = vmatpush1.bf16.msra.mxu0 0
          %1242 = vmatprep.subr.bf16.mxu0 0
          %1243 = vmatpush1.bf16.msra.mxu0 0
          %1244 = vmatprep.subr.bf16.mxu0 0
          %1245 = vmatpush1.bf16.msra.mxu0 0
          %1246 = vmatprep.subr.bf16.mxu0 0
          %1247 = vmatpush1.bf16.msra.mxu0 0
          %1248 = vmatprep.subr.bf16.mxu0 0
          %1249 = vmatpush1.bf16.msra.mxu0 0
          %1250 = vmatprep.subr.bf16.mxu0 0
          %1251 = vmatpush1.bf16.msra.mxu0 0
          %1252 = vmatprep.subr.bf16.mxu0 0
          %1253 = vmatpush1.bf16.msra.mxu0 0
          %1254 = vmatprep.mubr.bf16.mxu0 0
          %1255 = vmatmul.mubr.bf16.gmra.mrb[0].mxu0 %v1221
          %v1256 = vpop.f32.mrb[0].mxu0
          %v1257 = vadd.f32 0.0, %v1256
          %v1258 = vpop.f32.mrb[0].mxu0
          %v1259 = vadd.f32 0.0, %v1258
          %v1260 = vpop.f32.mrb[0].mxu0
          %v1261 = vpop.f32.mrb[0].mxu0
          %1262 = vdwg.mxu0
          %1263 = vmatprep.subr.bf16.mxu0 0
          %1264 = vmatpush1.bf16.msra.mxu0 %v451
          %1265 = vmatprep.subr.bf16.mxu0 0
          %1266 = vmatpush1.bf16.msra.mxu0 %v454
          %1267 = vmatprep.subr.bf16.mxu0 0
          %1268 = vmatpush1.bf16.msra.mxu0 %v457
          %1269 = vmatprep.subr.bf16.mxu0 0
          %1270 = vmatpush1.bf16.msra.mxu0 %v460
          %1271 = vmatprep.subr.bf16.mxu0 0
          %1272 = vmatpush1.bf16.msra.mxu0 %v463
          %1273 = vmatprep.subr.bf16.mxu0 0
          %1274 = vmatpush1.bf16.msra.mxu0 %v466
          %1275 = vmatprep.subr.bf16.mxu0 0
          %1276 = vmatpush1.bf16.msra.mxu0 %v469
          %1277 = vmatprep.subr.bf16.mxu0 0
          %1278 = vmatpush1.bf16.msra.mxu0 %v472
          %1279 = vmatprep.subr.bf16.mxu0 0
          %1280 = vmatpush1.bf16.msra.mxu0 0
          %1281 = vmatprep.subr.bf16.mxu0 0
          %1282 = vmatpush1.bf16.msra.mxu0 0
          %1283 = vmatprep.subr.bf16.mxu0 0
          %1284 = vmatpush1.bf16.msra.mxu0 0
          %1285 = vmatprep.subr.bf16.mxu0 0
          %1286 = vmatpush1.bf16.msra.mxu0 0
          %1287 = vmatprep.subr.bf16.mxu0 0
          %1288 = vmatpush1.bf16.msra.mxu0 0
          %1289 = vmatprep.subr.bf16.mxu0 0
          %1290 = vmatpush1.bf16.msra.mxu0 0
          %1291 = vmatprep.subr.bf16.mxu0 0
          %1292 = vmatpush1.bf16.msra.mxu0 0
          %1293 = vmatprep.subr.bf16.mxu0 0
          %1294 = vmatpush1.bf16.msra.mxu0 0
          %1295 = vmatprep.mubr.bf16.mxu0 0
          %1296 = vmatmul.mubr.bf16.gmra.mrb[0].mxu0 %v1221
          %v1297 = vpop.f32.mrb[0].mxu0
          %v1298 = vadd.f32 0.0, %v1297
          %v1299 = vpop.f32.mrb[0].mxu0
          %v1300 = vpop.f32.mrb[0].mxu0
          %v1301 = vpop.f32.mrb[0].mxu0
          %1302 = vdwg.mxu0
          %v1303 = vadd.f32 %v1218, %v1257
          %v1304 = vxor.u32 %v1303, 2147483648
          %v1305 = vmul.f32 %v1304, 1.442695
          %v1306 = vpow.pop %v1305
          %v1307 = vadd.f32 %v1306, 1.0
          %v1308 = vrcp.pop %v1307
          %v1309 = vmul.f32 1.0, %v1308
          %v1310 = vadd.f32 %v1219, %v1259
          %v1311 = vxor.u32 %v1310, 2147483648
          %v1312 = vmul.f32 %v1311, 1.442695
          %v1313 = vpow.pop %v1312
          %v1314 = vadd.f32 %v1313, 1.0
          %v1315 = vrcp.pop %v1314
          %v1316 = vmul.f32 1.0, %v1315
          %v1317 = vadd.f32 %v1298, %v596
          %v1318 = vmul.f32 %v1309, %v1317
          %v1319 = vadd.f32 %v1220, %v1318
          %v1320 = vtanh.pop %v1319
          %v1321 = vsub.f32 1.0, %v1316
          %v1322 = vmul.f32 %v1321, %v1320
          %v1323 = vmul.f32 %v1316, %v1212
          %v1324 = vadd.f32 %v1322, %v1323
          %v1325 = vstv %s1216
          %vm1326 = vcmp.lt.s32.totalorder %v1325, %v325
          %v1327 = vsel %vm1326, 1, 0
          %1328 = vset.pattern.permute.xlu0 0
          %1329 = vperm.xlu0 %1328, %v1327
          %v1330 = vpop.permute.xlu0 %1329
          %vm1331 = vcmp.eq.s32.totalorder %v1330, 1
          %v1332 = vsel %vm1331, %v1324, %v1212
          %v1333 = vsel %vm1331, %v1324, 0.0
          %s1334 = scalar_lea.vmem %s305, 48 [#allocation8]
          %1335 = vst [vmem:[%s1334] sm:$0xff] %v1333
          %s1336 = sadd.s32 %s363, 7
          %s1337 = scalar_lea.vmem %s264, 168 [#allocation3]
          %v1338 = vld [vmem:[%s1337] sm:$0xff]
          %v1339 = vld [vmem:[%s1337 + $0x8] sm:$0xff]
          %v1340 = vld [vmem:[%s1337 + $0x10] sm:$0xff]
          %v1341 = vpack.c.bf16 %v1332, %v1332
          %1342 = vmatprep.subr.bf16.mxu0 %v450
          %1343 = vmatpush1.bf16.msra.mxu0 %v449
          %1344 = vmatprep.subr.bf16.mxu0 %v453
          %1345 = vmatpush1.bf16.msra.mxu0 %v452
          %1346 = vmatprep.subr.bf16.mxu0 %v456
          %1347 = vmatpush1.bf16.msra.mxu0 %v455
          %1348 = vmatprep.subr.bf16.mxu0 %v459
          %1349 = vmatpush1.bf16.msra.mxu0 %v458
          %1350 = vmatprep.subr.bf16.mxu0 %v462
          %1351 = vmatpush1.bf16.msra.mxu0 %v461
          %1352 = vmatprep.subr.bf16.mxu0 %v465
          %1353 = vmatpush1.bf16.msra.mxu0 %v464
          %1354 = vmatprep.subr.bf16.mxu0 %v468
          %1355 = vmatpush1.bf16.msra.mxu0 %v467
          %1356 = vmatprep.subr.bf16.mxu0 %v471
          %1357 = vmatpush1.bf16.msra.mxu0 %v470
          %1358 = vmatprep.subr.bf16.mxu0 0
          %1359 = vmatpush1.bf16.msra.mxu0 0
          %1360 = vmatprep.subr.bf16.mxu0 0
          %1361 = vmatpush1.bf16.msra.mxu0 0
          %1362 = vmatprep.subr.bf16.mxu0 0
          %1363 = vmatpush1.bf16.msra.mxu0 0
          %1364 = vmatprep.subr.bf16.mxu0 0
          %1365 = vmatpush1.bf16.msra.mxu0 0
          %1366 = vmatprep.subr.bf16.mxu0 0
          %1367 = vmatpush1.bf16.msra.mxu0 0
          %1368 = vmatprep.subr.bf16.mxu0 0
          %1369 = vmatpush1.bf16.msra.mxu0 0
          %1370 = vmatprep.subr.bf16.mxu0 0
          %1371 = vmatpush1.bf16.msra.mxu0 0
          %1372 = vmatprep.subr.bf16.mxu0 0
          %1373 = vmatpush1.bf16.msra.mxu0 0
          %1374 = vmatprep.mubr.bf16.mxu0 0
          %1375 = vmatmul.mubr.bf16.gmra.mrb[0].mxu0 %v1341
          %v1376 = vpop.f32.mrb[0].mxu0
          %v1377 = vadd.f32 0.0, %v1376
          %v1378 = vpop.f32.mrb[0].mxu0
          %v1379 = vadd.f32 0.0, %v1378
          %v1380 = vpop.f32.mrb[0].mxu0
          %v1381 = vpop.f32.mrb[0].mxu0
          %1382 = vdwg.mxu0
          %1383 = vmatprep.subr.bf16.mxu0 0
          %1384 = vmatpush1.bf16.msra.mxu0 %v451
          %1385 = vmatprep.subr.bf16.mxu0 0
          %1386 = vmatpush1.bf16.msra.mxu0 %v454
          %1387 = vmatprep.subr.bf16.mxu0 0
          %1388 = vmatpush1.bf16.msra.mxu0 %v457
          %1389 = vmatprep.subr.bf16.mxu0 0
          %1390 = vmatpush1.bf16.msra.mxu0 %v460
          %1391 = vmatprep.subr.bf16.mxu0 0
          %1392 = vmatpush1.bf16.msra.mxu0 %v463
          %1393 = vmatprep.subr.bf16.mxu0 0
          %1394 = vmatpush1.bf16.msra.mxu0 %v466
          %1395 = vmatprep.subr.bf16.mxu0 0
          %1396 = vmatpush1.bf16.msra.mxu0 %v469
          %1397 = vmatprep.subr.bf16.mxu0 0
          %1398 = vmatpush1.bf16.msra.mxu0 %v472
          %1399 = vmatprep.subr.bf16.mxu0 0
          %1400 = vmatpush1.bf16.msra.mxu0 0
          %1401 = vmatprep.subr.bf16.mxu0 0
          %1402 = vmatpush1.bf16.msra.mxu0 0
          %1403 = vmatprep.subr.bf16.mxu0 0
          %1404 = vmatpush1.bf16.msra.mxu0 0
          %1405 = vmatprep.subr.bf16.mxu0 0
          %1406 = vmatpush1.bf16.msra.mxu0 0
          %1407 = vmatprep.subr.bf16.mxu0 0
          %1408 = vmatpush1.bf16.msra.mxu0 0
          %1409 = vmatprep.subr.bf16.mxu0 0
          %1410 = vmatpush1.bf16.msra.mxu0 0
          %1411 = vmatprep.subr.bf16.mxu0 0
          %1412 = vmatpush1.bf16.msra.mxu0 0
          %1413 = vmatprep.subr.bf16.mxu0 0
          %1414 = vmatpush1.bf16.msra.mxu0 0
          %1415 = vmatprep.mubr.bf16.mxu0 0
          %1416 = vmatmul.mubr.bf16.gmra.mrb[0].mxu0 %v1341
          %v1417 = vpop.f32.mrb[0].mxu0
          %v1418 = vadd.f32 0.0, %v1417
          %v1419 = vpop.f32.mrb[0].mxu0
          %v1420 = vpop.f32.mrb[0].mxu0
          %v1421 = vpop.f32.mrb[0].mxu0
          %1422 = vdwg.mxu0
          %v1423 = vadd.f32 %v1338, %v1377
          %v1424 = vxor.u32 %v1423, 2147483648
          %v1425 = vmul.f32 %v1424, 1.442695
          %v1426 = vpow.pop %v1425
          %v1427 = vadd.f32 %v1426, 1.0
          %v1428 = vrcp.pop %v1427
          %v1429 = vmul.f32 1.0, %v1428
          %v1430 = vadd.f32 %v1339, %v1379
          %v1431 = vxor.u32 %v1430, 2147483648
          %v1432 = vmul.f32 %v1431, 1.442695
          %v1433 = vpow.pop %v1432
          %v1434 = vadd.f32 %v1433, 1.0
          %v1435 = vrcp.pop %v1434
          %v1436 = vmul.f32 1.0, %v1435
          %v1437 = vadd.f32 %v1418, %v596
          %v1438 = vmul.f32 %v1429, %v1437
          %v1439 = vadd.f32 %v1340, %v1438
          %v1440 = vtanh.pop %v1439
          %v1441 = vsub.f32 1.0, %v1436
          %v1442 = vmul.f32 %v1441, %v1440
          %v1443 = vmul.f32 %v1436, %v1332
          %v1444 = vadd.f32 %v1442, %v1443
          %v1445 = vstv %s1336
          %vm1446 = vcmp.lt.s32.totalorder %v1445, %v325
          %v1447 = vsel %vm1446, 1, 0
          %1448 = vset.pattern.permute.xlu0 0
          %1449 = vperm.xlu0 %1448, %v1447
          %v1450 = vpop.permute.xlu0 %1449
          %vm1451 = vcmp.eq.s32.totalorder %v1450, 1
          %v1452 = vsel %vm1451, %v1444, %v1332
          %v1453 = vsel %vm1451, %v1444, 0.0
          %s1454 = scalar_lea.vmem %s305, 56 [#allocation8]
          %1455 = vst [vmem:[%s1454] sm:$0xff] %v1453
          %1456 = vst [vmem:[#allocation2] sm:$0xff] %v1452
        $region52: #{tpu_custom_call.1} parent=35 // pred_fallthru
          _
        %p1457 = scmp.eq.s32.totalorder %s28, 1
        // Predicated region
        $region53: #{tpu_custom_call.1} parent=35 // pred_check
          %p1458 = pneg %p1457
        $region54: #{tpu_custom_call.1} parent=35 // pred_check_branch
          %1460 = sbr.rel (%p1458) target = $region56
        $region55: #{tpu_custom_call.1} parent=35 // pred_region
          %s1461 = ssub.s32 0, %s29
          %s1462 = smul.u32 %s1461, 8
          %v1463 = vld [vmem:[#allocation2] sm:$0xff]
          %s1464 = sadd.s32 %s1462, 7
          %s1465 = scalar_lea.vmem %s264, 168 [#allocation3]
          %v1466 = vld [vmem:[%s1465] sm:$0xff]
          %v1467 = vld [vmem:[%s1465 + $0x8] sm:$0xff]
          %v1468 = vld [vmem:[%s1465 + $0x10] sm:$0xff]
          %v1469 = vpack.c.bf16 %v1463, %v1463
          %v1502 = vunpack.c.l.b16 %v326
          %v1503 = vunpack.c.h.b16 %v326
          %v1504 = vunpack.c.l.b16 %v327
          %v1505 = vunpack.c.l.b16 %v328
          %v1506 = vunpack.c.h.b16 %v328
          %v1507 = vunpack.c.l.b16 %v329
          %v1508 = vunpack.c.l.b16 %v330
          %v1509 = vunpack.c.h.b16 %v330
          %v1510 = vunpack.c.l.b16 %v331
          %v1511 = vunpack.c.l.b16 %v332
          %v1512 = vunpack.c.h.b16 %v332
          %v1513 = vunpack.c.l.b16 %v333
          %v1514 = vunpack.c.l.b16 %v334
          %v1515 = vunpack.c.h.b16 %v334
          %v1516 = vunpack.c.l.b16 %v335
          %v1517 = vunpack.c.l.b16 %v336
          %v1518 = vunpack.c.h.b16 %v336
          %v1519 = vunpack.c.l.b16 %v337
          %v1520 = vunpack.c.l.b16 %v338
          %v1521 = vunpack.c.h.b16 %v338
          %v1522 = vunpack.c.l.b16 %v339
          %v1523 = vunpack.c.l.b16 %v340
          %v1524 = vunpack.c.h.b16 %v340
          %v1525 = vunpack.c.l.b16 %v341
          %v1526 = vunpack.c.l.b16 %v342
          %v1527 = vunpack.c.h.b16 %v342
          %v1528 = vunpack.c.l.b16 %v343
          %v1529 = vunpack.c.l.b16 %v344
          %v1530 = vunpack.c.h.b16 %v344
          %v1531 = vunpack.c.l.b16 %v345
          %v1532 = vunpack.c.l.b16 %v346
          %v1533 = vunpack.c.h.b16 %v346
          %v1534 = vunpack.c.l.b16 %v347
          %v1535 = vunpack.c.l.b16 %v348
          %v1536 = vunpack.c.h.b16 %v348
          %v1537 = vunpack.c.l.b16 %v349
          %v1538 = vunpack.c.l.b16 %v350
          %v1539 = vunpack.c.h.b16 %v350
          %v1540 = vunpack.c.l.b16 %v351
          %v1541 = vunpack.c.l.b16 %v352
          %v1542 = vunpack.c.h.b16 %v352
          %v1543 = vunpack.c.l.b16 %v353
          %v1544 = vunpack.c.l.b16 %v354
          %v1545 = vunpack.c.h.b16 %v354
          %v1546 = vunpack.c.l.b16 %v355
          %v1547 = vunpack.c.l.b16 %v356
          %v1548 = vunpack.c.h.b16 %v356
          %v1549 = vunpack.c.l.b16 %v357
          %v1550 = vpack.c.b16 %v1505, %v1502
          %v1551 = vpack.c.b16 %v1506, %v1503
          %v1552 = vpack.c.b16 %v1507, %v1504
          %v1553 = vpack.c.b16 %v1511, %v1508
          %v1554 = vpack.c.b16 %v1512, %v1509
          %v1555 = vpack.c.b16 %v1513, %v1510
          %v1556 = vpack.c.b16 %v1517, %v1514
          %v1557 = vpack.c.b16 %v1518, %v1515
          %v1558 = vpack.c.b16 %v1519, %v1516
          %v1559 = vpack.c.b16 %v1523, %v1520
          %v1560 = vpack.c.b16 %v1524, %v1521
          %v1561 = vpack.c.b16 %v1525, %v1522
          %v1562 = vpack.c.b16 %v1529, %v1526
          %v1563 = vpack.c.b16 %v1530, %v1527
          %v1564 = vpack.c.b16 %v1531, %v1528
          %v1565 = vpack.c.b16 %v1535, %v1532
          %v1566 = vpack.c.b16 %v1536, %v1533
          %v1567 = vpack.c.b16 %v1537, %v1534
          %v1568 = vpack.c.b16 %v1541, %v1538
          %v1569 = vpack.c.b16 %v1542, %v1539
          %v1570 = vpack.c.b16 %v1543, %v1540
          %v1571 = vpack.c.b16 %v1547, %v1544
          %v1572 = vpack.c.b16 %v1548, %v1545
          %v1573 = vpack.c.b16 %v1549, %v1546
          %1598 = vmatprep.subr.bf16.mxu0 %v1551
          %1599 = vmatpush1.bf16.msra.mxu0 %v1550
          %1600 = vmatprep.subr.bf16.mxu0 %v1554
          %1601 = vmatpush1.bf16.msra.mxu0 %v1553
          %1602 = vmatprep.subr.bf16.mxu0 %v1557
          %1603 = vmatpush1.bf16.msra.mxu0 %v1556
          %1604 = vmatprep.subr.bf16.mxu0 %v1560
          %1605 = vmatpush1.bf16.msra.mxu0 %v1559
          %1606 = vmatprep.subr.bf16.mxu0 %v1563
          %1607 = vmatpush1.bf16.msra.mxu0 %v1562
          %1608 = vmatprep.subr.bf16.mxu0 %v1566
          %1609 = vmatpush1.bf16.msra.mxu0 %v1565
          %1610 = vmatprep.subr.bf16.mxu0 %v1569
          %1611 = vmatpush1.bf16.msra.mxu0 %v1568
          %1612 = vmatprep.subr.bf16.mxu0 %v1572
          %1613 = vmatpush1.bf16.msra.mxu0 %v1571
          %1614 = vmatprep.subr.bf16.mxu0 0
          %1615 = vmatpush1.bf16.msra.mxu0 0
          %1616 = vmatprep.subr.bf16.mxu0 0
          %1617 = vmatpush1.bf16.msra.mxu0 0
          %1618 = vmatprep.subr.bf16.mxu0 0
          %1619 = vmatpush1.bf16.msra.mxu0 0
          %1620 = vmatprep.subr.bf16.mxu0 0
          %1621 = vmatpush1.bf16.msra.mxu0 0
          %1622 = vmatprep.subr.bf16.mxu0 0
          %1623 = vmatpush1.bf16.msra.mxu0 0
          %1624 = vmatprep.subr.bf16.mxu0 0
          %1625 = vmatpush1.bf16.msra.mxu0 0
          %1626 = vmatprep.subr.bf16.mxu0 0
          %1627 = vmatpush1.bf16.msra.mxu0 0
          %1628 = vmatprep.subr.bf16.mxu0 0
          %1629 = vmatpush1.bf16.msra.mxu0 0
          %1630 = vmatprep.mubr.bf16.mxu0 0
          %1631 = vmatmul.mubr.bf16.gmra.mrb[0].mxu0 %v1469
          %v1632 = vpop.f32.mrb[0].mxu0
          %v1633 = vadd.f32 0.0, %v1632
          %v1634 = vpop.f32.mrb[0].mxu0
          %v1635 = vadd.f32 0.0, %v1634
          %v1636 = vpop.f32.mrb[0].mxu0
          %v1637 = vpop.f32.mrb[0].mxu0
          %1638 = vdwg.mxu0
          %1639 = vmatprep.subr.bf16.mxu0 0
          %1640 = vmatpush1.bf16.msra.mxu0 %v1552
          %1641 = vmatprep.subr.bf16.mxu0 0
          %1642 = vmatpush1.bf16.msra.mxu0 %v1555
          %1643 = vmatprep.subr.bf16.mxu0 0
          %1644 = vmatpush1.bf16.msra.mxu0 %v1558
          %1645 = vmatprep.subr.bf16.mxu0 0
          %1646 = vmatpush1.bf16.msra.mxu0 %v1561
          %1647 = vmatprep.subr.bf16.mxu0 0
          %1648 = vmatpush1.bf16.msra.mxu0 %v1564
          %1649 = vmatprep.subr.bf16.mxu0 0
          %1650 = vmatpush1.bf16.msra.mxu0 %v1567
          %1651 = vmatprep.subr.bf16.mxu0 0
          %1652 = vmatpush1.bf16.msra.mxu0 %v1570
          %1653 = vmatprep.subr.bf16.mxu0 0
          %1654 = vmatpush1.bf16.msra.mxu0 %v1573
          %1655 = vmatprep.subr.bf16.mxu0 0
          %1656 = vmatpush1.bf16.msra.mxu0 0
          %1657 = vmatprep.subr.bf16.mxu0 0
          %1658 = vmatpush1.bf16.msra.mxu0 0
          %1659 = vmatprep.subr.bf16.mxu0 0
          %1660 = vmatpush1.bf16.msra.mxu0 0
          %1661 = vmatprep.subr.bf16.mxu0 0
          %1662 = vmatpush1.bf16.msra.mxu0 0
          %1663 = vmatprep.subr.bf16.mxu0 0
          %1664 = vmatpush1.bf16.msra.mxu0 0
          %1665 = vmatprep.subr.bf16.mxu0 0
          %1666 = vmatpush1.bf16.msra.mxu0 0
          %1667 = vmatprep.subr.bf16.mxu0 0
          %1668 = vmatpush1.bf16.msra.mxu0 0
          %1669 = vmatprep.subr.bf16.mxu0 0
          %1670 = vmatpush1.bf16.msra.mxu0 0
          %1671 = vmatprep.mubr.bf16.mxu0 0
          %1672 = vmatmul.mubr.bf16.gmra.mrb[0].mxu0 %v1469
          %v1673 = vpop.f32.mrb[0].mxu0
          %v1674 = vadd.f32 0.0, %v1673
          %v1675 = vpop.f32.mrb[0].mxu0
          %v1676 = vpop.f32.mrb[0].mxu0
          %v1677 = vpop.f32.mrb[0].mxu0
          %1678 = vdwg.mxu0
          %v1679 = vadd.f32 %v1466, %v1633
          %v1680 = vxor.u32 %v1679, 2147483648
          %v1681 = vmul.f32 %v1680, 1.442695
          %v1682 = vpow.pop %v1681
          %v1683 = vadd.f32 %v1682, 1.0
          %v1684 = vrcp.pop %v1683
          %v1685 = vmul.f32 1.0, %v1684
          %v1686 = vadd.f32 %v1467, %v1635
          %v1687 = vxor.u32 %v1686, 2147483648
          %v1688 = vmul.f32 %v1687, 1.442695
          %v1689 = vpow.pop %v1688
          %v1690 = vadd.f32 %v1689, 1.0
          %v1691 = vrcp.pop %v1690
          %v1692 = vmul.f32 1.0, %v1691
          %v1694 = vlaneseq
          %v1695 = vshrl.u32 %v1694, 7
          %v1696 = vsub.s32 0, %v1695
          %v1697 = vrot.slane %v358, %v1696
          %v1699 = vadd.f32 %v1674, %v1697
          %v1700 = vmul.f32 %v1685, %v1699
          %v1701 = vadd.f32 %v1468, %v1700
          %v1702 = vtanh.pop %v1701
          %v1703 = vsub.f32 1.0, %v1692
          %v1704 = vmul.f32 %v1703, %v1702
          %v1705 = vmul.f32 %v1692, %v1463
          %v1706 = vadd.f32 %v1704, %v1705
          %v1707 = vstv %s1464
          %vm1708 = vcmp.lt.s32.totalorder %v1707, %v325
          %v1709 = vsel %vm1708, 1, 0
          %1710 = vset.pattern.permute.xlu0 0
          %1711 = vperm.xlu0 %1710, %v1709
          %v1712 = vpop.permute.xlu0 %1711
          %vm1713 = vcmp.eq.s32.totalorder %v1712, 1
          %v1714 = vsel %vm1713, %v1706, %v1463
          %v1715 = vsel %vm1713, %v1706, 0.0
          %s1716 = scalar_lea.vmem %s305, 56 [#allocation8]
          %1717 = vst [vmem:[%s1716] sm:$0xff] %v1715
          %s1718 = sadd.s32 %s1462, 6
          %s1719 = scalar_lea.vmem %s264, 144 [#allocation3]
          %v1720 = vld [vmem:[%s1719] sm:$0xff]
          %v1721 = vld [vmem:[%s1719 + $0x8] sm:$0xff]
          %v1722 = vld [vmem:[%s1719 + $0x10] sm:$0xff]
          %v1723 = vpack.c.bf16 %v1714, %v1714
          %1724 = vmatprep.subr.bf16.mxu0 %v1551
          %1725 = vmatpush1.bf16.msra.mxu0 %v1550
          %1726 = vmatprep.subr.bf16.mxu0 %v1554
          %1727 = vmatpush1.bf16.msra.mxu0 %v1553
          %1728 = vmatprep.subr.bf16.mxu0 %v1557
          %1729 = vmatpush1.bf16.msra.mxu0 %v1556
          %1730 = vmatprep.subr.bf16.mxu0 %v1560
          %1731 = vmatpush1.bf16.msra.mxu0 %v1559
          %1732 = vmatprep.subr.bf16.mxu0 %v1563
          %1733 = vmatpush1.bf16.msra.mxu0 %v1562
          %1734 = vmatprep.subr.bf16.mxu0 %v1566
          %1735 = vmatpush1.bf16.msra.mxu0 %v1565
          %1736 = vmatprep.subr.bf16.mxu0 %v1569
          %1737 = vmatpush1.bf16.msra.mxu0 %v1568
          %1738 = vmatprep.subr.bf16.mxu0 %v1572
          %1739 = vmatpush1.bf16.msra.mxu0 %v1571
          %1740 = vmatprep.subr.bf16.mxu0 0
          %1741 = vmatpush1.bf16.msra.mxu0 0
          %1742 = vmatprep.subr.bf16.mxu0 0
          %1743 = vmatpush1.bf16.msra.mxu0 0
          %1744 = vmatprep.subr.bf16.mxu0 0
          %1745 = vmatpush1.bf16.msra.mxu0 0
          %1746 = vmatprep.subr.bf16.mxu0 0
          %1747 = vmatpush1.bf16.msra.mxu0 0
          %1748 = vmatprep.subr.bf16.mxu0 0
          %1749 = vmatpush1.bf16.msra.mxu0 0
          %1750 = vmatprep.subr.bf16.mxu0 0
          %1751 = vmatpush1.bf16.msra.mxu0 0
          %1752 = vmatprep.subr.bf16.mxu0 0
          %1753 = vmatpush1.bf16.msra.mxu0 0
          %1754 = vmatprep.subr.bf16.mxu0 0
          %1755 = vmatpush1.bf16.msra.mxu0 0
          %1756 = vmatprep.mubr.bf16.mxu0 0
          %1757 = vmatmul.mubr.bf16.gmra.mrb[0].mxu0 %v1723
          %v1758 = vpop.f32.mrb[0].mxu0
          %v1759 = vadd.f32 0.0, %v1758
          %v1760 = vpop.f32.mrb[0].mxu0
          %v1761 = vadd.f32 0.0, %v1760
          %v1762 = vpop.f32.mrb[0].mxu0
          %v1763 = vpop.f32.mrb[0].mxu0
          %1764 = vdwg.mxu0
          %1765 = vmatprep.subr.bf16.mxu0 0
          %1766 = vmatpush1.bf16.msra.mxu0 %v1552
          %1767 = vmatprep.subr.bf16.mxu0 0
          %1768 = vmatpush1.bf16.msra.mxu0 %v1555
          %1769 = vmatprep.subr.bf16.mxu0 0
          %1770 = vmatpush1.bf16.msra.mxu0 %v1558
          %1771 = vmatprep.subr.bf16.mxu0 0
          %1772 = vmatpush1.bf16.msra.mxu0 %v1561
          %1773 = vmatprep.subr.bf16.mxu0 0
          %1774 = vmatpush1.bf16.msra.mxu0 %v1564
          %1775 = vmatprep.subr.bf16.mxu0 0
          %1776 = vmatpush1.bf16.msra.mxu0 %v1567
          %1777 = vmatprep.subr.bf16.mxu0 0
          %1778 = vmatpush1.bf16.msra.mxu0 %v1570
          %1779 = vmatprep.subr.bf16.mxu0 0
          %1780 = vmatpush1.bf16.msra.mxu0 %v1573
          %1781 = vmatprep.subr.bf16.mxu0 0
          %1782 = vmatpush1.bf16.msra.mxu0 0
          %1783 = vmatprep.subr.bf16.mxu0 0
          %1784 = vmatpush1.bf16.msra.mxu0 0
          %1785 = vmatprep.subr.bf16.mxu0 0
          %1786 = vmatpush1.bf16.msra.mxu0 0
          %1787 = vmatprep.subr.bf16.mxu0 0
          %1788 = vmatpush1.bf16.msra.mxu0 0
          %1789 = vmatprep.subr.bf16.mxu0 0
          %1790 = vmatpush1.bf16.msra.mxu0 0
          %1791 = vmatprep.subr.bf16.mxu0 0
          %1792 = vmatpush1.bf16.msra.mxu0 0
          %1793 = vmatprep.subr.bf16.mxu0 0
          %1794 = vmatpush1.bf16.msra.mxu0 0
          %1795 = vmatprep.subr.bf16.mxu0 0
          %1796 = vmatpush1.bf16.msra.mxu0 0
          %1797 = vmatprep.mubr.bf16.mxu0 0
          %1798 = vmatmul.mubr.bf16.gmra.mrb[0].mxu0 %v1723
          %v1799 = vpop.f32.mrb[0].mxu0
          %v1800 = vadd.f32 0.0, %v1799
          %v1801 = vpop.f32.mrb[0].mxu0
          %v1802 = vpop.f32.mrb[0].mxu0
          %v1803 = vpop.f32.mrb[0].mxu0
          %1804 = vdwg.mxu0
          %v1805 = vadd.f32 %v1720, %v1759
          %v1806 = vxor.u32 %v1805, 2147483648
          %v1807 = vmul.f32 %v1806, 1.442695
          %v1808 = vpow.pop %v1807
          %v1809 = vadd.f32 %v1808, 1.0
          %v1810 = vrcp.pop %v1809
          %v1811 = vmul.f32 1.0, %v1810
          %v1812 = vadd.f32 %v1721, %v1761
          %v1813 = vxor.u32 %v1812, 2147483648
          %v1814 = vmul.f32 %v1813, 1.442695
          %v1815 = vpow.pop %v1814
          %v1816 = vadd.f32 %v1815, 1.0
          %v1817 = vrcp.pop %v1816
          %v1818 = vmul.f32 1.0, %v1817
          %v1819 = vadd.f32 %v1800, %v1697
          %v1820 = vmul.f32 %v1811, %v1819
          %v1821 = vadd.f32 %v1722, %v1820
          %v1822 = vtanh.pop %v1821
          %v1823 = vsub.f32 1.0, %v1818
          %v1824 = vmul.f32 %v1823, %v1822
          %v1825 = vmul.f32 %v1818, %v1714
          %v1826 = vadd.f32 %v1824, %v1825
          %v1827 = vstv %s1718
          %vm1828 = vcmp.lt.s32.totalorder %v1827, %v325
          %v1829 = vsel %vm1828, 1, 0
          %1830 = vset.pattern.permute.xlu0 0
          %1831 = vperm.xlu0 %1830, %v1829
          %v1832 = vpop.permute.xlu0 %1831
          %vm1833 = vcmp.eq.s32.totalorder %v1832, 1
          %v1834 = vsel %vm1833, %v1826, %v1714
          %v1835 = vsel %vm1833, %v1826, 0.0
          %s1836 = scalar_lea.vmem %s305, 48 [#allocation8]
          %1837 = vst [vmem:[%s1836] sm:$0xff] %v1835
          %s1838 = sadd.s32 %s1462, 5
          %s1839 = scalar_lea.vmem %s264, 120 [#allocation3]
          %v1840 = vld [vmem:[%s1839] sm:$0xff]
          %v1841 = vld [vmem:[%s1839 + $0x8] sm:$0xff]
          %v1842 = vld [vmem:[%s1839 + $0x10] sm:$0xff]
          %v1843 = vpack.c.bf16 %v1834, %v1834
          %1844 = vmatprep.subr.bf16.mxu0 %v1551
          %1845 = vmatpush1.bf16.msra.mxu0 %v1550
          %1846 = vmatprep.subr.bf16.mxu0 %v1554
          %1847 = vmatpush1.bf16.msra.mxu0 %v1553
          %1848 = vmatprep.subr.bf16.mxu0 %v1557
          %1849 = vmatpush1.bf16.msra.mxu0 %v1556
          %1850 = vmatprep.subr.bf16.mxu0 %v1560
          %1851 = vmatpush1.bf16.msra.mxu0 %v1559
          %1852 = vmatprep.subr.bf16.mxu0 %v1563
          %1853 = vmatpush1.bf16.msra.mxu0 %v1562
          %1854 = vmatprep.subr.bf16.mxu0 %v1566
          %1855 = vmatpush1.bf16.msra.mxu0 %v1565
          %1856 = vmatprep.subr.bf16.mxu0 %v1569
          %1857 = vmatpush1.bf16.msra.mxu0 %v1568
          %1858 = vmatprep.subr.bf16.mxu0 %v1572
          %1859 = vmatpush1.bf16.msra.mxu0 %v1571
          %1860 = vmatprep.subr.bf16.mxu0 0
          %1861 = vmatpush1.bf16.msra.mxu0 0
          %1862 = vmatprep.subr.bf16.mxu0 0
          %1863 = vmatpush1.bf16.msra.mxu0 0
          %1864 = vmatprep.subr.bf16.mxu0 0
          %1865 = vmatpush1.bf16.msra.mxu0 0
          %1866 = vmatprep.subr.bf16.mxu0 0
          %1867 = vmatpush1.bf16.msra.mxu0 0
          %1868 = vmatprep.subr.bf16.mxu0 0
          %1869 = vmatpush1.bf16.msra.mxu0 0
          %1870 = vmatprep.subr.bf16.mxu0 0
          %1871 = vmatpush1.bf16.msra.mxu0 0
          %1872 = vmatprep.subr.bf16.mxu0 0
          %1873 = vmatpush1.bf16.msra.mxu0 0
          %1874 = vmatprep.subr.bf16.mxu0 0
          %1875 = vmatpush1.bf16.msra.mxu0 0
          %1876 = vmatprep.mubr.bf16.mxu0 0
          %1877 = vmatmul.mubr.bf16.gmra.mrb[0].mxu0 %v1843
          %v1878 = vpop.f32.mrb[0].mxu0
          %v1879 = vadd.f32 0.0, %v1878
          %v1880 = vpop.f32.mrb[0].mxu0
          %v1881 = vadd.f32 0.0, %v1880
          %v1882 = vpop.f32.mrb[0].mxu0
          %v1883 = vpop.f32.mrb[0].mxu0
          %1884 = vdwg.mxu0
          %1885 = vmatprep.subr.bf16.mxu0 0
          %1886 = vmatpush1.bf16.msra.mxu0 %v1552
          %1887 = vmatprep.subr.bf16.mxu0 0
          %1888 = vmatpush1.bf16.msra.mxu0 %v1555
          %1889 = vmatprep.subr.bf16.mxu0 0
          %1890 = vmatpush1.bf16.msra.mxu0 %v1558
          %1891 = vmatprep.subr.bf16.mxu0 0
          %1892 = vmatpush1.bf16.msra.mxu0 %v1561
          %1893 = vmatprep.subr.bf16.mxu0 0
          %1894 = vmatpush1.bf16.msra.mxu0 %v1564
          %1895 = vmatprep.subr.bf16.mxu0 0
          %1896 = vmatpush1.bf16.msra.mxu0 %v1567
          %1897 = vmatprep.subr.bf16.mxu0 0
          %1898 = vmatpush1.bf16.msra.mxu0 %v1570
          %1899 = vmatprep.subr.bf16.mxu0 0
          %1900 = vmatpush1.bf16.msra.mxu0 %v1573
          %1901 = vmatprep.subr.bf16.mxu0 0
          %1902 = vmatpush1.bf16.msra.mxu0 0
          %1903 = vmatprep.subr.bf16.mxu0 0
          %1904 = vmatpush1.bf16.msra.mxu0 0
          %1905 = vmatprep.subr.bf16.mxu0 0
          %1906 = vmatpush1.bf16.msra.mxu0 0
          %1907 = vmatprep.subr.bf16.mxu0 0
          %1908 = vmatpush1.bf16.msra.mxu0 0
          %1909 = vmatprep.subr.bf16.mxu0 0
          %1910 = vmatpush1.bf16.msra.mxu0 0
          %1911 = vmatprep.subr.bf16.mxu0 0
          %1912 = vmatpush1.bf16.msra.mxu0 0
          %1913 = vmatprep.subr.bf16.mxu0 0
          %1914 = vmatpush1.bf16.msra.mxu0 0
          %1915 = vmatprep.subr.bf16.mxu0 0
          %1916 = vmatpush1.bf16.msra.mxu0 0
          %1917 = vmatprep.mubr.bf16.mxu0 0
          %1918 = vmatmul.mubr.bf16.gmra.mrb[0].mxu0 %v1843
          %v1919 = vpop.f32.mrb[0].mxu0
          %v1920 = vadd.f32 0.0, %v1919
          %v1921 = vpop.f32.mrb[0].mxu0
          %v1922 = vpop.f32.mrb[0].mxu0
          %v1923 = vpop.f32.mrb[0].mxu0
          %1924 = vdwg.mxu0
          %v1925 = vadd.f32 %v1840, %v1879
          %v1926 = vxor.u32 %v1925, 2147483648
          %v1927 = vmul.f32 %v1926, 1.442695
          %v1928 = vpow.pop %v1927
          %v1929 = vadd.f32 %v1928, 1.0
          %v1930 = vrcp.pop %v1929
          %v1931 = vmul.f32 1.0, %v1930
          %v1932 = vadd.f32 %v1841, %v1881
          %v1933 = vxor.u32 %v1932, 2147483648
          %v1934 = vmul.f32 %v1933, 1.442695
          %v1935 = vpow.pop %v1934
          %v1936 = vadd.f32 %v1935, 1.0
          %v1937 = vrcp.pop %v1936
          %v1938 = vmul.f32 1.0, %v1937
          %v1939 = vadd.f32 %v1920, %v1697
          %v1940 = vmul.f32 %v1931, %v1939
          %v1941 = vadd.f32 %v1842, %v1940
          %v1942 = vtanh.pop %v1941
          %v1943 = vsub.f32 1.0, %v1938
          %v1944 = vmul.f32 %v1943, %v1942
          %v1945 = vmul.f32 %v1938, %v1834
          %v1946 = vadd.f32 %v1944, %v1945
          %v1947 = vstv %s1838
          %vm1948 = vcmp.lt.s32.totalorder %v1947, %v325
          %v1949 = vsel %vm1948, 1, 0
          %1950 = vset.pattern.permute.xlu0 0
          %1951 = vperm.xlu0 %1950, %v1949
          %v1952 = vpop.permute.xlu0 %1951
          %vm1953 = vcmp.eq.s32.totalorder %v1952, 1
          %v1954 = vsel %vm1953, %v1946, %v1834
          %v1955 = vsel %vm1953, %v1946, 0.0
          %s1956 = scalar_lea.vmem %s305, 40 [#allocation8]
          %1957 = vst [vmem:[%s1956] sm:$0xff] %v1955
          %s1958 = sadd.s32 %s1462, 4
          %s1959 = scalar_lea.vmem %s264, 96 [#allocation3]
          %v1960 = vld [vmem:[%s1959] sm:$0xff]
          %v1961 = vld [vmem:[%s1959 + $0x8] sm:$0xff]
          %v1962 = vld [vmem:[%s1959 + $0x10] sm:$0xff]
          %v1963 = vpack.c.bf16 %v1954, %v1954
          %1964 = vmatprep.subr.bf16.mxu0 %v1551
          %1965 = vmatpush1.bf16.msra.mxu0 %v1550
          %1966 = vmatprep.subr.bf16.mxu0 %v1554
          %1967 = vmatpush1.bf16.msra.mxu0 %v1553
          %1968 = vmatprep.subr.bf16.mxu0 %v1557
          %1969 = vmatpush1.bf16.msra.mxu0 %v1556
          %1970 = vmatprep.subr.bf16.mxu0 %v1560
          %1971 = vmatpush1.bf16.msra.mxu0 %v1559
          %1972 = vmatprep.subr.bf16.mxu0 %v1563
          %1973 = vmatpush1.bf16.msra.mxu0 %v1562
          %1974 = vmatprep.subr.bf16.mxu0 %v1566
          %1975 = vmatpush1.bf16.msra.mxu0 %v1565
          %1976 = vmatprep.subr.bf16.mxu0 %v1569
          %1977 = vmatpush1.bf16.msra.mxu0 %v1568
          %1978 = vmatprep.subr.bf16.mxu0 %v1572
          %1979 = vmatpush1.bf16.msra.mxu0 %v1571
          %1980 = vmatprep.subr.bf16.mxu0 0
          %1981 = vmatpush1.bf16.msra.mxu0 0
          %1982 = vmatprep.subr.bf16.mxu0 0
          %1983 = vmatpush1.bf16.msra.mxu0 0
          %1984 = vmatprep.subr.bf16.mxu0 0
          %1985 = vmatpush1.bf16.msra.mxu0 0
          %1986 = vmatprep.subr.bf16.mxu0 0
          %1987 = vmatpush1.bf16.msra.mxu0 0
          %1988 = vmatprep.subr.bf16.mxu0 0
          %1989 = vmatpush1.bf16.msra.mxu0 0
          %1990 = vmatprep.subr.bf16.mxu0 0
          %1991 = vmatpush1.bf16.msra.mxu0 0
          %1992 = vmatprep.subr.bf16.mxu0 0
          %1993 = vmatpush1.bf16.msra.mxu0 0
          %1994 = vmatprep.subr.bf16.mxu0 0
          %1995 = vmatpush1.bf16.msra.mxu0 0
          %1996 = vmatprep.mubr.bf16.mxu0 0
          %1997 = vmatmul.mubr.bf16.gmra.mrb[0].mxu0 %v1963
          %v1998 = vpop.f32.mrb[0].mxu0
          %v1999 = vadd.f32 0.0, %v1998
          %v2000 = vpop.f32.mrb[0].mxu0
          %v2001 = vadd.f32 0.0, %v2000
          %v2002 = vpop.f32.mrb[0].mxu0
          %v2003 = vpop.f32.mrb[0].mxu0
          %2004 = vdwg.mxu0
          %2005 = vmatprep.subr.bf16.mxu0 0
          %2006 = vmatpush1.bf16.msra.mxu0 %v1552
          %2007 = vmatprep.subr.bf16.mxu0 0
          %2008 = vmatpush1.bf16.msra.mxu0 %v1555
          %2009 = vmatprep.subr.bf16.mxu0 0
          %2010 = vmatpush1.bf16.msra.mxu0 %v1558
          %2011 = vmatprep.subr.bf16.mxu0 0
          %2012 = vmatpush1.bf16.msra.mxu0 %v1561
          %2013 = vmatprep.subr.bf16.mxu0 0
          %2014 = vmatpush1.bf16.msra.mxu0 %v1564
          %2015 = vmatprep.subr.bf16.mxu0 0
          %2016 = vmatpush1.bf16.msra.mxu0 %v1567
          %2017 = vmatprep.subr.bf16.mxu0 0
          %2018 = vmatpush1.bf16.msra.mxu0 %v1570
          %2019 = vmatprep.subr.bf16.mxu0 0
          %2020 = vmatpush1.bf16.msra.mxu0 %v1573
          %2021 = vmatprep.subr.bf16.mxu0 0
          %2022 = vmatpush1.bf16.msra.mxu0 0
          %2023 = vmatprep.subr.bf16.mxu0 0
          %2024 = vmatpush1.bf16.msra.mxu0 0
          %2025 = vmatprep.subr.bf16.mxu0 0
          %2026 = vmatpush1.bf16.msra.mxu0 0
          %2027 = vmatprep.subr.bf16.mxu0 0
          %2028 = vmatpush1.bf16.msra.mxu0 0
          %2029 = vmatprep.subr.bf16.mxu0 0
          %2030 = vmatpush1.bf16.msra.mxu0 0
          %2031 = vmatprep.subr.bf16.mxu0 0
          %2032 = vmatpush1.bf16.msra.mxu0 0
          %2033 = vmatprep.subr.bf16.mxu0 0
          %2034 = vmatpush1.bf16.msra.mxu0 0
          %2035 = vmatprep.subr.bf16.mxu0 0
          %2036 = vmatpush1.bf16.msra.mxu0 0
          %2037 = vmatprep.mubr.bf16.mxu0 0
          %2038 = vmatmul.mubr.bf16.gmra.mrb[0].mxu0 %v1963
          %v2039 = vpop.f32.mrb[0].mxu0
          %v2040 = vadd.f32 0.0, %v2039
          %v2041 = vpop.f32.mrb[0].mxu0
          %v2042 = vpop.f32.mrb[0].mxu0
          %v2043 = vpop.f32.mrb[0].mxu0
          %2044 = vdwg.mxu0
          %v2045 = vadd.f32 %v1960, %v1999
          %v2046 = vxor.u32 %v2045, 2147483648
          %v2047 = vmul.f32 %v2046, 1.442695
          %v2048 = vpow.pop %v2047
          %v2049 = vadd.f32 %v2048, 1.0
          %v2050 = vrcp.pop %v2049
          %v2051 = vmul.f32 1.0, %v2050
          %v2052 = vadd.f32 %v1961, %v2001
          %v2053 = vxor.u32 %v2052, 2147483648
          %v2054 = vmul.f32 %v2053, 1.442695
          %v2055 = vpow.pop %v2054
          %v2056 = vadd.f32 %v2055, 1.0
          %v2057 = vrcp.pop %v2056
          %v2058 = vmul.f32 1.0, %v2057
          %v2059 = vadd.f32 %v2040, %v1697
          %v2060 = vmul.f32 %v2051, %v2059
          %v2061 = vadd.f32 %v1962, %v2060
          %v2062 = vtanh.pop %v2061
          %v2063 = vsub.f32 1.0, %v2058
          %v2064 = vmul.f32 %v2063, %v2062
          %v2065 = vmul.f32 %v2058, %v1954
          %v2066 = vadd.f32 %v2064, %v2065
          %v2067 = vstv %s1958
          %vm2068 = vcmp.lt.s32.totalorder %v2067, %v325
          %v2069 = vsel %vm2068, 1, 0
          %2070 = vset.pattern.permute.xlu0 0
          %2071 = vperm.xlu0 %2070, %v2069
          %v2072 = vpop.permute.xlu0 %2071
          %vm2073 = vcmp.eq.s32.totalorder %v2072, 1
          %v2074 = vsel %vm2073, %v2066, %v1954
          %v2075 = vsel %vm2073, %v2066, 0.0
          %s2076 = scalar_lea.vmem %s305, 32 [#allocation8]
          %2077 = vst [vmem:[%s2076] sm:$0xff] %v2075
          %s2078 = sadd.s32 %s1462, 3
          %s2079 = scalar_lea.vmem %s264, 72 [#allocation3]
          %v2080 = vld [vmem:[%s2079] sm:$0xff]
          %v2081 = vld [vmem:[%s2079 + $0x8] sm:$0xff]
          %v2082 = vld [vmem:[%s2079 + $0x10] sm:$0xff]
          %v2083 = vpack.c.bf16 %v2074, %v2074
          %2084 = vmatprep.subr.bf16.mxu0 %v1551
          %2085 = vmatpush1.bf16.msra.mxu0 %v1550
          %2086 = vmatprep.subr.bf16.mxu0 %v1554
          %2087 = vmatpush1.bf16.msra.mxu0 %v1553
          %2088 = vmatprep.subr.bf16.mxu0 %v1557
          %2089 = vmatpush1.bf16.msra.mxu0 %v1556
          %2090 = vmatprep.subr.bf16.mxu0 %v1560
          %2091 = vmatpush1.bf16.msra.mxu0 %v1559
          %2092 = vmatprep.subr.bf16.mxu0 %v1563
          %2093 = vmatpush1.bf16.msra.mxu0 %v1562
          %2094 = vmatprep.subr.bf16.mxu0 %v1566
          %2095 = vmatpush1.bf16.msra.mxu0 %v1565
          %2096 = vmatprep.subr.bf16.mxu0 %v1569
          %2097 = vmatpush1.bf16.msra.mxu0 %v1568
          %2098 = vmatprep.subr.bf16.mxu0 %v1572
          %2099 = vmatpush1.bf16.msra.mxu0 %v1571
          %2100 = vmatprep.subr.bf16.mxu0 0
          %2101 = vmatpush1.bf16.msra.mxu0 0
          %2102 = vmatprep.subr.bf16.mxu0 0
          %2103 = vmatpush1.bf16.msra.mxu0 0
          %2104 = vmatprep.subr.bf16.mxu0 0
          %2105 = vmatpush1.bf16.msra.mxu0 0
          %2106 = vmatprep.subr.bf16.mxu0 0
          %2107 = vmatpush1.bf16.msra.mxu0 0
          %2108 = vmatprep.subr.bf16.mxu0 0
          %2109 = vmatpush1.bf16.msra.mxu0 0
          %2110 = vmatprep.subr.bf16.mxu0 0
          %2111 = vmatpush1.bf16.msra.mxu0 0
          %2112 = vmatprep.subr.bf16.mxu0 0
          %2113 = vmatpush1.bf16.msra.mxu0 0
          %2114 = vmatprep.subr.bf16.mxu0 0
          %2115 = vmatpush1.bf16.msra.mxu0 0
          %2116 = vmatprep.mubr.bf16.mxu0 0
          %2117 = vmatmul.mubr.bf16.gmra.mrb[0].mxu0 %v2083
          %v2118 = vpop.f32.mrb[0].mxu0
          %v2119 = vadd.f32 0.0, %v2118
          %v2120 = vpop.f32.mrb[0].mxu0
          %v2121 = vadd.f32 0.0, %v2120
          %v2122 = vpop.f32.mrb[0].mxu0
          %v2123 = vpop.f32.mrb[0].mxu0
          %2124 = vdwg.mxu0
          %2125 = vmatprep.subr.bf16.mxu0 0
          %2126 = vmatpush1.bf16.msra.mxu0 %v1552
          %2127 = vmatprep.subr.bf16.mxu0 0
          %2128 = vmatpush1.bf16.msra.mxu0 %v1555
          %2129 = vmatprep.subr.bf16.mxu0 0
          %2130 = vmatpush1.bf16.msra.mxu0 %v1558
          %2131 = vmatprep.subr.bf16.mxu0 0
          %2132 = vmatpush1.bf16.msra.mxu0 %v1561
          %2133 = vmatprep.subr.bf16.mxu0 0
          %2134 = vmatpush1.bf16.msra.mxu0 %v1564
          %2135 = vmatprep.subr.bf16.mxu0 0
          %2136 = vmatpush1.bf16.msra.mxu0 %v1567
          %2137 = vmatprep.subr.bf16.mxu0 0
          %2138 = vmatpush1.bf16.msra.mxu0 %v1570
          %2139 = vmatprep.subr.bf16.mxu0 0
          %2140 = vmatpush1.bf16.msra.mxu0 %v1573
          %2141 = vmatprep.subr.bf16.mxu0 0
          %2142 = vmatpush1.bf16.msra.mxu0 0
          %2143 = vmatprep.subr.bf16.mxu0 0
          %2144 = vmatpush1.bf16.msra.mxu0 0
          %2145 = vmatprep.subr.bf16.mxu0 0
          %2146 = vmatpush1.bf16.msra.mxu0 0
          %2147 = vmatprep.subr.bf16.mxu0 0
          %2148 = vmatpush1.bf16.msra.mxu0 0
          %2149 = vmatprep.subr.bf16.mxu0 0
          %2150 = vmatpush1.bf16.msra.mxu0 0
          %2151 = vmatprep.subr.bf16.mxu0 0
          %2152 = vmatpush1.bf16.msra.mxu0 0
          %2153 = vmatprep.subr.bf16.mxu0 0
          %2154 = vmatpush1.bf16.msra.mxu0 0
          %2155 = vmatprep.subr.bf16.mxu0 0
          %2156 = vmatpush1.bf16.msra.mxu0 0
          %2157 = vmatprep.mubr.bf16.mxu0 0
          %2158 = vmatmul.mubr.bf16.gmra.mrb[0].mxu0 %v2083
          %v2159 = vpop.f32.mrb[0].mxu0
          %v2160 = vadd.f32 0.0, %v2159
          %v2161 = vpop.f32.mrb[0].mxu0
          %v2162 = vpop.f32.mrb[0].mxu0
          %v2163 = vpop.f32.mrb[0].mxu0
          %2164 = vdwg.mxu0
          %v2165 = vadd.f32 %v2080, %v2119
          %v2166 = vxor.u32 %v2165, 2147483648
          %v2167 = vmul.f32 %v2166, 1.442695
          %v2168 = vpow.pop %v2167
          %v2169 = vadd.f32 %v2168, 1.0
          %v2170 = vrcp.pop %v2169
          %v2171 = vmul.f32 1.0, %v2170
          %v2172 = vadd.f32 %v2081, %v2121
          %v2173 = vxor.u32 %v2172, 2147483648
          %v2174 = vmul.f32 %v2173, 1.442695
          %v2175 = vpow.pop %v2174
          %v2176 = vadd.f32 %v2175, 1.0
          %v2177 = vrcp.pop %v2176
          %v2178 = vmul.f32 1.0, %v2177
          %v2179 = vadd.f32 %v2160, %v1697
          %v2180 = vmul.f32 %v2171, %v2179
          %v2181 = vadd.f32 %v2082, %v2180
          %v2182 = vtanh.pop %v2181
          %v2183 = vsub.f32 1.0, %v2178
          %v2184 = vmul.f32 %v2183, %v2182
          %v2185 = vmul.f32 %v2178, %v2074
          %v2186 = vadd.f32 %v2184, %v2185
          %v2187 = vstv %s2078
          %vm2188 = vcmp.lt.s32.totalorder %v2187, %v325
          %v2189 = vsel %vm2188, 1, 0
          %2190 = vset.pattern.permute.xlu0 0
          %2191 = vperm.xlu0 %2190, %v2189
          %v2192 = vpop.permute.xlu0 %2191
          %vm2193 = vcmp.eq.s32.totalorder %v2192, 1
          %v2194 = vsel %vm2193, %v2186, %v2074
          %v2195 = vsel %vm2193, %v2186, 0.0
          %s2196 = scalar_lea.vmem %s305, 24 [#allocation8]
          %2197 = vst [vmem:[%s2196] sm:$0xff] %v2195
          %s2198 = sadd.s32 %s1462, 2
          %s2199 = scalar_lea.vmem %s264, 48 [#allocation3]
          %v2200 = vld [vmem:[%s2199] sm:$0xff]
          %v2201 = vld [vmem:[%s2199 + $0x8] sm:$0xff]
          %v2202 = vld [vmem:[%s2199 + $0x10] sm:$0xff]
          %v2203 = vpack.c.bf16 %v2194, %v2194
          %2204 = vmatprep.subr.bf16.mxu0 %v1551
          %2205 = vmatpush1.bf16.msra.mxu0 %v1550
          %2206 = vmatprep.subr.bf16.mxu0 %v1554
          %2207 = vmatpush1.bf16.msra.mxu0 %v1553
          %2208 = vmatprep.subr.bf16.mxu0 %v1557
          %2209 = vmatpush1.bf16.msra.mxu0 %v1556
          %2210 = vmatprep.subr.bf16.mxu0 %v1560
          %2211 = vmatpush1.bf16.msra.mxu0 %v1559
          %2212 = vmatprep.subr.bf16.mxu0 %v1563
          %2213 = vmatpush1.bf16.msra.mxu0 %v1562
          %2214 = vmatprep.subr.bf16.mxu0 %v1566
          %2215 = vmatpush1.bf16.msra.mxu0 %v1565
          %2216 = vmatprep.subr.bf16.mxu0 %v1569
          %2217 = vmatpush1.bf16.msra.mxu0 %v1568
          %2218 = vmatprep.subr.bf16.mxu0 %v1572
          %2219 = vmatpush1.bf16.msra.mxu0 %v1571
          %2220 = vmatprep.subr.bf16.mxu0 0
          %2221 = vmatpush1.bf16.msra.mxu0 0
          %2222 = vmatprep.subr.bf16.mxu0 0
          %2223 = vmatpush1.bf16.msra.mxu0 0
          %2224 = vmatprep.subr.bf16.mxu0 0
          %2225 = vmatpush1.bf16.msra.mxu0 0
          %2226 = vmatprep.subr.bf16.mxu0 0
          %2227 = vmatpush1.bf16.msra.mxu0 0
          %2228 = vmatprep.subr.bf16.mxu0 0
          %2229 = vmatpush1.bf16.msra.mxu0 0
          %2230 = vmatprep.subr.bf16.mxu0 0
          %2231 = vmatpush1.bf16.msra.mxu0 0
          %2232 = vmatprep.subr.bf16.mxu0 0
          %2233 = vmatpush1.bf16.msra.mxu0 0
          %2234 = vmatprep.subr.bf16.mxu0 0
          %2235 = vmatpush1.bf16.msra.mxu0 0
          %2236 = vmatprep.mubr.bf16.mxu0 0
          %2237 = vmatmul.mubr.bf16.gmra.mrb[0].mxu0 %v2203
          %v2238 = vpop.f32.mrb[0].mxu0
          %v2239 = vadd.f32 0.0, %v2238
          %v2240 = vpop.f32.mrb[0].mxu0
          %v2241 = vadd.f32 0.0, %v2240
          %v2242 = vpop.f32.mrb[0].mxu0
          %v2243 = vpop.f32.mrb[0].mxu0
          %2244 = vdwg.mxu0
          %2245 = vmatprep.subr.bf16.mxu0 0
          %2246 = vmatpush1.bf16.msra.mxu0 %v1552
          %2247 = vmatprep.subr.bf16.mxu0 0
          %2248 = vmatpush1.bf16.msra.mxu0 %v1555
          %2249 = vmatprep.subr.bf16.mxu0 0
          %2250 = vmatpush1.bf16.msra.mxu0 %v1558
          %2251 = vmatprep.subr.bf16.mxu0 0
          %2252 = vmatpush1.bf16.msra.mxu0 %v1561
          %2253 = vmatprep.subr.bf16.mxu0 0
          %2254 = vmatpush1.bf16.msra.mxu0 %v1564
          %2255 = vmatprep.subr.bf16.mxu0 0
          %2256 = vmatpush1.bf16.msra.mxu0 %v1567
          %2257 = vmatprep.subr.bf16.mxu0 0
          %2258 = vmatpush1.bf16.msra.mxu0 %v1570
          %2259 = vmatprep.subr.bf16.mxu0 0
          %2260 = vmatpush1.bf16.msra.mxu0 %v1573
          %2261 = vmatprep.subr.bf16.mxu0 0
          %2262 = vmatpush1.bf16.msra.mxu0 0
          %2263 = vmatprep.subr.bf16.mxu0 0
          %2264 = vmatpush1.bf16.msra.mxu0 0
          %2265 = vmatprep.subr.bf16.mxu0 0
          %2266 = vmatpush1.bf16.msra.mxu0 0
          %2267 = vmatprep.subr.bf16.mxu0 0
          %2268 = vmatpush1.bf16.msra.mxu0 0
          %2269 = vmatprep.subr.bf16.mxu0 0
          %2270 = vmatpush1.bf16.msra.mxu0 0
          %2271 = vmatprep.subr.bf16.mxu0 0
          %2272 = vmatpush1.bf16.msra.mxu0 0
          %2273 = vmatprep.subr.bf16.mxu0 0
          %2274 = vmatpush1.bf16.msra.mxu0 0
          %2275 = vmatprep.subr.bf16.mxu0 0
          %2276 = vmatpush1.bf16.msra.mxu0 0
          %2277 = vmatprep.mubr.bf16.mxu0 0
          %2278 = vmatmul.mubr.bf16.gmra.mrb[0].mxu0 %v2203
          %v2279 = vpop.f32.mrb[0].mxu0
          %v2280 = vadd.f32 0.0, %v2279
          %v2281 = vpop.f32.mrb[0].mxu0
          %v2282 = vpop.f32.mrb[0].mxu0
          %v2283 = vpop.f32.mrb[0].mxu0
          %2284 = vdwg.mxu0
          %v2285 = vadd.f32 %v2200, %v2239
          %v2286 = vxor.u32 %v2285, 2147483648
          %v2287 = vmul.f32 %v2286, 1.442695
          %v2288 = vpow.pop %v2287
          %v2289 = vadd.f32 %v2288, 1.0
          %v2290 = vrcp.pop %v2289
          %v2291 = vmul.f32 1.0, %v2290
          %v2292 = vadd.f32 %v2201, %v2241
          %v2293 = vxor.u32 %v2292, 2147483648
          %v2294 = vmul.f32 %v2293, 1.442695
          %v2295 = vpow.pop %v2294
          %v2296 = vadd.f32 %v2295, 1.0
          %v2297 = vrcp.pop %v2296
          %v2298 = vmul.f32 1.0, %v2297
          %v2299 = vadd.f32 %v2280, %v1697
          %v2300 = vmul.f32 %v2291, %v2299
          %v2301 = vadd.f32 %v2202, %v2300
          %v2302 = vtanh.pop %v2301
          %v2303 = vsub.f32 1.0, %v2298
          %v2304 = vmul.f32 %v2303, %v2302
          %v2305 = vmul.f32 %v2298, %v2194
          %v2306 = vadd.f32 %v2304, %v2305
          %v2307 = vstv %s2198
          %vm2308 = vcmp.lt.s32.totalorder %v2307, %v325
          %v2309 = vsel %vm2308, 1, 0
          %2310 = vset.pattern.permute.xlu0 0
          %2311 = vperm.xlu0 %2310, %v2309
          %v2312 = vpop.permute.xlu0 %2311
          %vm2313 = vcmp.eq.s32.totalorder %v2312, 1
          %v2314 = vsel %vm2313, %v2306, %v2194
          %v2315 = vsel %vm2313, %v2306, 0.0
          %s2316 = scalar_lea.vmem %s305, 16 [#allocation8]
          %2317 = vst [vmem:[%s2316] sm:$0xff] %v2315
          %s2318 = sadd.s32 %s1462, 1
          %s2319 = scalar_lea.vmem %s264, 24 [#allocation3]
          %v2320 = vld [vmem:[%s2319] sm:$0xff]
          %v2321 = vld [vmem:[%s2319 + $0x8] sm:$0xff]
          %v2322 = vld [vmem:[%s2319 + $0x10] sm:$0xff]
          %v2323 = vpack.c.bf16 %v2314, %v2314
          %2324 = vmatprep.subr.bf16.mxu0 %v1551
          %2325 = vmatpush1.bf16.msra.mxu0 %v1550
          %2326 = vmatprep.subr.bf16.mxu0 %v1554
          %2327 = vmatpush1.bf16.msra.mxu0 %v1553
          %2328 = vmatprep.subr.bf16.mxu0 %v1557
          %2329 = vmatpush1.bf16.msra.mxu0 %v1556
          %2330 = vmatprep.subr.bf16.mxu0 %v1560
          %2331 = vmatpush1.bf16.msra.mxu0 %v1559
          %2332 = vmatprep.subr.bf16.mxu0 %v1563
          %2333 = vmatpush1.bf16.msra.mxu0 %v1562
          %2334 = vmatprep.subr.bf16.mxu0 %v1566
          %2335 = vmatpush1.bf16.msra.mxu0 %v1565
          %2336 = vmatprep.subr.bf16.mxu0 %v1569
          %2337 = vmatpush1.bf16.msra.mxu0 %v1568
          %2338 = vmatprep.subr.bf16.mxu0 %v1572
          %2339 = vmatpush1.bf16.msra.mxu0 %v1571
          %2340 = vmatprep.subr.bf16.mxu0 0
          %2341 = vmatpush1.bf16.msra.mxu0 0
          %2342 = vmatprep.subr.bf16.mxu0 0
          %2343 = vmatpush1.bf16.msra.mxu0 0
          %2344 = vmatprep.subr.bf16.mxu0 0
          %2345 = vmatpush1.bf16.msra.mxu0 0
          %2346 = vmatprep.subr.bf16.mxu0 0
          %2347 = vmatpush1.bf16.msra.mxu0 0
          %2348 = vmatprep.subr.bf16.mxu0 0
          %2349 = vmatpush1.bf16.msra.mxu0 0
          %2350 = vmatprep.subr.bf16.mxu0 0
          %2351 = vmatpush1.bf16.msra.mxu0 0
          %2352 = vmatprep.subr.bf16.mxu0 0
          %2353 = vmatpush1.bf16.msra.mxu0 0
          %2354 = vmatprep.subr.bf16.mxu0 0
          %2355 = vmatpush1.bf16.msra.mxu0 0
          %2356 = vmatprep.mubr.bf16.mxu0 0
          %2357 = vmatmul.mubr.bf16.gmra.mrb[0].mxu0 %v2323
          %v2358 = vpop.f32.mrb[0].mxu0
          %v2359 = vadd.f32 0.0, %v2358
          %v2360 = vpop.f32.mrb[0].mxu0
          %v2361 = vadd.f32 0.0, %v2360
          %v2362 = vpop.f32.mrb[0].mxu0
          %v2363 = vpop.f32.mrb[0].mxu0
          %2364 = vdwg.mxu0
          %2365 = vmatprep.subr.bf16.mxu0 0
          %2366 = vmatpush1.bf16.msra.mxu0 %v1552
          %2367 = vmatprep.subr.bf16.mxu0 0
          %2368 = vmatpush1.bf16.msra.mxu0 %v1555
          %2369 = vmatprep.subr.bf16.mxu0 0
          %2370 = vmatpush1.bf16.msra.mxu0 %v1558
          %2371 = vmatprep.subr.bf16.mxu0 0
          %2372 = vmatpush1.bf16.msra.mxu0 %v1561
          %2373 = vmatprep.subr.bf16.mxu0 0
          %2374 = vmatpush1.bf16.msra.mxu0 %v1564
          %2375 = vmatprep.subr.bf16.mxu0 0
          %2376 = vmatpush1.bf16.msra.mxu0 %v1567
          %2377 = vmatprep.subr.bf16.mxu0 0
          %2378 = vmatpush1.bf16.msra.mxu0 %v1570
          %2379 = vmatprep.subr.bf16.mxu0 0
          %2380 = vmatpush1.bf16.msra.mxu0 %v1573
          %2381 = vmatprep.subr.bf16.mxu0 0
          %2382 = vmatpush1.bf16.msra.mxu0 0
          %2383 = vmatprep.subr.bf16.mxu0 0
          %2384 = vmatpush1.bf16.msra.mxu0 0
          %2385 = vmatprep.subr.bf16.mxu0 0
          %2386 = vmatpush1.bf16.msra.mxu0 0
          %2387 = vmatprep.subr.bf16.mxu0 0
          %2388 = vmatpush1.bf16.msra.mxu0 0
          %2389 = vmatprep.subr.bf16.mxu0 0
          %2390 = vmatpush1.bf16.msra.mxu0 0
          %2391 = vmatprep.subr.bf16.mxu0 0
          %2392 = vmatpush1.bf16.msra.mxu0 0
          %2393 = vmatprep.subr.bf16.mxu0 0
          %2394 = vmatpush1.bf16.msra.mxu0 0
          %2395 = vmatprep.subr.bf16.mxu0 0
          %2396 = vmatpush1.bf16.msra.mxu0 0
          %2397 = vmatprep.mubr.bf16.mxu0 0
          %2398 = vmatmul.mubr.bf16.gmra.mrb[0].mxu0 %v2323
          %v2399 = vpop.f32.mrb[0].mxu0
          %v2400 = vadd.f32 0.0, %v2399
          %v2401 = vpop.f32.mrb[0].mxu0
          %v2402 = vpop.f32.mrb[0].mxu0
          %v2403 = vpop.f32.mrb[0].mxu0
          %2404 = vdwg.mxu0
          %v2405 = vadd.f32 %v2320, %v2359
          %v2406 = vxor.u32 %v2405, 2147483648
          %v2407 = vmul.f32 %v2406, 1.442695
          %v2408 = vpow.pop %v2407
          %v2409 = vadd.f32 %v2408, 1.0
          %v2410 = vrcp.pop %v2409
          %v2411 = vmul.f32 1.0, %v2410
          %v2412 = vadd.f32 %v2321, %v2361
          %v2413 = vxor.u32 %v2412, 2147483648
          %v2414 = vmul.f32 %v2413, 1.442695
          %v2415 = vpow.pop %v2414
          %v2416 = vadd.f32 %v2415, 1.0
          %v2417 = vrcp.pop %v2416
          %v2418 = vmul.f32 1.0, %v2417
          %v2419 = vadd.f32 %v2400, %v1697
          %v2420 = vmul.f32 %v2411, %v2419
          %v2421 = vadd.f32 %v2322, %v2420
          %v2422 = vtanh.pop %v2421
          %v2423 = vsub.f32 1.0, %v2418
          %v2424 = vmul.f32 %v2423, %v2422
          %v2425 = vmul.f32 %v2418, %v2314
          %v2426 = vadd.f32 %v2424, %v2425
          %v2427 = vstv %s2318
          %vm2428 = vcmp.lt.s32.totalorder %v2427, %v325
          %v2429 = vsel %vm2428, 1, 0
          %2430 = vset.pattern.permute.xlu0 0
          %2431 = vperm.xlu0 %2430, %v2429
          %v2432 = vpop.permute.xlu0 %2431
          %vm2433 = vcmp.eq.s32.totalorder %v2432, 1
          %v2434 = vsel %vm2433, %v2426, %v2314
          %v2435 = vsel %vm2433, %v2426, 0.0
          %s2436 = scalar_lea.vmem %s305, 8 [#allocation8]
          %2437 = vst [vmem:[%s2436] sm:$0xff] %v2435
          %v2438 = vld [vmem:[%s264] sm:$0xff]
          %v2439 = vld [vmem:[%s264 + $0x8] sm:$0xff]
          %v2440 = vld [vmem:[%s264 + $0x10] sm:$0xff]
          %v2441 = vpack.c.bf16 %v2434, %v2434
          %2442 = vmatprep.subr.bf16.mxu0 %v1551
          %2443 = vmatpush1.bf16.msra.mxu0 %v1550
          %2444 = vmatprep.subr.bf16.mxu0 %v1554
          %2445 = vmatpush1.bf16.msra.mxu0 %v1553
          %2446 = vmatprep.subr.bf16.mxu0 %v1557
          %2447 = vmatpush1.bf16.msra.mxu0 %v1556
          %2448 = vmatprep.subr.bf16.mxu0 %v1560
          %2449 = vmatpush1.bf16.msra.mxu0 %v1559
          %2450 = vmatprep.subr.bf16.mxu0 %v1563
          %2451 = vmatpush1.bf16.msra.mxu0 %v1562
          %2452 = vmatprep.subr.bf16.mxu0 %v1566
          %2453 = vmatpush1.bf16.msra.mxu0 %v1565
          %2454 = vmatprep.subr.bf16.mxu0 %v1569
          %2455 = vmatpush1.bf16.msra.mxu0 %v1568
          %2456 = vmatprep.subr.bf16.mxu0 %v1572
          %2457 = vmatpush1.bf16.msra.mxu0 %v1571
          %2458 = vmatprep.subr.bf16.mxu0 0
          %2459 = vmatpush1.bf16.msra.mxu0 0
          %2460 = vmatprep.subr.bf16.mxu0 0
          %2461 = vmatpush1.bf16.msra.mxu0 0
          %2462 = vmatprep.subr.bf16.mxu0 0
          %2463 = vmatpush1.bf16.msra.mxu0 0
          %2464 = vmatprep.subr.bf16.mxu0 0
          %2465 = vmatpush1.bf16.msra.mxu0 0
          %2466 = vmatprep.subr.bf16.mxu0 0
          %2467 = vmatpush1.bf16.msra.mxu0 0
          %2468 = vmatprep.subr.bf16.mxu0 0
          %2469 = vmatpush1.bf16.msra.mxu0 0
          %2470 = vmatprep.subr.bf16.mxu0 0
          %2471 = vmatpush1.bf16.msra.mxu0 0
          %2472 = vmatprep.subr.bf16.mxu0 0
          %2473 = vmatpush1.bf16.msra.mxu0 0
          %2474 = vmatprep.mubr.bf16.mxu0 0
          %2475 = vmatmul.mubr.bf16.gmra.mrb[0].mxu0 %v2441
          %v2476 = vpop.f32.mrb[0].mxu0
          %v2477 = vadd.f32 0.0, %v2476
          %v2478 = vpop.f32.mrb[0].mxu0
          %v2479 = vadd.f32 0.0, %v2478
          %v2480 = vpop.f32.mrb[0].mxu0
          %v2481 = vpop.f32.mrb[0].mxu0
          %2482 = vdwg.mxu0
          %2483 = vmatprep.subr.bf16.mxu0 0
          %2484 = vmatpush1.bf16.msra.mxu0 %v1552
          %2485 = vmatprep.subr.bf16.mxu0 0
          %2486 = vmatpush1.bf16.msra.mxu0 %v1555
          %2487 = vmatprep.subr.bf16.mxu0 0
          %2488 = vmatpush1.bf16.msra.mxu0 %v1558
          %2489 = vmatprep.subr.bf16.mxu0 0
          %2490 = vmatpush1.bf16.msra.mxu0 %v1561
          %2491 = vmatprep.subr.bf16.mxu0 0
          %2492 = vmatpush1.bf16.msra.mxu0 %v1564
          %2493 = vmatprep.subr.bf16.mxu0 0
          %2494 = vmatpush1.bf16.msra.mxu0 %v1567
          %2495 = vmatprep.subr.bf16.mxu0 0
          %2496 = vmatpush1.bf16.msra.mxu0 %v1570
          %2497 = vmatprep.subr.bf16.mxu0 0
          %2498 = vmatpush1.bf16.msra.mxu0 %v1573
          %2499 = vmatprep.subr.bf16.mxu0 0
          %2500 = vmatpush1.bf16.msra.mxu0 0
          %2501 = vmatprep.subr.bf16.mxu0 0
          %2502 = vmatpush1.bf16.msra.mxu0 0
          %2503 = vmatprep.subr.bf16.mxu0 0
          %2504 = vmatpush1.bf16.msra.mxu0 0
          %2505 = vmatprep.subr.bf16.mxu0 0
          %2506 = vmatpush1.bf16.msra.mxu0 0
          %2507 = vmatprep.subr.bf16.mxu0 0
          %2508 = vmatpush1.bf16.msra.mxu0 0
          %2509 = vmatprep.subr.bf16.mxu0 0
          %2510 = vmatpush1.bf16.msra.mxu0 0
          %2511 = vmatprep.subr.bf16.mxu0 0
          %2512 = vmatpush1.bf16.msra.mxu0 0
          %2513 = vmatprep.subr.bf16.mxu0 0
          %2514 = vmatpush1.bf16.msra.mxu0 0
          %2515 = vmatprep.mubr.bf16.mxu0 0
          %2516 = vmatmul.mubr.bf16.gmra.mrb[0].mxu0 %v2441
          %v2517 = vpop.f32.mrb[0].mxu0
          %v2518 = vadd.f32 0.0, %v2517
          %v2519 = vpop.f32.mrb[0].mxu0
          %v2520 = vpop.f32.mrb[0].mxu0
          %v2521 = vpop.f32.mrb[0].mxu0
          %2522 = vdwg.mxu0
          %v2523 = vadd.f32 %v2438, %v2477
          %v2524 = vxor.u32 %v2523, 2147483648
          %v2525 = vmul.f32 %v2524, 1.442695
          %v2526 = vpow.pop %v2525
          %v2527 = vadd.f32 %v2526, 1.0
          %v2528 = vrcp.pop %v2527
          %v2529 = vmul.f32 1.0, %v2528
          %v2530 = vadd.f32 %v2439, %v2479
          %v2531 = vxor.u32 %v2530, 2147483648
          %v2532 = vmul.f32 %v2531, 1.442695
          %v2533 = vpow.pop %v2532
          %v2534 = vadd.f32 %v2533, 1.0
          %v2535 = vrcp.pop %v2534
          %v2536 = vmul.f32 1.0, %v2535
          %v2537 = vadd.f32 %v2518, %v1697
          %v2538 = vmul.f32 %v2529, %v2537
          %v2539 = vadd.f32 %v2440, %v2538
          %v2540 = vtanh.pop %v2539
          %v2541 = vsub.f32 1.0, %v2536
          %v2542 = vmul.f32 %v2541, %v2540
          %v2543 = vmul.f32 %v2536, %v2434
          %v2544 = vadd.f32 %v2542, %v2543
          %v2545 = vstv %s1462
          %vm2546 = vcmp.lt.s32.totalorder %v2545, %v325
          %v2547 = vsel %vm2546, 1, 0
          %2548 = vset.pattern.permute.xlu0 0
          %2549 = vperm.xlu0 %2548, %v2547
          %v2550 = vpop.permute.xlu0 %2549
          %vm2551 = vcmp.eq.s32.totalorder %v2550, 1
          %v2552 = vsel %vm2551, %v2544, %v2434
          %v2553 = vsel %vm2551, %v2544, 0.0
          %2554 = vst [vmem:[%s305] sm:$0xff] %v2553
          %2555 = vst [vmem:[#allocation2] sm:$0xff] %v2552
        $region56: #{tpu_custom_call.1} parent=35 // pred_fallthru
          _
        %s2556 = sand.u32 %s163, 1
        %s2557 = scalar_lea.sflag [#allocation5], %s2556
        %s2558 = sand.u32 %s163, 1
        %s2559 = smul.addr %s2558, 64
        %s2560 = scalar_lea.vmem [#allocation8], %s2559
        // Predicated region
        $region57: #{tpu_custom_call.1} parent=35 // pred_check
          %p2561 = pneg %p173
        $region58: #{tpu_custom_call.1} parent=35 // pred_check_branch
          %2563 = sbr.rel (%p2561) target = $region60
        $region59: #{tpu_custom_call.1} parent=35 // pred_region
          %s2564 = smul.u32 %s29, 2
          %s2565 = ssub.s32 0, %s2564
          %s2566 = smul.u32 %s28, %s2565
          %s2567 = sadd.s32 %s2566, %s29
          %s2568 = smul.u32 8, %s2567
          %s2570 = ssub.s32 1024, 1024
          %2571 = vsyncadd %s2557, %s2570
          %s2572 = smul.addr %s2568, 2
          %s2573 = sadd.s32 %s28, %s2572
          %s2574 = smul.addr %s2573, 128
          %s2575 = scalar_lea.hbm %s4, %s2574
          %s2576 = sshll.u32 %s2560, 4
          %s2577 = int_to_ptr.vmem [resolvable:$true] %s2576
          %2582 = dma.vmem_to_hbm [thread:$0]  %s2577, 1024, %s2575, %s2557, 128, 256, 8
        $region60: #{tpu_custom_call.1} parent=35 // pred_fallthru
          _
      $region36: #{tpu_custom_call.1} parent=5 // pred_fallthru
        _
      %p2583 = scmp.le.s32.totalorder 2, %s19
      // Predicated region
      $region61: #{tpu_custom_call.1} parent=5 // pred_check
        %p2584 = pneg %p2583
      $region62: #{tpu_custom_call.1} parent=5 // pred_check_branch
        %2586 = sbr.rel (%p2584) target = $region64
      $region63: #{tpu_custom_call.1} parent=5 // pred_region
        %s2587 = ssub.s32 %s19, 2
        // Predicated region
        $region65: #{tpu_custom_call.1} parent=63 // pred_check
          %p2588 = pneg %p179
        $region66: #{tpu_custom_call.1} parent=63 // pred_check_branch
          %2590 = sbr.rel (%p2588) target = $region68
        $region67: #{tpu_custom_call.1} parent=63 // pred_region
          %s2591 = sand.u32 %s164, 1
          %s2592 = scalar_lea.sflag [#allocation5], %s2591
          %s2593 = sand.u32 %s164, 1
          %s2594 = smul.addr %s2593, 64
          %s2595 = scalar_lea.vmem [#allocation8], %s2594
          %2596 = dma.done %s2592, 1024
        $region68: #{tpu_custom_call.1} parent=63 // pred_fallthru
          _
      $region64: #{tpu_custom_call.1} parent=5 // pred_fallthru
        _
    $region6: #{tpu_custom_call.1} parent=1 // loop_footer
      %s23 = sadd.s32 1, %s19
    $region7: #{tpu_custom_call.1} parent=1 // loop_footer_branch
      %18 = sbr.rel target = $region3
    $region8: #{tpu_custom_call.1} parent=1 // loop_exit
      _
    %2597 = vsyncpa [#allocation4], 1
    %s2598 = scalar_lea.sflag [#allocation4], 1
    %2599 = vsyncpa %s2598, 1
    %2600 = vsyncpa [#allocation7], 1
    %s2601 = scalar_lea.sflag [#allocation7], 1
    %2602 = vsyncpa %s2601, 1
    %2603 = vsyncpa [#allocation5], 1
    %s2604 = scalar_lea.sflag [#allocation5], 1
    %2605 = vsyncpa %s2604, 1

</llo_original>
